<compile_context>
chip_gen: v7x
topology: tpu7x:2x2x1
jax: 0.10.0
libtpu: 0.0.40
codegen_flags: <defaults>
</compile_context>

<pallas_src>
import numpy as np
import jax
import jax.numpy as jnp
from jax import lax
from jax.experimental import pallas as pl
from jax.experimental.pallas import tpu as pltpu

N_GROUP = 8  # |C8| = size of the regular representation


# ----------------------------------------------------------------------------
# fused kernel: conv3x3+ReLU -> conv3x3+ReLU -> 2x2 avg-pool
# ----------------------------------------------------------------------------
def _downsample_fused_kernel(x_ref, w1_ref, b1_ref, w2_ref, b2_ref, pool_ref,
                             down_ref, p_ref, pad1_ref, pad2_ref):
    # x_ref   : (1, H, W, Cin)     f32  input block (NHWC)
    # w1_ref  : (9*Cin, Cmid)      bf16 conv1 weights, im2col tap order
    # b1_ref  : (1, Cmid)          f32
    # w2_ref  : (9*Cmid, Cout)     bf16
    # b2_ref  : (1, Cout)          f32
    # pool_ref: (H*W, H*W//4)      f32  transposed 2x2 avg-pool operator
    # down_ref: (1, Cout, H*W)     f32  conv-stack output (NCHW, lane-dense)
    # p_ref   : (1, Cout, H*W//4)  f32  pooled output     (NCHW, lane-dense)
    # pad1/2  : zero-padded conv inputs (VMEM scratch)
    H, W, Cin = x_ref.shape[1], x_ref.shape[2], x_ref.shape[3]
    Cmid = w1_ref.shape[1]
    Cout = w2_ref.shape[1]
    HW = H * W

    # zero fill supplies the "same"-conv (padding=1) border; interior is
    # overwritten below.  (Re-zeroed every grid step so megacore sharding of
    # the batch axis stays correct.)
    pad1_ref[...] = jnp.zeros_like(pad1_ref)
    pad2_ref[...] = jnp.zeros_like(pad2_ref)

    def im2col(pad_ref, c):
        # (H*W, 9*c) patch slab; tap order (dy, dx) row-major matches the
        # (3, 3, c, cout) -> (9*c, cout) weight reshape done in the wrapper.
        cols = []
        for dy in range(3):
            for dx in range(3):
                cols.append(pad_ref[dy:dy + H, dx:dx + W, :].reshape(HW, c))
        return jnp.concatenate(cols, axis=-1)

    # ---- conv1 + bias + ReLU: one K = 9*Cin bf16 MXU matmul ----------------
    pad1_ref[1:H + 1, 1:W + 1, :] = x_ref[0]
    a1 = jnp.dot(im2col(pad1_ref, Cin).astype(jnp.bfloat16), w1_ref[...],
                 preferred_element_type=jnp.float32)
    a1 = jnp.maximum(a1 + b1_ref[...], 0.0)                  # (HW, Cmid) f32

    # ---- conv2 + bias + ReLU ------------------------------------------------
    pad2_ref[1:H + 1, 1:W + 1, :] = a1.reshape(H, W, Cmid)
    a2 = jnp.dot(im2col(pad2_ref, Cmid).astype(jnp.bfloat16), w2_ref[...],
                 preferred_element_type=jnp.float32)
    down = jnp.maximum(a2 + b2_ref[...], 0.0)                # (HW, Cout) f32

    # ---- lane-dense NCHW store: one in-kernel transpose -> (Cout, HW) -------
    down_t = down.T
    down_ref[0] = down_t.astype(down_ref.dtype)

    # ---- 2x2 avg-pool (stride 2) as a small matmul --------------------------
    p_ref[0] = jnp.dot(down_t, pool_ref[...],
                       preferred_element_type=jnp.float32).astype(p_ref.dtype)


def _avgpool2x2_matrix_t(H, W):
    """Transposed pooling operator P^T (H*W, H*W/4): avg of each 2x2 block."""
    Hh, Wh = H // 2, W // 2
    m = np.zeros((H * W, Hh * Wh), np.float32)
    for i in range(Hh):
        for j in range(Wh):
            for r in range(2):
                for s in range(2):
                    m[(2 * i + r) * W + (2 * j + s), i * Wh + j] = 0.25
    return jnp.asarray(m)


def downsample_forward(x_nchw, w1_flat, b1, w2_flat, b2):
    """Fused DownSample forward. x_nchw: (B, Cin, H, W). Returns (down, p) NCHW."""
    B, Cin, H, W = x_nchw.shape
    assert H % 2 == 0 and W % 2 == 0, "2x2 avg-pool needs even spatial dims"
    assert Cin * 9 == w1_flat.shape[0]
    Cmid = w1_flat.shape[1]
    Cout = w2_flat.shape[1]
    HW, HWp = H * W, (H // 2) * (W // 2)

    x_nhwc = jnp.transpose(x_nchw, (0, 2, 3, 1))        # single input relayout
    pool_t = _avgpool2x2_matrix_t(H, W)                 # (HW, HW//4) constant

    down_flat, p_flat = pl.pallas_call(
        _downsample_fused_kernel,
        out_shape=(jax.ShapeDtypeStruct((B, Cout, HW), x_nchw.dtype),
                   jax.ShapeDtypeStruct((B, Cout, HWp), x_nchw.dtype)),
        grid=(B,),
        in_specs=[
            pl.BlockSpec((1, H, W, Cin), lambda b: (b, 0, 0, 0)),
            pl.BlockSpec((9 * Cin, Cmid), lambda b: (0, 0)),
            pl.BlockSpec((1, Cmid), lambda b: (0, 0)),
            pl.BlockSpec((9 * Cmid, Cout), lambda b: (0, 0)),
            pl.BlockSpec((1, Cout), lambda b: (0, 0)),
            pl.BlockSpec((HW, HWp), lambda b: (0, 0)),
        ],
        out_specs=(
            pl.BlockSpec((1, Cout, HW), lambda b: (b, 0, 0)),
            pl.BlockSpec((1, Cout, HWp), lambda b: (b, 0, 0)),
        ),
        scratch_shapes=[
            pltpu.VMEM((H + 2, W + 2, Cin), jnp.float32),
            pltpu.VMEM((H + 2, W + 2, Cmid), jnp.float32),
        ],
        compiler_params=pltpu.CompilerParams(dimension_semantics=("parallel",)),
    )(x_nhwc, w1_flat, b1.reshape(1, Cmid), w2_flat, b2.reshape(1, Cout), pool_t)

    # outputs come out already NCHW-ordered; these reshapes are free.
    down = down_flat.reshape(B, Cout, H, W)
    p = p_flat.reshape(B, Cout, H // 2, W // 2)
    return down, p


# ----------------------------------------------------------------------------
# DownSample module
# ----------------------------------------------------------------------------
class DownSamplePallas:
    def __init__(self, in_channels, out_channels, kernel_size=3, N=N_GROUP,
                 first_conv=False, key=None):
        assert kernel_size == 3, "only the 3x3 case of the module is implemented"
        if key is None:
            key = jax.random.PRNGKey(0)
        c_in = in_channels * (1 if first_conv else N)
        c_out = out_channels * N
        k1, k2, k3, k4 = jax.random.split(key, 4)
        # TODO(synk): escnn steerable-basis weight expansion not reproduced;
        # free conv weights of the correct shapes, per-field bias kept.
        self.w1_hwio = 0.1 * jax.random.normal(k1, (3, 3, c_in, c_out), jnp.float32)
        self.b1 = jnp.repeat(
            0.05 * jax.random.normal(k2, (out_channels,), jnp.float32), N)
        self.w2_hwio = 0.1 * jax.random.normal(k3, (3, 3, c_out, c_out), jnp.float32)
        self.b2 = jnp.repeat(
            0.05 * jax.random.normal(k4, (out_channels,), jnp.float32), N)
        # kernel-side forms: bf16, (9*Cin, Cout), tap order matches im2col
        self.w1_flat = self.w1_hwio.reshape(9 * c_in, c_out).astype(jnp.bfloat16)
        self.w2_flat = self.w2_hwio.reshape(9 * c_out, c_out).astype(jnp.bfloat16)

    def __call__(self, x_nchw):
        return downsample_forward(x_nchw, self.w1_flat, self.b1,
                                  self.w2_flat, self.b2)


# ----------------------------------------------------------------------------
# plain-JAX reference (same precision model: bf16 MXU inputs, f32 accumulation)
# ----------------------------------------------------------------------------
def _ref_forward(mod, x_nchw):
    x = jnp.transpose(x_nchw, (0, 2, 3, 1))
    xb = x.astype(jnp.bfloat16).astype(jnp.float32)
    w1 = mod.w1_flat.astype(jnp.float32).reshape(mod.w1_hwio.shape)
    w2 = mod.w2_flat.astype(jnp.float32).reshape(mod.w2_hwio.shape)
    y = lax.conv_general_dilated(xb, w1, (1, 1), "SAME",
                                 dimension_numbers=("NHWC", "HWIO", "NHWC"))
    y = jnp.maximum(y + mod.b1, 0.0)
    yb = y.astype(jnp.bfloat16).astype(jnp.float32)
    y2 = lax.conv_general_dilated(yb, w2, (1, 1), "SAME",
                                  dimension_numbers=("NHWC", "HWIO", "NHWC"))
    down = jnp.maximum(y2 + mod.b2, 0.0)
    B, H, W, C = down.shape
    p = down.reshape(B, H // 2, 2, W // 2, 2, C).mean(axis=(2, 4))
    return jnp.transpose(down, (0, 3, 1, 2)), jnp.transpose(p, (0, 3, 1, 2))


if __name__ == "__main__":
    B, in_ch, out_ch, N = 2, 2, 4, N_GROUP
    H = W = 16
    key = jax.random.PRNGKey(0)
    k_mod, k_x = jax.random.split(key)

    module = DownSamplePallas(in_ch, out_ch, kernel_size=3, N=N,
                              first_conv=False, key=k_mod)
    x = jax.random.normal(k_x, (B, in_ch * N, H, W), jnp.float32)

    down, p = jax.jit(module.__call__)(x)
    down, p = jax.block_until_ready((down, p))

    assert down.shape == (B, out_ch * N, H, W), down.shape
    assert p.shape == (B, out_ch * N, H // 2, W // 2), p.shape

    ref_down, ref_p = jax.block_until_ready(_ref_forward(module, x))
    # bf16 MXU inputs (f32 accumulation) vs an f32 XLA reference: differences
    # are accumulation order + bf16 rounding of the conv1->conv2 intermediate.
    ok_d = bool(jnp.allclose(down, ref_down, rtol=5e-3, atol=5e-3))
    ok_p = bool(jnp.allclose(p, ref_p, rtol=5e-3, atol=5e-3))
    if not (ok_d and ok_p):
        raise RuntimeError(
            "Pallas output does not match JAX reference: "
            f"max|d_down|={float(jnp.max(jnp.abs(down - ref_down)))}, "
            f"max|d_p|={float(jnp.max(jnp.abs(p - ref_p)))}")
    print("KERNEL_OK")
</pallas_src>

<mosaic_0001>
module attributes {stable_mosaic.version = 11 : i64} {
  func.func @_downsample_fused_kernel(%arg0: i32, %arg1: memref<1x16x16x16xf32, #tpu.memory_space<vmem>>, %arg2: memref<144x32xbf16, #tpu.memory_space<vmem>>, %arg3: memref<1x32xf32, #tpu.memory_space<vmem>>, %arg4: memref<288x32xbf16, #tpu.memory_space<vmem>>, %arg5: memref<1x32xf32, #tpu.memory_space<vmem>>, %arg6: memref<256x64xf32, #tpu.memory_space<vmem>>, %arg7: memref<1x32x256xf32, #tpu.memory_space<vmem>>, %arg8: memref<1x32x64xf32, #tpu.memory_space<vmem>>, %arg9: memref<18x18x16xf32, #tpu.memory_space<vmem>>, %arg10: memref<18x18x32xf32, #tpu.memory_space<vmem>>) attributes {dimension_semantics = [#tpu.dimension_semantics<parallel>], iteration_bounds = array<i64: 2>, scalar_prefetch = 0 : i64, scratch_operands = 2 : i64, tpu.core_type = #tpu.core_type<tc>, window_params = [{transform_indices = @transform_0, window_bounds = array<i64: 1, 16, 16, 16>}, {pipeline_mode = #tpu.pipeline_mode<synchronous>, transform_indices = @transform_1, window_bounds = array<i64: 144, 32>}, {pipeline_mode = #tpu.pipeline_mode<synchronous>, transform_indices = @transform_2, window_bounds = array<i64: 1, 32>}, {pipeline_mode = #tpu.pipeline_mode<synchronous>, transform_indices = @transform_3, window_bounds = array<i64: 288, 32>}, {pipeline_mode = #tpu.pipeline_mode<synchronous>, transform_indices = @transform_4, window_bounds = array<i64: 1, 32>}, {pipeline_mode = #tpu.pipeline_mode<synchronous>, transform_indices = @transform_5, window_bounds = array<i64: 256, 64>}, {transform_indices = @transform_6, window_bounds = array<i64: 1, 32, 256>}, {transform_indices = @transform_7, window_bounds = array<i64: 1, 32, 64>}]} {
    %cst = arith.constant 0.000000e+00 : f32
    %0 = vector.broadcast %cst : f32 to vector<18x18x16xf32>
    %c0 = arith.constant 0 : index
    %c0_0 = arith.constant 0 : index
    %c0_1 = arith.constant 0 : index
    %1 = vector.load %arg9[%c0, %c0_0, %c0_1] : memref<18x18x16xf32, #tpu.memory_space<vmem>>, vector<18x18x16xf32>
    tpu.vector_store %arg9[%c0, %c0_0, %c0_1], %0 {strides = array<i32>} : memref<18x18x16xf32, #tpu.memory_space<vmem>>, vector<18x18x16xf32>,
    %cst_2 = arith.constant 0.000000e+00 : f32
    %2 = vector.broadcast %cst_2 : f32 to vector<18x18x32xf32>
    %c0_3 = arith.constant 0 : index
    %c0_4 = arith.constant 0 : index
    %c0_5 = arith.constant 0 : index
    %3 = vector.load %arg10[%c0_3, %c0_4, %c0_5] : memref<18x18x32xf32, #tpu.memory_space<vmem>>, vector<18x18x32xf32>
    tpu.vector_store %arg10[%c0_3, %c0_4, %c0_5], %2 {strides = array<i32>} : memref<18x18x32xf32, #tpu.memory_space<vmem>>, vector<18x18x32xf32>,
    %c0_6 = arith.constant 0 : index
    %c0_7 = arith.constant 0 : index
    %c0_8 = arith.constant 0 : index
    %c0_9 = arith.constant 0 : index
    %4 = vector.load %arg1[%c0_6, %c0_7, %c0_8, %c0_9] : memref<1x16x16x16xf32, #tpu.memory_space<vmem>>, vector<1x16x16x16xf32>
    %5 = vector.shape_cast %4 : vector<1x16x16x16xf32> to vector<16x16x16xf32>
    %c1 = arith.constant 1 : index
    %c1_10 = arith.constant 1 : index
    %c0_11 = arith.constant 0 : index
    %6 = vector.load %arg9[%c1, %c1_10, %c0_11] : memref<18x18x16xf32, #tpu.memory_space<vmem>>, vector<16x16x16xf32>
    tpu.vector_store %arg9[%c1, %c1_10, %c0_11], %5 {strides = array<i32>} : memref<18x18x16xf32, #tpu.memory_space<vmem>>, vector<16x16x16xf32>,
    %c0_12 = arith.constant 0 : index
    %c0_13 = arith.constant 0 : index
    %c0_14 = arith.constant 0 : index
    %7 = vector.load %arg9[%c0_12, %c0_13, %c0_14] : memref<18x18x16xf32, #tpu.memory_space<vmem>>, vector<16x16x16xf32>
    %8 = vector.shape_cast %7 : vector<16x16x16xf32> to vector<256x16xf32>
    %c0_15 = arith.constant 0 : index
    %c1_16 = arith.constant 1 : index
    %c0_17 = arith.constant 0 : index
    %9 = vector.load %arg9[%c0_15, %c1_16, %c0_17] : memref<18x18x16xf32, #tpu.memory_space<vmem>>, vector<16x16x16xf32>
    %10 = vector.shape_cast %9 : vector<16x16x16xf32> to vector<256x16xf32>
    %c0_18 = arith.constant 0 : index
    %c2 = arith.constant 2 : index
    %c0_19 = arith.constant 0 : index
    %11 = vector.load %arg9[%c0_18, %c2, %c0_19] : memref<18x18x16xf32, #tpu.memory_space<vmem>>, vector<16x16x16xf32>
    %12 = vector.shape_cast %11 : vector<16x16x16xf32> to vector<256x16xf32>
    %c1_20 = arith.constant 1 : index
    %c0_21 = arith.constant 0 : index
    %c0_22 = arith.constant 0 : index
    %13 = vector.load %arg9[%c1_20, %c0_21, %c0_22] : memref<18x18x16xf32, #tpu.memory_space<vmem>>, vector<16x16x16xf32>
    %14 = vector.shape_cast %13 : vector<16x16x16xf32> to vector<256x16xf32>
    %c1_23 = arith.constant 1 : index
    %c1_24 = arith.constant 1 : index
    %c0_25 = arith.constant 0 : index
    %15 = vector.load %arg9[%c1_23, %c1_24, %c0_25] : memref<18x18x16xf32, #tpu.memory_space<vmem>>, vector<16x16x16xf32>
    %16 = vector.shape_cast %15 : vector<16x16x16xf32> to vector<256x16xf32>
    %c1_26 = arith.constant 1 : index
    %c2_27 = arith.constant 2 : index
    %c0_28 = arith.constant 0 : index
    %17 = vector.load %arg9[%c1_26, %c2_27, %c0_28] : memref<18x18x16xf32, #tpu.memory_space<vmem>>, vector<16x16x16xf32>
    %18 = vector.shape_cast %17 : vector<16x16x16xf32> to vector<256x16xf32>
    %c2_29 = arith.constant 2 : index
    %c0_30 = arith.constant 0 : index
    %c0_31 = arith.constant 0 : index
    %19 = vector.load %arg9[%c2_29, %c0_30, %c0_31] : memref<18x18x16xf32, #tpu.memory_space<vmem>>, vector<16x16x16xf32>
    %20 = vector.shape_cast %19 : vector<16x16x16xf32> to vector<256x16xf32>
    %c2_32 = arith.constant 2 : index
    %c1_33 = arith.constant 1 : index
    %c0_34 = arith.constant 0 : index
    %21 = vector.load %arg9[%c2_32, %c1_33, %c0_34] : memref<18x18x16xf32, #tpu.memory_space<vmem>>, vector<16x16x16xf32>
    %22 = vector.shape_cast %21 : vector<16x16x16xf32> to vector<256x16xf32>
    %c2_35 = arith.constant 2 : index
    %c2_36 = arith.constant 2 : index
    %c0_37 = arith.constant 0 : index
    %23 = vector.load %arg9[%c2_35, %c2_36, %c0_37] : memref<18x18x16xf32, #tpu.memory_space<vmem>>, vector<16x16x16xf32>
    %24 = vector.shape_cast %23 : vector<16x16x16xf32> to vector<256x16xf32>
    %25 = tpu.concatenate %8, %10, %12, %14, %16, %18, %20, %22, %24 in 1 : vector<256x16xf32>, vector<256x16xf32>, vector<256x16xf32>, vector<256x16xf32>, vector<256x16xf32>, vector<256x16xf32>, vector<256x16xf32>, vector<256x16xf32>, vector<256x16xf32> -> vector<256x144xf32>
    %26 = arith.truncf %25 : vector<256x144xf32> to vector<256x144xbf16>
    %c0_38 = arith.constant 0 : index
    %c0_39 = arith.constant 0 : index
    %27 = vector.load %arg2[%c0_38, %c0_39] : memref<144x32xbf16, #tpu.memory_space<vmem>>, vector<144x32xbf16>
    %cst_40 = arith.constant dense<0.000000e+00> : vector<256x32xf32>
    %28 = tpu.matmul %26, %27, %cst_40 {dimension_numbers = #tpu.dot_dimension_numbers<[1], [0], [0], [1], [0, 0, 1, 1], [], []>} : vector<256x144xbf16>, vector<144x32xbf16>, vector<256x32xf32> -> vector<256x32xf32>
    %c0_41 = arith.constant 0 : index
    %c0_42 = arith.constant 0 : index
    %29 = vector.load %arg3[%c0_41, %c0_42] : memref<1x32xf32, #tpu.memory_space<vmem>>, vector<1x32xf32>
    %30 = vector.broadcast %29 : vector<1x32xf32> to vector<256x32xf32>
    %31 = arith.addf %28, %30 : vector<256x32xf32>
    %cst_43 = arith.constant 0.000000e+00 : f32
    %32 = vector.broadcast %cst_43 : f32 to vector<256x32xf32>
    %33 = arith.maximumf %31, %32 : vector<256x32xf32>
    %34 = vector.shape_cast %33 : vector<256x32xf32> to vector<16x16x32xf32>
    %c1_44 = arith.constant 1 : index
    %c1_45 = arith.constant 1 : index
    %c0_46 = arith.constant 0 : index
    %35 = vector.load %arg10[%c1_44, %c1_45, %c0_46] : memref<18x18x32xf32, #tpu.memory_space<vmem>>, vector<16x16x32xf32>
    tpu.vector_store %arg10[%c1_44, %c1_45, %c0_46], %34 {strides = array<i32>} : memref<18x18x32xf32, #tpu.memory_space<vmem>>, vector<16x16x32xf32>,
    %c0_47 = arith.constant 0 : index
    %c0_48 = arith.constant 0 : index
    %c0_49 = arith.constant 0 : index
    %36 = vector.load %arg10[%c0_47, %c0_48, %c0_49] : memref<18x18x32xf32, #tpu.memory_space<vmem>>, vector<16x16x32xf32>
    %37 = vector.shape_cast %36 : vector<16x16x32xf32> to vector<256x32xf32>
    %c0_50 = arith.constant 0 : index
    %c1_51 = arith.constant 1 : index
    %c0_52 = arith.constant 0 : index
    %38 = vector.load %arg10[%c0_50, %c1_51, %c0_52] : memref<18x18x32xf32, #tpu.memory_space<vmem>>, vector<16x16x32xf32>
    %39 = vector.shape_cast %38 : vector<16x16x32xf32> to vector<256x32xf32>
    %c0_53 = arith.constant 0 : index
    %c2_54 = arith.constant 2 : index
    %c0_55 = arith.constant 0 : index
    %40 = vector.load %arg10[%c0_53, %c2_54, %c0_55] : memref<18x18x32xf32, #tpu.memory_space<vmem>>, vector<16x16x32xf32>
    %41 = vector.shape_cast %40 : vector<16x16x32xf32> to vector<256x32xf32>
    %c1_56 = arith.constant 1 : index
    %c0_57 = arith.constant 0 : index
    %c0_58 = arith.constant 0 : index
    %42 = vector.load %arg10[%c1_56, %c0_57, %c0_58] : memref<18x18x32xf32, #tpu.memory_space<vmem>>, vector<16x16x32xf32>
    %43 = vector.shape_cast %42 : vector<16x16x32xf32> to vector<256x32xf32>
    %c1_59 = arith.constant 1 : index
    %c1_60 = arith.constant 1 : index
    %c0_61 = arith.constant 0 : index
    %44 = vector.load %arg10[%c1_59, %c1_60, %c0_61] : memref<18x18x32xf32, #tpu.memory_space<vmem>>, vector<16x16x32xf32>
    %45 = vector.shape_cast %44 : vector<16x16x32xf32> to vector<256x32xf32>
    %c1_62 = arith.constant 1 : index
    %c2_63 = arith.constant 2 : index
    %c0_64 = arith.constant 0 : index
    %46 = vector.load %arg10[%c1_62, %c2_63, %c0_64] : memref<18x18x32xf32, #tpu.memory_space<vmem>>, vector<16x16x32xf32>
    %47 = vector.shape_cast %46 : vector<16x16x32xf32> to vector<256x32xf32>
    %c2_65 = arith.constant 2 : index
    %c0_66 = arith.constant 0 : index
    %c0_67 = arith.constant 0 : index
    %48 = vector.load %arg10[%c2_65, %c0_66, %c0_67] : memref<18x18x32xf32, #tpu.memory_space<vmem>>, vector<16x16x32xf32>
    %49 = vector.shape_cast %48 : vector<16x16x32xf32> to vector<256x32xf32>
    %c2_68 = arith.constant 2 : index
    %c1_69 = arith.constant 1 : index
    %c0_70 = arith.constant 0 : index
    %50 = vector.load %arg10[%c2_68, %c1_69, %c0_70] : memref<18x18x32xf32, #tpu.memory_space<vmem>>, vector<16x16x32xf32>
    %51 = vector.shape_cast %50 : vector<16x16x32xf32> to vector<256x32xf32>
    %c2_71 = arith.constant 2 : index
    %c2_72 = arith.constant 2 : index
    %c0_73 = arith.constant 0 : index
    %52 = vector.load %arg10[%c2_71, %c2_72, %c0_73] : memref<18x18x32xf32, #tpu.memory_space<vmem>>, vector<16x16x32xf32>
    %53 = vector.shape_cast %52 : vector<16x16x32xf32> to vector<256x32xf32>
    %54 = tpu.concatenate %37, %39, %41, %43, %45, %47, %49, %51, %53 in 1 : vector<256x32xf32>, vector<256x32xf32>, vector<256x32xf32>, vector<256x32xf32>, vector<256x32xf32>, vector<256x32xf32>, vector<256x32xf32>, vector<256x32xf32>, vector<256x32xf32> -> vector<256x288xf32>
    %55 = arith.truncf %54 : vector<256x288xf32> to vector<256x288xbf16>
    %c0_74 = arith.constant 0 : index
    %c0_75 = arith.constant 0 : index
    %56 = vector.load %arg4[%c0_74, %c0_75] : memref<288x32xbf16, #tpu.memory_space<vmem>>, vector<288x32xbf16>
    %cst_76 = arith.constant dense<0.000000e+00> : vector<256x32xf32>
    %57 = tpu.matmul %55, %56, %cst_76 {dimension_numbers = #tpu.dot_dimension_numbers<[1], [0], [0], [1], [0, 0, 1, 1], [], []>} : vector<256x288xbf16>, vector<288x32xbf16>, vector<256x32xf32> -> vector<256x32xf32>
    %c0_77 = arith.constant 0 : index
    %c0_78 = arith.constant 0 : index
    %58 = vector.load %arg5[%c0_77, %c0_78] : memref<1x32xf32, #tpu.memory_space<vmem>>, vector<1x32xf32>
    %59 = vector.broadcast %58 : vector<1x32xf32> to vector<256x32xf32>
    %60 = arith.addf %57, %59 : vector<256x32xf32>
    %cst_79 = arith.constant 0.000000e+00 : f32
    %61 = vector.broadcast %cst_79 : f32 to vector<256x32xf32>
    %62 = arith.maximumf %60, %61 : vector<256x32xf32>
    %63 = tpu.transpose %62, [1, 0] : vector<256x32xf32> -> vector<32x256xf32>
    %c0_80 = arith.constant 0 : index
    %c0_81 = arith.constant 0 : index
    %c0_82 = arith.constant 0 : index
    %64 = vector.load %arg7[%c0_80, %c0_81, %c0_82] : memref<1x32x256xf32, #tpu.memory_space<vmem>>, vector<1x32x256xf32>
    %65 = vector.shape_cast %64 : vector<1x32x256xf32> to vector<32x256xf32>
    %66 = vector.shape_cast %63 : vector<32x256xf32> to vector<1x32x256xf32>
    tpu.vector_store %arg7[%c0_80, %c0_81, %c0_82], %66 {strides = array<i32>} : memref<1x32x256xf32, #tpu.memory_space<vmem>>, vector<1x32x256xf32>,
    %c0_83 = arith.constant 0 : index
    %c0_84 = arith.constant 0 : index
    %67 = vector.load %arg6[%c0_83, %c0_84] : memref<256x64xf32, #tpu.memory_space<vmem>>, vector<256x64xf32>
    %cst_85 = arith.constant dense<0.000000e+00> : vector<32x64xf32>
    %68 = tpu.matmul %63, %67, %cst_85 {dimension_numbers = #tpu.dot_dimension_numbers<[1], [0], [0], [1], [0, 0, 1, 1], [], []>} : vector<32x256xf32>, vector<256x64xf32>, vector<32x64xf32> -> vector<32x64xf32>
    %c0_86 = arith.constant 0 : index
    %c0_87 = arith.constant 0 : index
    %c0_88 = arith.constant 0 : index
    %69 = vector.load %arg8[%c0_86, %c0_87, %c0_88] : memref<1x32x64xf32, #tpu.memory_space<vmem>>, vector<1x32x64xf32>
    %70 = vector.shape_cast %69 : vector<1x32x64xf32> to vector<32x64xf32>
    %71 = vector.shape_cast %68 : vector<32x64xf32> to vector<1x32x64xf32>
    tpu.vector_store %arg8[%c0_86, %c0_87, %c0_88], %71 {strides = array<i32>} : memref<1x32x64xf32, #tpu.memory_space<vmem>>, vector<1x32x64xf32>,
    return
  }
  func.func @transform_0(%arg0: i32) -> (i32, i32, i32, i32) {
    %c0_i32 = arith.constant 0 : i32
    %c0_i32_0 = arith.constant 0 : i32
    %c0_i32_1 = arith.constant 0 : i32
    %c0_i32_2 = arith.constant 0 : i32
    return %arg0, %c0_i32, %c0_i32_0, %c0_i32_1 : i32, i32, i32, i32
  }
  func.func @transform_1(%arg0: i32) -> (i32, i32) {
    %c0_i32 = arith.constant 0 : i32
    %c0_i32_0 = arith.constant 0 : i32
    %c0_i32_1 = arith.constant 0 : i32
    return %c0_i32, %c0_i32_0 : i32, i32
  }
  func.func @transform_2(%arg0: i32) -> (i32, i32) {
    %c0_i32 = arith.constant 0 : i32
    %c0_i32_0 = arith.constant 0 : i32
    %c0_i32_1 = arith.constant 0 : i32
    return %c0_i32, %c0_i32_0 : i32, i32
  }
  func.func @transform_3(%arg0: i32) -> (i32, i32) {
    %c0_i32 = arith.constant 0 : i32
    %c0_i32_0 = arith.constant 0 : i32
    %c0_i32_1 = arith.constant 0 : i32
    return %c0_i32, %c0_i32_0 : i32, i32
  }
  func.func @transform_4(%arg0: i32) -> (i32, i32) {
    %c0_i32 = arith.constant 0 : i32
    %c0_i32_0 = arith.constant 0 : i32
    %c0_i32_1 = arith.constant 0 : i32
    return %c0_i32, %c0_i32_0 : i32, i32
  }
  func.func @transform_5(%arg0: i32) -> (i32, i32) {
    %c0_i32 = arith.constant 0 : i32
    %c0_i32_0 = arith.constant 0 : i32
    %c0_i32_1 = arith.constant 0 : i32
    return %c0_i32, %c0_i32_0 : i32, i32
  }
  func.func @transform_6(%arg0: i32) -> (i32, i32, i32) {
    %c0_i32 = arith.constant 0 : i32
    %c0_i32_0 = arith.constant 0 : i32
    %c0_i32_1 = arith.constant 0 : i32
    return %arg0, %c0_i32, %c0_i32_0 : i32, i32, i32
  }
  func.func @transform_7(%arg0: i32) -> (i32, i32, i32) {
    %c0_i32 = arith.constant 0 : i32
    %c0_i32_0 = arith.constant 0 : i32
    %c0_i32_1 = arith.constant 0 : i32
    return %arg0, %c0_i32, %c0_i32_0 : i32, i32, i32
  }
}

</mosaic_0001>

<llo_original>
// kernel: a_call__.1
$region0: #{a_call__.1}
  #allocation0 [shape = 'u32[]', space=smem, size = 0x4, offset = 0x4, fixed_abs, tag = 'smem constant byte address 0x4 - core index']
  #allocation1 [shape = 'u32[144,128]{1,0:T(1,128)}', space=vmem, size = 0x12000, scoped, tag = 'internal scratch']
  #allocation2 [shape = 'f32[18,18,16]{2,1,0:T(8,128)}', space=vmem, size = 0x36000, scoped, tag = 'scratch operand']
  #allocation3 [shape = 'f32[18,18,32]{2,1,0:T(8,128)}', space=vmem, size = 0x36000, scoped, tag = 'scratch operand']
  %s0 = inlined_call_operand.vmem [shape: f32[2,16,16,16], index: 0, kind: input, shape index: {}]
  %s1 = inlined_call_operand.vmem [shape: bf16[144,32], index: 1, kind: input, shape index: {}]
  %s2 = inlined_call_operand.vmem [shape: f32[1,32], index: 2, kind: input, shape index: {}]
  %s3 = inlined_call_operand.vmem [shape: bf16[288,32], index: 3, kind: input, shape index: {}]
  %s4 = inlined_call_operand.vmem [shape: f32[1,32], index: 4, kind: input, shape index: {}]
  %s5 = inlined_call_operand.vmem [shape: f32[256,64], index: 5, kind: input, shape index: {}]
  %s6 = inlined_call_operand.vmem [shape: f32[2,32,256], index: 6, kind: output, shape index: {0}]
  %s7 = inlined_call_operand.vmem [shape: f32[2,32,64], index: 7, kind: output, shape index: {1}]
  %8 = xla_tuple %s6, %s7
  %s9 = sld [smem:[#allocation0]]
  $region65: #{a_call__.1} parent=0
    _
  %s11 = ssub.s32 1, %s9
  %s12 = scalar_select 0, %s11, %s9
  loop: start=0, step=1, limit=4
  $region2: #{a_call__.1} parent=0 // loop_pre_header
    _
  $region3: #{a_call__.1} parent=0 // loop_header
    %s14 = sphi 0, %s18
    %p15 = scmp.ge.s32.totalorder %s14, 4
    %s24 = sphi 0, %s26
    %s27 = sphi 0, %s24
    %s28 = sphi 0, %s27
    %s44 = sphi 0, %s28
    %s48 = sphi 0, %s48
    %s50 = sphi 0, %s48
    %s51 = sphi 0, %s50
    %s65 = sphi 0, %s51
    %s69 = sphi 0, %s69
    %s71 = sphi 0, %s69
    %s72 = sphi 0, %s71
    %s86 = sphi 0, %s72
    %s90 = sphi 0, %s90
    %s92 = sphi 0, %s90
    %s93 = sphi 0, %s92
    %s107 = sphi 0, %s93
    %s111 = sphi 0, %s111
    %s113 = sphi 0, %s111
    %s114 = sphi 0, %s113
    %s128 = sphi 0, %s114
    %s132 = sphi 0, %s132
    %s134 = sphi 0, %s132
    %s135 = sphi 0, %s134
    %s149 = sphi 0, %s135
    %s155 = sphi 0, %s157
    %s158 = sphi 0, %s155
    %s159 = sphi 0, %s158
    %s175 = sphi 0, %s159
    %s181 = sphi 0, %s183
    %s184 = sphi 0, %s181
    %s185 = sphi 0, %s184
    %s201 = sphi 0, %s185
  $region4: #{a_call__.1} parent=0 // loop_header_branch
    %17 = sbr.rel (%p15) target = $region8
  $region5: #{a_call__.1} parent=0 // loop_body
    %s19 = ssub.s32 %s14, 1
    %s20 = ssub.s32 %s14, 2
    %s21 = sadd.s32 %s14, 1
    %s22 = ssub.s32 %s14, %s21
    %p23 = scmp.eq.s32.totalorder %s22, 0
    %s25 = sadd.s32 %s24, 1
    %s26 = scalar_select %p23, %s24, %s25
    %p29 = pneg %p23
    %p30 = scmp.eq.s32.totalorder %s14, 1
    %p31 = por %p29, %p30
    %p32 = scmp.ne.s32.totalorder %s24, %s27
    %p33 = scmp.eq.s32.totalorder %s14, 0
    %p34 = por %p32, %p33
    %p35 = scmp.ne.s32.totalorder %s24, %s27
    %p36 = scmp.eq.s32.totalorder %s19, 1
    %p37 = por %p35, %p36
    %p38 = scmp.ne.s32.totalorder %s27, %s28
    %p39 = scmp.eq.s32.totalorder %s19, 0
    %p40 = por %p38, %p39
    %p41 = scmp.ne.s32.totalorder %s27, %s28
    %p42 = scmp.eq.s32.totalorder %s20, 1
    %p43 = por %p41, %p42
    %p45 = scmp.ne.s32.totalorder %s28, %s44
    %p46 = scmp.eq.s32.totalorder %s20, 0
    %p47 = por %p45, %p46
    %s49 = sadd.s32 %s48, 1
    %p52 = scmp.eq.s32.totalorder %s14, 1
    %p53 = scmp.ne.s32.totalorder %s48, %s50
    %p54 = scmp.eq.s32.totalorder %s14, 0
    %p55 = por %p53, %p54
    %p56 = scmp.ne.s32.totalorder %s48, %s50
    %p57 = scmp.eq.s32.totalorder %s19, 1
    %p58 = por %p56, %p57
    %p59 = scmp.ne.s32.totalorder %s50, %s51
    %p60 = scmp.eq.s32.totalorder %s19, 0
    %p61 = por %p59, %p60
    %p62 = scmp.ne.s32.totalorder %s50, %s51
    %p63 = scmp.eq.s32.totalorder %s20, 1
    %p64 = por %p62, %p63
    %p66 = scmp.ne.s32.totalorder %s51, %s65
    %p67 = scmp.eq.s32.totalorder %s20, 0
    %p68 = por %p66, %p67
    %s70 = sadd.s32 %s69, 1
    %p73 = scmp.eq.s32.totalorder %s14, 1
    %p74 = scmp.ne.s32.totalorder %s69, %s71
    %p75 = scmp.eq.s32.totalorder %s14, 0
    %p76 = por %p74, %p75
    %p77 = scmp.ne.s32.totalorder %s69, %s71
    %p78 = scmp.eq.s32.totalorder %s19, 1
    %p79 = por %p77, %p78
    %p80 = scmp.ne.s32.totalorder %s71, %s72
    %p81 = scmp.eq.s32.totalorder %s19, 0
    %p82 = por %p80, %p81
    %p83 = scmp.ne.s32.totalorder %s71, %s72
    %p84 = scmp.eq.s32.totalorder %s20, 1
    %p85 = por %p83, %p84
    %p87 = scmp.ne.s32.totalorder %s72, %s86
    %p88 = scmp.eq.s32.totalorder %s20, 0
    %p89 = por %p87, %p88
    %s91 = sadd.s32 %s90, 1
    %p94 = scmp.eq.s32.totalorder %s14, 1
    %p95 = scmp.ne.s32.totalorder %s90, %s92
    %p96 = scmp.eq.s32.totalorder %s14, 0
    %p97 = por %p95, %p96
    %p98 = scmp.ne.s32.totalorder %s90, %s92
    %p99 = scmp.eq.s32.totalorder %s19, 1
    %p100 = por %p98, %p99
    %p101 = scmp.ne.s32.totalorder %s92, %s93
    %p102 = scmp.eq.s32.totalorder %s19, 0
    %p103 = por %p101, %p102
    %p104 = scmp.ne.s32.totalorder %s92, %s93
    %p105 = scmp.eq.s32.totalorder %s20, 1
    %p106 = por %p104, %p105
    %p108 = scmp.ne.s32.totalorder %s93, %s107
    %p109 = scmp.eq.s32.totalorder %s20, 0
    %p110 = por %p108, %p109
    %s112 = sadd.s32 %s111, 1
    %p115 = scmp.eq.s32.totalorder %s14, 1
    %p116 = scmp.ne.s32.totalorder %s111, %s113
    %p117 = scmp.eq.s32.totalorder %s14, 0
    %p118 = por %p116, %p117
    %p119 = scmp.ne.s32.totalorder %s111, %s113
    %p120 = scmp.eq.s32.totalorder %s19, 1
    %p121 = por %p119, %p120
    %p122 = scmp.ne.s32.totalorder %s113, %s114
    %p123 = scmp.eq.s32.totalorder %s19, 0
    %p124 = por %p122, %p123
    %p125 = scmp.ne.s32.totalorder %s113, %s114
    %p126 = scmp.eq.s32.totalorder %s20, 1
    %p127 = por %p125, %p126
    %p129 = scmp.ne.s32.totalorder %s114, %s128
    %p130 = scmp.eq.s32.totalorder %s20, 0
    %p131 = por %p129, %p130
    %s133 = sadd.s32 %s132, 1
    %p136 = scmp.eq.s32.totalorder %s14, 1
    %p137 = scmp.ne.s32.totalorder %s132, %s134
    %p138 = scmp.eq.s32.totalorder %s14, 0
    %p139 = por %p137, %p138
    %p140 = scmp.ne.s32.totalorder %s132, %s134
    %p141 = scmp.eq.s32.totalorder %s19, 1
    %p142 = por %p140, %p141
    %p143 = scmp.ne.s32.totalorder %s134, %s135
    %p144 = scmp.eq.s32.totalorder %s19, 0
    %p145 = por %p143, %p144
    %p146 = scmp.ne.s32.totalorder %s134, %s135
    %p147 = scmp.eq.s32.totalorder %s20, 1
    %p148 = por %p146, %p147
    %p150 = scmp.ne.s32.totalorder %s135, %s149
    %p151 = scmp.eq.s32.totalorder %s20, 0
    %p152 = por %p150, %p151
    %s153 = ssub.s32 %s14, %s21
    %p154 = scmp.eq.s32.totalorder %s153, 0
    %s156 = sadd.s32 %s155, 1
    %s157 = scalar_select %p154, %s155, %s156
    %p160 = pneg %p154
    %p161 = scmp.eq.s32.totalorder %s14, 1
    %p162 = por %p160, %p161
    %p163 = scmp.ne.s32.totalorder %s155, %s158
    %p164 = scmp.eq.s32.totalorder %s14, 0
    %p165 = por %p163, %p164
    %p166 = scmp.ne.s32.totalorder %s155, %s158
    %p167 = scmp.eq.s32.totalorder %s19, 1
    %p168 = por %p166, %p167
    %p169 = scmp.ne.s32.totalorder %s158, %s159
    %p170 = scmp.eq.s32.totalorder %s19, 0
    %p171 = por %p169, %p170
    %p172 = scmp.ne.s32.totalorder %s158, %s159
    %p173 = scmp.eq.s32.totalorder %s20, 1
    %p174 = por %p172, %p173
    %p176 = scmp.ne.s32.totalorder %s159, %s175
    %p177 = scmp.eq.s32.totalorder %s20, 0
    %p178 = por %p176, %p177
    %s179 = ssub.s32 %s14, %s21
    %p180 = scmp.eq.s32.totalorder %s179, 0
    %s182 = sadd.s32 %s181, 1
    %s183 = scalar_select %p180, %s181, %s182
    %p186 = pneg %p180
    %p187 = scmp.eq.s32.totalorder %s14, 1
    %p188 = por %p186, %p187
    %p189 = scmp.ne.s32.totalorder %s181, %s184
    %p190 = scmp.eq.s32.totalorder %s14, 0
    %p191 = por %p189, %p190
    %p192 = scmp.ne.s32.totalorder %s181, %s184
    %p193 = scmp.eq.s32.totalorder %s19, 1
    %p194 = por %p192, %p193
    %p195 = scmp.ne.s32.totalorder %s184, %s185
    %p196 = scmp.eq.s32.totalorder %s19, 0
    %p197 = por %p195, %p196
    %p198 = scmp.ne.s32.totalorder %s184, %s185
    %p199 = scmp.eq.s32.totalorder %s20, 1
    %p200 = por %p198, %p199
    %p202 = scmp.ne.s32.totalorder %s185, %s201
    %p203 = scmp.eq.s32.totalorder %s20, 0
    %p204 = por %p202, %p203
    %p205 = scmp.le.s32.totalorder 1, %s14
    %p206 = scmp.lt.s32.totalorder %s14, 3
    %p207 = pnand %p205, %p206
    %p208 = pneg %p207
    // Predicated region
    $region9: #{a_call__.1} parent=5 // pred_check
      _
    $region10: #{a_call__.1} parent=5 // pred_check_branch
      %210 = sbr.rel (%p207) target = $region12
    $region11: #{a_call__.1} parent=5 // pred_region
      %s211 = ssub.s32 %s14, 1
      // Predicated region
      $region13: #{a_call__.1} parent=11 // pred_check
        %p212 = pneg %p61
      $region14: #{a_call__.1} parent=11 // pred_check_branch
        %214 = sbr.rel (%p212) target = $region16
      $region15: #{a_call__.1} parent=11 // pred_region
        _
      $region16: #{a_call__.1} parent=11 // pred_fallthru
        _
      // Predicated region
      $region17: #{a_call__.1} parent=11 // pred_check
        %p215 = pneg %p82
      $region18: #{a_call__.1} parent=11 // pred_check_branch
        %217 = sbr.rel (%p215) target = $region20
      $region19: #{a_call__.1} parent=11 // pred_region
        _
      $region20: #{a_call__.1} parent=11 // pred_fallthru
        _
      // Predicated region
      $region21: #{a_call__.1} parent=11 // pred_check
        %p218 = pneg %p103
      $region22: #{a_call__.1} parent=11 // pred_check_branch
        %220 = sbr.rel (%p218) target = $region24
      $region23: #{a_call__.1} parent=11 // pred_region
        _
      $region24: #{a_call__.1} parent=11 // pred_fallthru
        _
      // Predicated region
      $region25: #{a_call__.1} parent=11 // pred_check
        %p221 = pneg %p124
      $region26: #{a_call__.1} parent=11 // pred_check_branch
        %223 = sbr.rel (%p221) target = $region28
      $region27: #{a_call__.1} parent=11 // pred_region
        _
      $region28: #{a_call__.1} parent=11 // pred_fallthru
        _
      // Predicated region
      $region29: #{a_call__.1} parent=11 // pred_check
        %p224 = pneg %p145
      $region30: #{a_call__.1} parent=11 // pred_check_branch
        %226 = sbr.rel (%p224) target = $region32
      $region31: #{a_call__.1} parent=11 // pred_region
        _
      $region32: #{a_call__.1} parent=11 // pred_fallthru
        _
    $region12: #{a_call__.1} parent=5 // pred_fallthru
      _
    %p227 = scmp.lt.s32.totalorder %s14, 2
    // Predicated region
    $region33: #{a_call__.1} parent=5 // pred_check
      %p228 = pneg %p227
    $region34: #{a_call__.1} parent=5 // pred_check_branch
      %230 = sbr.rel (%p228) target = $region36
    $region35: #{a_call__.1} parent=5 // pred_region
      // Predicated region
      $region37: #{a_call__.1} parent=35 // pred_check
        %p231 = pneg %p34
      $region38: #{a_call__.1} parent=35 // pred_check_branch
        %233 = sbr.rel (%p231) target = $region40
      $region39: #{a_call__.1} parent=35 // pred_region
        %p234 = scmp.lt.s32.totalorder %s14, 1
        %s235 = scalar_select %p234, %s14, 1
        %s236 = smul.addr %s235, 32
        %s237 = smul.addr %s236, 8
        %s238 = scalar_lea.vmem %s0, %s237
      $region40: #{a_call__.1} parent=35 // pred_fallthru
        _
    $region36: #{a_call__.1} parent=5 // pred_fallthru
      _
    %p239 = scmp.le.s32.totalorder 1, %s14
    %p240 = scmp.lt.s32.totalorder %s14, 3
    %p241 = pnand %p239, %p240
    %p242 = pneg %p241
    // Predicated region
    $region41: #{a_call__.1} parent=5 // pred_check
      _
    $region42: #{a_call__.1} parent=5 // pred_check_branch
      %244 = sbr.rel (%p241) target = $region44
    $region43: #{a_call__.1} parent=5 // pred_region
      %s245 = ssub.s32 %s14, 1
      %p246 = scmp.lt.s32.totalorder %s19, 1
      %s247 = scalar_select %p246, %s19, 1
      %s248 = smul.addr %s247, 32
      %s249 = smul.addr %s248, 8
      %s250 = scalar_lea.vmem %s0, %s249
      %p251 = pneg %p40
      %p252 = pneg %p37
      %p253 = pneg %p61
      %p254 = pneg %p58
      %p255 = pneg %p82
      %p256 = pneg %p79
      %p257 = pneg %p103
      %p258 = pneg %p100
      %p259 = pneg %p124
      %p260 = pneg %p121
      %p261 = pneg %p145
      %p262 = pneg %p142
      %p263 = pneg %p171
      %p264 = pneg %p168
      %p265 = scmp.lt.s32.totalorder %s19, 1
      %s266 = scalar_select %p265, %s19, 1
      %s267 = smul.addr %s266, 8
      %s268 = smul.addr %s267, 8
      %s269 = scalar_lea.vmem %s6, %s268
      %p270 = pneg %p197
      %p271 = pneg %p194
      %p272 = scmp.lt.s32.totalorder %s19, 1
      %s273 = scalar_select %p272, %s19, 1
      %s274 = smul.addr %s273, 4
      %s275 = smul.addr %s274, 8
      %s276 = scalar_lea.vmem %s7, %s275
      %p277 = scmp.lt.s32.totalorder %s19, 1
      %s278 = scalar_select %p277, %s19, 1
      %s279 = smul.addr %s278, 32
      %s280 = smul.addr %s279, 8
      %s281 = scalar_lea.vmem %s0, %s280
      %p282 = scmp.lt.s32.totalorder %s19, 1
      %s283 = scalar_select %p282, %s19, 1
      %s284 = smul.addr %s283, 8
      %s285 = smul.addr %s284, 8
      %s286 = scalar_lea.vmem %s6, %s285
      %p287 = scmp.lt.s32.totalorder %s19, 1
      %s288 = scalar_select %p287, %s19, 1
      %s289 = smul.addr %s288, 4
      %s290 = smul.addr %s289, 8
      %s291 = scalar_lea.vmem %s7, %s290
      %vm293 = vcmask 130048
      %294 = vst.msk [vmem:[#allocation2] sm:$0xff] %vm293, 0.0
      %295 = vst.msk [vmem:[#allocation2 + $0x8] sm:$0xff] %vm293, 0.0
      %vm296 = vcmask 123904
      %297 = vst.msk [vmem:[#allocation2 + $0x10] sm:$0x3] %vm296, 0.0
      %298 = vst.msk [vmem:[#allocation2 + $0x18] sm:$0xff] %vm293, 0.0
      %299 = vst.msk [vmem:[#allocation2 + $0x20] sm:$0xff] %vm293, 0.0
      %300 = vst.msk [vmem:[#allocation2 + $0x28] sm:$0x3] %vm296, 0.0
      %301 = vst.msk [vmem:[#allocation2 + $0x30] sm:$0xff] %vm293, 0.0
      %302 = vst.msk [vmem:[#allocation2 + $0x38] sm:$0xff] %vm293, 0.0
      %303 = vst.msk [vmem:[#allocation2 + $0x40] sm:$0x3] %vm296, 0.0
      %304 = vst.msk [vmem:[#allocation2 + $0x48] sm:$0xff] %vm293, 0.0
      %305 = vst.msk [vmem:[#allocation2 + $0x50] sm:$0xff] %vm293, 0.0
      %306 = vst.msk [vmem:[#allocation2 + $0x58] sm:$0x3] %vm296, 0.0
      %307 = vst.msk [vmem:[#allocation2 + $0x60] sm:$0xff] %vm293, 0.0
      %308 = vst.msk [vmem:[#allocation2 + $0x68] sm:$0xff] %vm293, 0.0
      %309 = vst.msk [vmem:[#allocation2 + $0x70] sm:$0x3] %vm296, 0.0
      %310 = vst.msk [vmem:[#allocation2 + $0x78] sm:$0xff] %vm293, 0.0
      %311 = vst.msk [vmem:[#allocation2 + $0x80] sm:$0xff] %vm293, 0.0
      %312 = vst.msk [vmem:[#allocation2 + $0x88] sm:$0x3] %vm296, 0.0
      %313 = vst.msk [vmem:[#allocation2 + $0x90] sm:$0xff] %vm293, 0.0
      %314 = vst.msk [vmem:[#allocation2 + $0x98] sm:$0xff] %vm293, 0.0
      %315 = vst.msk [vmem:[#allocation2 + $0xa0] sm:$0x3] %vm296, 0.0
      %316 = vst.msk [vmem:[#allocation2 + $0xa8] sm:$0xff] %vm293, 0.0
      %317 = vst.msk [vmem:[#allocation2 + $0xb0] sm:$0xff] %vm293, 0.0
      %318 = vst.msk [vmem:[#allocation2 + $0xb8] sm:$0x3] %vm296, 0.0
      %319 = vst.msk [vmem:[#allocation2 + $0xc0] sm:$0xff] %vm293, 0.0
      %320 = vst.msk [vmem:[#allocation2 + $0xc8] sm:$0xff] %vm293, 0.0
      %321 = vst.msk [vmem:[#allocation2 + $0xd0] sm:$0x3] %vm296, 0.0
      %322 = vst.msk [vmem:[#allocation2 + $0xd8] sm:$0xff] %vm293, 0.0
      %323 = vst.msk [vmem:[#allocation2 + $0xe0] sm:$0xff] %vm293, 0.0
      %324 = vst.msk [vmem:[#allocation2 + $0xe8] sm:$0x3] %vm296, 0.0
      %325 = vst.msk [vmem:[#allocation2 + $0xf0] sm:$0xff] %vm293, 0.0
      %326 = vst.msk [vmem:[#allocation2 + $0xf8] sm:$0xff] %vm293, 0.0
      %327 = vst.msk [vmem:[#allocation2 + $0x100] sm:$0x3] %vm296, 0.0
      %328 = vst.msk [vmem:[#allocation2 + $0x108] sm:$0xff] %vm293, 0.0
      %329 = vst.msk [vmem:[#allocation2 + $0x110] sm:$0xff] %vm293, 0.0
      %330 = vst.msk [vmem:[#allocation2 + $0x118] sm:$0x3] %vm296, 0.0
      %331 = vst.msk [vmem:[#allocation2 + $0x120] sm:$0xff] %vm293, 0.0
      %332 = vst.msk [vmem:[#allocation2 + $0x128] sm:$0xff] %vm293, 0.0
      %333 = vst.msk [vmem:[#allocation2 + $0x130] sm:$0x3] %vm296, 0.0
      %334 = vst.msk [vmem:[#allocation2 + $0x138] sm:$0xff] %vm293, 0.0
      %335 = vst.msk [vmem:[#allocation2 + $0x140] sm:$0xff] %vm293, 0.0
      %336 = vst.msk [vmem:[#allocation2 + $0x148] sm:$0x3] %vm296, 0.0
      %337 = vst.msk [vmem:[#allocation2 + $0x150] sm:$0xff] %vm293, 0.0
      %338 = vst.msk [vmem:[#allocation2 + $0x158] sm:$0xff] %vm293, 0.0
      %339 = vst.msk [vmem:[#allocation2 + $0x160] sm:$0x3] %vm296, 0.0
      %340 = vst.msk [vmem:[#allocation2 + $0x168] sm:$0xff] %vm293, 0.0
      %341 = vst.msk [vmem:[#allocation2 + $0x170] sm:$0xff] %vm293, 0.0
      %342 = vst.msk [vmem:[#allocation2 + $0x178] sm:$0x3] %vm296, 0.0
      %343 = vst.msk [vmem:[#allocation2 + $0x180] sm:$0xff] %vm293, 0.0
      %344 = vst.msk [vmem:[#allocation2 + $0x188] sm:$0xff] %vm293, 0.0
      %345 = vst.msk [vmem:[#allocation2 + $0x190] sm:$0x3] %vm296, 0.0
      %346 = vst.msk [vmem:[#allocation2 + $0x198] sm:$0xff] %vm293, 0.0
      %347 = vst.msk [vmem:[#allocation2 + $0x1a0] sm:$0xff] %vm293, 0.0
      %348 = vst.msk [vmem:[#allocation2 + $0x1a8] sm:$0x3] %vm296, 0.0
      %vm349 = vcmask 261120
      %350 = vst.msk [vmem:[#allocation3] sm:$0xff] %vm349, 0.0
      %351 = vst.msk [vmem:[#allocation3 + $0x8] sm:$0xff] %vm349, 0.0
      %vm352 = vcmask 254976
      %353 = vst.msk [vmem:[#allocation3 + $0x10] sm:$0x3] %vm352, 0.0
      %354 = vst.msk [vmem:[#allocation3 + $0x18] sm:$0xff] %vm349, 0.0
      %355 = vst.msk [vmem:[#allocation3 + $0x20] sm:$0xff] %vm349, 0.0
      %356 = vst.msk [vmem:[#allocation3 + $0x28] sm:$0x3] %vm352, 0.0
      %357 = vst.msk [vmem:[#allocation3 + $0x30] sm:$0xff] %vm349, 0.0
      %358 = vst.msk [vmem:[#allocation3 + $0x38] sm:$0xff] %vm349, 0.0
      %359 = vst.msk [vmem:[#allocation3 + $0x40] sm:$0x3] %vm352, 0.0
      %360 = vst.msk [vmem:[#allocation3 + $0x48] sm:$0xff] %vm349, 0.0
      %361 = vst.msk [vmem:[#allocation3 + $0x50] sm:$0xff] %vm349, 0.0
      %362 = vst.msk [vmem:[#allocation3 + $0x58] sm:$0x3] %vm352, 0.0
      %363 = vst.msk [vmem:[#allocation3 + $0x60] sm:$0xff] %vm349, 0.0
      %364 = vst.msk [vmem:[#allocation3 + $0x68] sm:$0xff] %vm349, 0.0
      %365 = vst.msk [vmem:[#allocation3 + $0x70] sm:$0x3] %vm352, 0.0
      %366 = vst.msk [vmem:[#allocation3 + $0x78] sm:$0xff] %vm349, 0.0
      %367 = vst.msk [vmem:[#allocation3 + $0x80] sm:$0xff] %vm349, 0.0
      %368 = vst.msk [vmem:[#allocation3 + $0x88] sm:$0x3] %vm352, 0.0
      %369 = vst.msk [vmem:[#allocation3 + $0x90] sm:$0xff] %vm349, 0.0
      %370 = vst.msk [vmem:[#allocation3 + $0x98] sm:$0xff] %vm349, 0.0
      %371 = vst.msk [vmem:[#allocation3 + $0xa0] sm:$0x3] %vm352, 0.0
      %372 = vst.msk [vmem:[#allocation3 + $0xa8] sm:$0xff] %vm349, 0.0
      %373 = vst.msk [vmem:[#allocation3 + $0xb0] sm:$0xff] %vm349, 0.0
      %374 = vst.msk [vmem:[#allocation3 + $0xb8] sm:$0x3] %vm352, 0.0
      %375 = vst.msk [vmem:[#allocation3 + $0xc0] sm:$0xff] %vm349, 0.0
      %376 = vst.msk [vmem:[#allocation3 + $0xc8] sm:$0xff] %vm349, 0.0
      %377 = vst.msk [vmem:[#allocation3 + $0xd0] sm:$0x3] %vm352, 0.0
      %378 = vst.msk [vmem:[#allocation3 + $0xd8] sm:$0xff] %vm349, 0.0
      %379 = vst.msk [vmem:[#allocation3 + $0xe0] sm:$0xff] %vm349, 0.0
      %380 = vst.msk [vmem:[#allocation3 + $0xe8] sm:$0x3] %vm352, 0.0
      %381 = vst.msk [vmem:[#allocation3 + $0xf0] sm:$0xff] %vm349, 0.0
      %382 = vst.msk [vmem:[#allocation3 + $0xf8] sm:$0xff] %vm349, 0.0
      %383 = vst.msk [vmem:[#allocation3 + $0x100] sm:$0x3] %vm352, 0.0
      %384 = vst.msk [vmem:[#allocation3 + $0x108] sm:$0xff] %vm349, 0.0
      %385 = vst.msk [vmem:[#allocation3 + $0x110] sm:$0xff] %vm349, 0.0
      %386 = vst.msk [vmem:[#allocation3 + $0x118] sm:$0x3] %vm352, 0.0
      %387 = vst.msk [vmem:[#allocation3 + $0x120] sm:$0xff] %vm349, 0.0
      %388 = vst.msk [vmem:[#allocation3 + $0x128] sm:$0xff] %vm349, 0.0
      %389 = vst.msk [vmem:[#allocation3 + $0x130] sm:$0x3] %vm352, 0.0
      %390 = vst.msk [vmem:[#allocation3 + $0x138] sm:$0xff] %vm349, 0.0
      %391 = vst.msk [vmem:[#allocation3 + $0x140] sm:$0xff] %vm349, 0.0
      %392 = vst.msk [vmem:[#allocation3 + $0x148] sm:$0x3] %vm352, 0.0
      %393 = vst.msk [vmem:[#allocation3 + $0x150] sm:$0xff] %vm349, 0.0
      %394 = vst.msk [vmem:[#allocation3 + $0x158] sm:$0xff] %vm349, 0.0
      %395 = vst.msk [vmem:[#allocation3 + $0x160] sm:$0x3] %vm352, 0.0
      %396 = vst.msk [vmem:[#allocation3 + $0x168] sm:$0xff] %vm349, 0.0
      %397 = vst.msk [vmem:[#allocation3 + $0x170] sm:$0xff] %vm349, 0.0
      %398 = vst.msk [vmem:[#allocation3 + $0x178] sm:$0x3] %vm352, 0.0
      %399 = vst.msk [vmem:[#allocation3 + $0x180] sm:$0xff] %vm349, 0.0
      %400 = vst.msk [vmem:[#allocation3 + $0x188] sm:$0xff] %vm349, 0.0
      %401 = vst.msk [vmem:[#allocation3 + $0x190] sm:$0x3] %vm352, 0.0
      %402 = vst.msk [vmem:[#allocation3 + $0x198] sm:$0xff] %vm349, 0.0
      %403 = vst.msk [vmem:[#allocation3 + $0x1a0] sm:$0xff] %vm349, 0.0
      %404 = vst.msk [vmem:[#allocation3 + $0x1a8] sm:$0x3] %vm352, 0.0
      %v405 = vld [vmem:[%s281] sm:$0xff]
      %v406 = vld [vmem:[%s281 + $0x8] sm:$0xff]
      %v407 = vld [vmem:[%s281 + $0x10] sm:$0xff]
      %v408 = vld [vmem:[%s281 + $0x18] sm:$0xff]
      %v409 = vld [vmem:[%s281 + $0x20] sm:$0xff]
      %v410 = vld [vmem:[%s281 + $0x28] sm:$0xff]
      %v411 = vld [vmem:[%s281 + $0x30] sm:$0xff]
      %v412 = vld [vmem:[%s281 + $0x38] sm:$0xff]
      %v413 = vld [vmem:[%s281 + $0x40] sm:$0xff]
      %v414 = vld [vmem:[%s281 + $0x48] sm:$0xff]
      %v415 = vld [vmem:[%s281 + $0x50] sm:$0xff]
      %v416 = vld [vmem:[%s281 + $0x58] sm:$0xff]
      %v417 = vld [vmem:[%s281 + $0x60] sm:$0xff]
      %v418 = vld [vmem:[%s281 + $0x68] sm:$0xff]
      %v419 = vld [vmem:[%s281 + $0x70] sm:$0xff]
      %v420 = vld [vmem:[%s281 + $0x78] sm:$0xff]
      %v421 = vld [vmem:[%s281 + $0x80] sm:$0xff]
      %v422 = vld [vmem:[%s281 + $0x88] sm:$0xff]
      %v423 = vld [vmem:[%s281 + $0x90] sm:$0xff]
      %v424 = vld [vmem:[%s281 + $0x98] sm:$0xff]
      %v425 = vld [vmem:[%s281 + $0xa0] sm:$0xff]
      %v426 = vld [vmem:[%s281 + $0xa8] sm:$0xff]
      %v427 = vld [vmem:[%s281 + $0xb0] sm:$0xff]
      %v428 = vld [vmem:[%s281 + $0xb8] sm:$0xff]
      %v429 = vld [vmem:[%s281 + $0xc0] sm:$0xff]
      %v430 = vld [vmem:[%s281 + $0xc8] sm:$0xff]
      %v431 = vld [vmem:[%s281 + $0xd0] sm:$0xff]
      %v432 = vld [vmem:[%s281 + $0xd8] sm:$0xff]
      %v433 = vld [vmem:[%s281 + $0xe0] sm:$0xff]
      %v434 = vld [vmem:[%s281 + $0xe8] sm:$0xff]
      %v435 = vld [vmem:[%s281 + $0xf0] sm:$0xff]
      %v436 = vld [vmem:[%s281 + $0xf8] sm:$0xff]
      %s437 = scalar_lea.vmem [#allocation2], 24
      %438 = vst.msk [vmem:[%s437 + $0x1] sm:$0xff] %vm293, %v405
      %439 = vst.msk [vmem:[%s437 + $0x9] sm:$0xff] %vm293, %v406
      %440 = vst.msk [vmem:[%s437 + $0x19] sm:$0xff] %vm293, %v407
      %441 = vst.msk [vmem:[%s437 + $0x21] sm:$0xff] %vm293, %v408
      %442 = vst.msk [vmem:[%s437 + $0x31] sm:$0xff] %vm293, %v409
      %443 = vst.msk [vmem:[%s437 + $0x39] sm:$0xff] %vm293, %v410
      %444 = vst.msk [vmem:[%s437 + $0x49] sm:$0xff] %vm293, %v411
      %445 = vst.msk [vmem:[%s437 + $0x51] sm:$0xff] %vm293, %v412
      %446 = vst.msk [vmem:[%s437 + $0x61] sm:$0xff] %vm293, %v413
      %447 = vst.msk [vmem:[%s437 + $0x69] sm:$0xff] %vm293, %v414
      %448 = vst.msk [vmem:[%s437 + $0x79] sm:$0xff] %vm293, %v415
      %449 = vst.msk [vmem:[%s437 + $0x81] sm:$0xff] %vm293, %v416
      %450 = vst.msk [vmem:[%s437 + $0x91] sm:$0xff] %vm293, %v417
      %451 = vst.msk [vmem:[%s437 + $0x99] sm:$0xff] %vm293, %v418
      %452 = vst.msk [vmem:[%s437 + $0xa9] sm:$0xff] %vm293, %v419
      %453 = vst.msk [vmem:[%s437 + $0xb1] sm:$0xff] %vm293, %v420
      %454 = vst.msk [vmem:[%s437 + $0xc1] sm:$0xff] %vm293, %v421
      %455 = vst.msk [vmem:[%s437 + $0xc9] sm:$0xff] %vm293, %v422
      %456 = vst.msk [vmem:[%s437 + $0xd9] sm:$0xff] %vm293, %v423
      %457 = vst.msk [vmem:[%s437 + $0xe1] sm:$0xff] %vm293, %v424
      %458 = vst.msk [vmem:[%s437 + $0xf1] sm:$0xff] %vm293, %v425
      %459 = vst.msk [vmem:[%s437 + $0xf9] sm:$0xff] %vm293, %v426
      %460 = vst.msk [vmem:[%s437 + $0x109] sm:$0xff] %vm293, %v427
      %461 = vst.msk [vmem:[%s437 + $0x111] sm:$0xff] %vm293, %v428
      %462 = vst.msk [vmem:[%s437 + $0x121] sm:$0xff] %vm293, %v429
      %463 = vst.msk [vmem:[%s437 + $0x129] sm:$0xff] %vm293, %v430
      %464 = vst.msk [vmem:[%s437 + $0x139] sm:$0xff] %vm293, %v431
      %465 = vst.msk [vmem:[%s437 + $0x141] sm:$0xff] %vm293, %v432
      %466 = vst.msk [vmem:[%s437 + $0x151] sm:$0xff] %vm293, %v433
      %467 = vst.msk [vmem:[%s437 + $0x159] sm:$0xff] %vm293, %v434
      %468 = vst.msk [vmem:[%s437 + $0x169] sm:$0xff] %vm293, %v435
      %469 = vst.msk [vmem:[%s437 + $0x171] sm:$0xff] %vm293, %v436
      %v470 = vld [vmem:[#allocation2] sm:$0xff]
      %v471 = vld [vmem:[#allocation2 + $0x8] sm:$0xff]
      %v472 = vld [vmem:[#allocation2 + $0x18] sm:$0xff]
      %v473 = vld [vmem:[#allocation2 + $0x20] sm:$0xff]
      %v474 = vld [vmem:[#allocation2 + $0x30] sm:$0xff]
      %v475 = vld [vmem:[#allocation2 + $0x38] sm:$0xff]
      %v476 = vld [vmem:[#allocation2 + $0x48] sm:$0xff]
      %v477 = vld [vmem:[#allocation2 + $0x50] sm:$0xff]
      %v478 = vld [vmem:[#allocation2 + $0x60] sm:$0xff]
      %v479 = vld [vmem:[#allocation2 + $0x68] sm:$0xff]
      %v480 = vld [vmem:[#allocation2 + $0x78] sm:$0xff]
      %v481 = vld [vmem:[#allocation2 + $0x80] sm:$0xff]
      %v482 = vld [vmem:[#allocation2 + $0x90] sm:$0xff]
      %v483 = vld [vmem:[#allocation2 + $0x98] sm:$0xff]
      %v484 = vld [vmem:[#allocation2 + $0xa8] sm:$0xff]
      %v485 = vld [vmem:[#allocation2 + $0xb0] sm:$0xff]
      %v486 = vld [vmem:[#allocation2 + $0xc0] sm:$0xff]
      %v487 = vld [vmem:[#allocation2 + $0xc8] sm:$0xff]
      %v488 = vld [vmem:[#allocation2 + $0xd8] sm:$0xff]
      %v489 = vld [vmem:[#allocation2 + $0xe0] sm:$0xff]
      %v490 = vld [vmem:[#allocation2 + $0xf0] sm:$0xff]
      %v491 = vld [vmem:[#allocation2 + $0xf8] sm:$0xff]
      %v492 = vld [vmem:[#allocation2 + $0x108] sm:$0xff]
      %v493 = vld [vmem:[#allocation2 + $0x110] sm:$0xff]
      %v494 = vld [vmem:[#allocation2 + $0x120] sm:$0xff]
      %v495 = vld [vmem:[#allocation2 + $0x128] sm:$0xff]
      %v496 = vld [vmem:[#allocation2 + $0x138] sm:$0xff]
      %v497 = vld [vmem:[#allocation2 + $0x140] sm:$0xff]
      %v498 = vld [vmem:[#allocation2 + $0x150] sm:$0xff]
      %v499 = vld [vmem:[#allocation2 + $0x158] sm:$0xff]
      %v500 = vld [vmem:[#allocation2 + $0x168] sm:$0xff]
      %v501 = vld [vmem:[#allocation2 + $0x170] sm:$0xff]
      %v502 = vld [vmem:[#allocation2 + $0x1] sm:$0xff]
      %v503 = vld [vmem:[#allocation2 + $0x9] sm:$0xff]
      %v504 = vld [vmem:[#allocation2 + $0x19] sm:$0xff]
      %v505 = vld [vmem:[#allocation2 + $0x21] sm:$0xff]
      %v506 = vld [vmem:[#allocation2 + $0x31] sm:$0xff]
      %v507 = vld [vmem:[#allocation2 + $0x39] sm:$0xff]
      %v508 = vld [vmem:[#allocation2 + $0x49] sm:$0xff]
      %v509 = vld [vmem:[#allocation2 + $0x51] sm:$0xff]
      %v510 = vld [vmem:[#allocation2 + $0x61] sm:$0xff]
      %v511 = vld [vmem:[#allocation2 + $0x69] sm:$0xff]
      %v512 = vld [vmem:[#allocation2 + $0x79] sm:$0xff]
      %v513 = vld [vmem:[#allocation2 + $0x81] sm:$0xff]
      %v514 = vld [vmem:[#allocation2 + $0x91] sm:$0xff]
      %v515 = vld [vmem:[#allocation2 + $0x99] sm:$0xff]
      %v516 = vld [vmem:[#allocation2 + $0xa9] sm:$0xff]
      %v517 = vld [vmem:[#allocation2 + $0xb1] sm:$0xff]
      %v518 = vld [vmem:[#allocation2 + $0xc1] sm:$0xff]
      %v519 = vld [vmem:[#allocation2 + $0xc9] sm:$0xff]
      %v520 = vld [vmem:[#allocation2 + $0xd9] sm:$0xff]
      %v521 = vld [vmem:[#allocation2 + $0xe1] sm:$0xff]
      %v522 = vld [vmem:[#allocation2 + $0xf1] sm:$0xff]
      %v523 = vld [vmem:[#allocation2 + $0xf9] sm:$0xff]
      %v524 = vld [vmem:[#allocation2 + $0x109] sm:$0xff]
      %v525 = vld [vmem:[#allocation2 + $0x111] sm:$0xff]
      %v526 = vld [vmem:[#allocation2 + $0x121] sm:$0xff]
      %v527 = vld [vmem:[#allocation2 + $0x129] sm:$0xff]
      %v528 = vld [vmem:[#allocation2 + $0x139] sm:$0xff]
      %v529 = vld [vmem:[#allocation2 + $0x141] sm:$0xff]
      %v530 = vld [vmem:[#allocation2 + $0x151] sm:$0xff]
      %v531 = vld [vmem:[#allocation2 + $0x159] sm:$0xff]
      %v532 = vld [vmem:[#allocation2 + $0x169] sm:$0xff]
      %v533 = vld [vmem:[#allocation2 + $0x171] sm:$0xff]
      %v534 = vld [vmem:[#allocation2 + $0x2] sm:$0xff]
      %v535 = vld [vmem:[#allocation2 + $0xa] sm:$0xff]
      %v536 = vld [vmem:[#allocation2 + $0x1a] sm:$0xff]
      %v537 = vld [vmem:[#allocation2 + $0x22] sm:$0xff]
      %v538 = vld [vmem:[#allocation2 + $0x32] sm:$0xff]
      %v539 = vld [vmem:[#allocation2 + $0x3a] sm:$0xff]
      %v540 = vld [vmem:[#allocation2 + $0x4a] sm:$0xff]
      %v541 = vld [vmem:[#allocation2 + $0x52] sm:$0xff]
      %v542 = vld [vmem:[#allocation2 + $0x62] sm:$0xff]
      %v543 = vld [vmem:[#allocation2 + $0x6a] sm:$0xff]
      %v544 = vld [vmem:[#allocation2 + $0x7a] sm:$0xff]
      %v545 = vld [vmem:[#allocation2 + $0x82] sm:$0xff]
      %v546 = vld [vmem:[#allocation2 + $0x92] sm:$0xff]
      %v547 = vld [vmem:[#allocation2 + $0x9a] sm:$0xff]
      %v548 = vld [vmem:[#allocation2 + $0xaa] sm:$0xff]
      %v549 = vld [vmem:[#allocation2 + $0xb2] sm:$0xff]
      %v550 = vld [vmem:[#allocation2 + $0xc2] sm:$0xff]
      %v551 = vld [vmem:[#allocation2 + $0xca] sm:$0xff]
      %v552 = vld [vmem:[#allocation2 + $0xda] sm:$0xff]
      %v553 = vld [vmem:[#allocation2 + $0xe2] sm:$0xff]
      %v554 = vld [vmem:[#allocation2 + $0xf2] sm:$0xff]
      %v555 = vld [vmem:[#allocation2 + $0xfa] sm:$0xff]
      %v556 = vld [vmem:[#allocation2 + $0x10a] sm:$0xff]
      %v557 = vld [vmem:[#allocation2 + $0x112] sm:$0xff]
      %v558 = vld [vmem:[#allocation2 + $0x122] sm:$0xff]
      %v559 = vld [vmem:[#allocation2 + $0x12a] sm:$0xff]
      %v560 = vld [vmem:[#allocation2 + $0x13a] sm:$0xff]
      %v561 = vld [vmem:[#allocation2 + $0x142] sm:$0xff]
      %v562 = vld [vmem:[#allocation2 + $0x152] sm:$0xff]
      %v563 = vld [vmem:[#allocation2 + $0x15a] sm:$0xff]
      %v564 = vld [vmem:[#allocation2 + $0x16a] sm:$0xff]
      %v565 = vld [vmem:[#allocation2 + $0x172] sm:$0xff]
      %v566 = vld [vmem:[%s437] sm:$0xff]
      %v567 = vld [vmem:[%s437 + $0x8] sm:$0xff]
      %v568 = vld [vmem:[%s437 + $0x18] sm:$0xff]
      %v569 = vld [vmem:[%s437 + $0x20] sm:$0xff]
      %v570 = vld [vmem:[%s437 + $0x30] sm:$0xff]
      %v571 = vld [vmem:[%s437 + $0x38] sm:$0xff]
      %v572 = vld [vmem:[%s437 + $0x48] sm:$0xff]
      %v573 = vld [vmem:[%s437 + $0x50] sm:$0xff]
      %v574 = vld [vmem:[%s437 + $0x60] sm:$0xff]
      %v575 = vld [vmem:[%s437 + $0x68] sm:$0xff]
      %v576 = vld [vmem:[%s437 + $0x78] sm:$0xff]
      %v577 = vld [vmem:[%s437 + $0x80] sm:$0xff]
      %v578 = vld [vmem:[%s437 + $0x90] sm:$0xff]
      %v579 = vld [vmem:[%s437 + $0x98] sm:$0xff]
      %v580 = vld [vmem:[%s437 + $0xa8] sm:$0xff]
      %v581 = vld [vmem:[%s437 + $0xb0] sm:$0xff]
      %v582 = vld [vmem:[%s437 + $0xc0] sm:$0xff]
      %v583 = vld [vmem:[%s437 + $0xc8] sm:$0xff]
      %v584 = vld [vmem:[%s437 + $0xd8] sm:$0xff]
      %v585 = vld [vmem:[%s437 + $0xe0] sm:$0xff]
      %v586 = vld [vmem:[%s437 + $0xf0] sm:$0xff]
      %v587 = vld [vmem:[%s437 + $0xf8] sm:$0xff]
      %v588 = vld [vmem:[%s437 + $0x108] sm:$0xff]
      %v589 = vld [vmem:[%s437 + $0x110] sm:$0xff]
      %v590 = vld [vmem:[%s437 + $0x120] sm:$0xff]
      %v591 = vld [vmem:[%s437 + $0x128] sm:$0xff]
      %v592 = vld [vmem:[%s437 + $0x138] sm:$0xff]
      %v593 = vld [vmem:[%s437 + $0x140] sm:$0xff]
      %v594 = vld [vmem:[%s437 + $0x150] sm:$0xff]
      %v595 = vld [vmem:[%s437 + $0x158] sm:$0xff]
      %v596 = vld [vmem:[%s437 + $0x168] sm:$0xff]
      %v597 = vld [vmem:[%s437 + $0x170] sm:$0xff]
      %v598 = vld [vmem:[%s437 + $0x1] sm:$0xff]
      %v599 = vld [vmem:[%s437 + $0x9] sm:$0xff]
      %v600 = vld [vmem:[%s437 + $0x19] sm:$0xff]
      %v601 = vld [vmem:[%s437 + $0x21] sm:$0xff]
      %v602 = vld [vmem:[%s437 + $0x31] sm:$0xff]
      %v603 = vld [vmem:[%s437 + $0x39] sm:$0xff]
      %v604 = vld [vmem:[%s437 + $0x49] sm:$0xff]
      %v605 = vld [vmem:[%s437 + $0x51] sm:$0xff]
      %v606 = vld [vmem:[%s437 + $0x61] sm:$0xff]
      %v607 = vld [vmem:[%s437 + $0x69] sm:$0xff]
      %v608 = vld [vmem:[%s437 + $0x79] sm:$0xff]
      %v609 = vld [vmem:[%s437 + $0x81] sm:$0xff]
      %v610 = vld [vmem:[%s437 + $0x91] sm:$0xff]
      %v611 = vld [vmem:[%s437 + $0x99] sm:$0xff]
      %v612 = vld [vmem:[%s437 + $0xa9] sm:$0xff]
      %v613 = vld [vmem:[%s437 + $0xb1] sm:$0xff]
      %v614 = vld [vmem:[%s437 + $0xc1] sm:$0xff]
      %v615 = vld [vmem:[%s437 + $0xc9] sm:$0xff]
      %v616 = vld [vmem:[%s437 + $0xd9] sm:$0xff]
      %v617 = vld [vmem:[%s437 + $0xe1] sm:$0xff]
      %v618 = vld [vmem:[%s437 + $0xf1] sm:$0xff]
      %v619 = vld [vmem:[%s437 + $0xf9] sm:$0xff]
      %v620 = vld [vmem:[%s437 + $0x109] sm:$0xff]
      %v621 = vld [vmem:[%s437 + $0x111] sm:$0xff]
      %v622 = vld [vmem:[%s437 + $0x121] sm:$0xff]
      %v623 = vld [vmem:[%s437 + $0x129] sm:$0xff]
      %v624 = vld [vmem:[%s437 + $0x139] sm:$0xff]
      %v625 = vld [vmem:[%s437 + $0x141] sm:$0xff]
      %v626 = vld [vmem:[%s437 + $0x151] sm:$0xff]
      %v627 = vld [vmem:[%s437 + $0x159] sm:$0xff]
      %v628 = vld [vmem:[%s437 + $0x169] sm:$0xff]
      %v629 = vld [vmem:[%s437 + $0x171] sm:$0xff]
      %v630 = vld [vmem:[%s437 + $0x2] sm:$0xff]
      %v631 = vld [vmem:[%s437 + $0xa] sm:$0xff]
      %v632 = vld [vmem:[%s437 + $0x1a] sm:$0xff]
      %v633 = vld [vmem:[%s437 + $0x22] sm:$0xff]
      %v634 = vld [vmem:[%s437 + $0x32] sm:$0xff]
      %v635 = vld [vmem:[%s437 + $0x3a] sm:$0xff]
      %v636 = vld [vmem:[%s437 + $0x4a] sm:$0xff]
      %v637 = vld [vmem:[%s437 + $0x52] sm:$0xff]
      %v638 = vld [vmem:[%s437 + $0x62] sm:$0xff]
      %v639 = vld [vmem:[%s437 + $0x6a] sm:$0xff]
      %v640 = vld [vmem:[%s437 + $0x7a] sm:$0xff]
      %v641 = vld [vmem:[%s437 + $0x82] sm:$0xff]
      %v642 = vld [vmem:[%s437 + $0x92] sm:$0xff]
      %v643 = vld [vmem:[%s437 + $0x9a] sm:$0xff]
      %v644 = vld [vmem:[%s437 + $0xaa] sm:$0xff]
      %v645 = vld [vmem:[%s437 + $0xb2] sm:$0xff]
      %v646 = vld [vmem:[%s437 + $0xc2] sm:$0xff]
      %v647 = vld [vmem:[%s437 + $0xca] sm:$0xff]
      %v648 = vld [vmem:[%s437 + $0xda] sm:$0xff]
      %v649 = vld [vmem:[%s437 + $0xe2] sm:$0xff]
      %v650 = vld [vmem:[%s437 + $0xf2] sm:$0xff]
      %v651 = vld [vmem:[%s437 + $0xfa] sm:$0xff]
      %v652 = vld [vmem:[%s437 + $0x10a] sm:$0xff]
      %v653 = vld [vmem:[%s437 + $0x112] sm:$0xff]
      %v654 = vld [vmem:[%s437 + $0x122] sm:$0xff]
      %v655 = vld [vmem:[%s437 + $0x12a] sm:$0xff]
      %v656 = vld [vmem:[%s437 + $0x13a] sm:$0xff]
      %v657 = vld [vmem:[%s437 + $0x142] sm:$0xff]
      %v658 = vld [vmem:[%s437 + $0x152] sm:$0xff]
      %v659 = vld [vmem:[%s437 + $0x15a] sm:$0xff]
      %v660 = vld [vmem:[%s437 + $0x16a] sm:$0xff]
      %v661 = vld [vmem:[%s437 + $0x172] sm:$0xff]
      %s662 = scalar_lea.vmem [#allocation2], 48
      %v663 = vld [vmem:[%s662] sm:$0xff]
      %v664 = vld [vmem:[%s662 + $0x8] sm:$0xff]
      %v665 = vld [vmem:[%s662 + $0x18] sm:$0xff]
      %v666 = vld [vmem:[%s662 + $0x20] sm:$0xff]
      %v667 = vld [vmem:[%s662 + $0x30] sm:$0xff]
      %v668 = vld [vmem:[%s662 + $0x38] sm:$0xff]
      %v669 = vld [vmem:[%s662 + $0x48] sm:$0xff]
      %v670 = vld [vmem:[%s662 + $0x50] sm:$0xff]
      %v671 = vld [vmem:[%s662 + $0x60] sm:$0xff]
      %v672 = vld [vmem:[%s662 + $0x68] sm:$0xff]
      %v673 = vld [vmem:[%s662 + $0x78] sm:$0xff]
      %v674 = vld [vmem:[%s662 + $0x80] sm:$0xff]
      %v675 = vld [vmem:[%s662 + $0x90] sm:$0xff]
      %v676 = vld [vmem:[%s662 + $0x98] sm:$0xff]
      %v677 = vld [vmem:[%s662 + $0xa8] sm:$0xff]
      %v678 = vld [vmem:[%s662 + $0xb0] sm:$0xff]
      %v679 = vld [vmem:[%s662 + $0xc0] sm:$0xff]
      %v680 = vld [vmem:[%s662 + $0xc8] sm:$0xff]
      %v681 = vld [vmem:[%s662 + $0xd8] sm:$0xff]
      %v682 = vld [vmem:[%s662 + $0xe0] sm:$0xff]
      %v683 = vld [vmem:[%s662 + $0xf0] sm:$0xff]
      %v684 = vld [vmem:[%s662 + $0xf8] sm:$0xff]
      %v685 = vld [vmem:[%s662 + $0x108] sm:$0xff]
      %v686 = vld [vmem:[%s662 + $0x110] sm:$0xff]
      %v687 = vld [vmem:[%s662 + $0x120] sm:$0xff]
      %v688 = vld [vmem:[%s662 + $0x128] sm:$0xff]
      %v689 = vld [vmem:[%s662 + $0x138] sm:$0xff]
      %v690 = vld [vmem:[%s662 + $0x140] sm:$0xff]
      %v691 = vld [vmem:[%s662 + $0x150] sm:$0xff]
      %v692 = vld [vmem:[%s662 + $0x158] sm:$0xff]
      %v693 = vld [vmem:[%s662 + $0x168] sm:$0xff]
      %v694 = vld [vmem:[%s662 + $0x170] sm:$0xff]
      %v695 = vld [vmem:[%s662 + $0x1] sm:$0xff]
      %v696 = vld [vmem:[%s662 + $0x9] sm:$0xff]
      %v697 = vld [vmem:[%s662 + $0x19] sm:$0xff]
      %v698 = vld [vmem:[%s662 + $0x21] sm:$0xff]
      %v699 = vld [vmem:[%s662 + $0x31] sm:$0xff]
      %v700 = vld [vmem:[%s662 + $0x39] sm:$0xff]
      %v701 = vld [vmem:[%s662 + $0x49] sm:$0xff]
      %v702 = vld [vmem:[%s662 + $0x51] sm:$0xff]
      %v703 = vld [vmem:[%s662 + $0x61] sm:$0xff]
      %v704 = vld [vmem:[%s662 + $0x69] sm:$0xff]
      %v705 = vld [vmem:[%s662 + $0x79] sm:$0xff]
      %v706 = vld [vmem:[%s662 + $0x81] sm:$0xff]
      %v707 = vld [vmem:[%s662 + $0x91] sm:$0xff]
      %v708 = vld [vmem:[%s662 + $0x99] sm:$0xff]
      %v709 = vld [vmem:[%s662 + $0xa9] sm:$0xff]
      %v710 = vld [vmem:[%s662 + $0xb1] sm:$0xff]
      %v711 = vld [vmem:[%s662 + $0xc1] sm:$0xff]
      %v712 = vld [vmem:[%s662 + $0xc9] sm:$0xff]
      %v713 = vld [vmem:[%s662 + $0xd9] sm:$0xff]
      %v714 = vld [vmem:[%s662 + $0xe1] sm:$0xff]
      %v715 = vld [vmem:[%s662 + $0xf1] sm:$0xff]
      %v716 = vld [vmem:[%s662 + $0xf9] sm:$0xff]
      %v717 = vld [vmem:[%s662 + $0x109] sm:$0xff]
      %v718 = vld [vmem:[%s662 + $0x111] sm:$0xff]
      %v719 = vld [vmem:[%s662 + $0x121] sm:$0xff]
      %v720 = vld [vmem:[%s662 + $0x129] sm:$0xff]
      %v721 = vld [vmem:[%s662 + $0x139] sm:$0xff]
      %v722 = vld [vmem:[%s662 + $0x141] sm:$0xff]
      %v723 = vld [vmem:[%s662 + $0x151] sm:$0xff]
      %v724 = vld [vmem:[%s662 + $0x159] sm:$0xff]
      %v725 = vld [vmem:[%s662 + $0x169] sm:$0xff]
      %v726 = vld [vmem:[%s662 + $0x171] sm:$0xff]
      %v727 = vld [vmem:[%s662 + $0x2] sm:$0xff]
      %v728 = vld [vmem:[%s662 + $0xa] sm:$0xff]
      %v729 = vld [vmem:[%s662 + $0x1a] sm:$0xff]
      %v730 = vld [vmem:[%s662 + $0x22] sm:$0xff]
      %v731 = vld [vmem:[%s662 + $0x32] sm:$0xff]
      %v732 = vld [vmem:[%s662 + $0x3a] sm:$0xff]
      %v733 = vld [vmem:[%s662 + $0x4a] sm:$0xff]
      %v734 = vld [vmem:[%s662 + $0x52] sm:$0xff]
      %v735 = vld [vmem:[%s662 + $0x62] sm:$0xff]
      %v736 = vld [vmem:[%s662 + $0x6a] sm:$0xff]
      %v737 = vld [vmem:[%s662 + $0x7a] sm:$0xff]
      %v738 = vld [vmem:[%s662 + $0x82] sm:$0xff]
      %v739 = vld [vmem:[%s662 + $0x92] sm:$0xff]
      %v740 = vld [vmem:[%s662 + $0x9a] sm:$0xff]
      %v741 = vld [vmem:[%s662 + $0xaa] sm:$0xff]
      %v742 = vld [vmem:[%s662 + $0xb2] sm:$0xff]
      %v743 = vld [vmem:[%s662 + $0xc2] sm:$0xff]
      %v744 = vld [vmem:[%s662 + $0xca] sm:$0xff]
      %v745 = vld [vmem:[%s662 + $0xda] sm:$0xff]
      %v746 = vld [vmem:[%s662 + $0xe2] sm:$0xff]
      %v747 = vld [vmem:[%s662 + $0xf2] sm:$0xff]
      %v748 = vld [vmem:[%s662 + $0xfa] sm:$0xff]
      %v749 = vld [vmem:[%s662 + $0x10a] sm:$0xff]
      %v750 = vld [vmem:[%s662 + $0x112] sm:$0xff]
      %v751 = vld [vmem:[%s662 + $0x122] sm:$0xff]
      %v752 = vld [vmem:[%s662 + $0x12a] sm:$0xff]
      %v753 = vld [vmem:[%s662 + $0x13a] sm:$0xff]
      %v754 = vld [vmem:[%s662 + $0x142] sm:$0xff]
      %v755 = vld [vmem:[%s662 + $0x152] sm:$0xff]
      %v756 = vld [vmem:[%s662 + $0x15a] sm:$0xff]
      %v757 = vld [vmem:[%s662 + $0x16a] sm:$0xff]
      %v758 = vld [vmem:[%s662 + $0x172] sm:$0xff]
      %791 = vrot.lane.b32.xlu0 %v502, 16
      %v792 = vpop.permute.xlu0 %791
      %793 = vrot.lane.b32.xlu0 %v503, 16
      %v794 = vpop.permute.xlu0 %793
      %795 = vrot.lane.b32.xlu0 %v504, 16
      %v796 = vpop.permute.xlu0 %795
      %797 = vrot.lane.b32.xlu0 %v505, 16
      %v798 = vpop.permute.xlu0 %797
      %799 = vrot.lane.b32.xlu0 %v506, 16
      %v800 = vpop.permute.xlu0 %799
      %801 = vrot.lane.b32.xlu0 %v507, 16
      %v802 = vpop.permute.xlu0 %801
      %803 = vrot.lane.b32.xlu0 %v508, 16
      %v804 = vpop.permute.xlu0 %803
      %805 = vrot.lane.b32.xlu0 %v509, 16
      %v806 = vpop.permute.xlu0 %805
      %807 = vrot.lane.b32.xlu0 %v510, 16
      %v808 = vpop.permute.xlu0 %807
      %809 = vrot.lane.b32.xlu0 %v511, 16
      %v810 = vpop.permute.xlu0 %809
      %811 = vrot.lane.b32.xlu0 %v512, 16
      %v812 = vpop.permute.xlu0 %811
      %813 = vrot.lane.b32.xlu0 %v513, 16
      %v814 = vpop.permute.xlu0 %813
      %815 = vrot.lane.b32.xlu0 %v514, 16
      %v816 = vpop.permute.xlu0 %815
      %817 = vrot.lane.b32.xlu0 %v515, 16
      %v818 = vpop.permute.xlu0 %817
      %819 = vrot.lane.b32.xlu0 %v516, 16
      %v820 = vpop.permute.xlu0 %819
      %821 = vrot.lane.b32.xlu0 %v517, 16
      %v822 = vpop.permute.xlu0 %821
      %823 = vrot.lane.b32.xlu0 %v518, 16
      %v824 = vpop.permute.xlu0 %823
      %825 = vrot.lane.b32.xlu0 %v519, 16
      %v826 = vpop.permute.xlu0 %825
      %827 = vrot.lane.b32.xlu0 %v520, 16
      %v828 = vpop.permute.xlu0 %827
      %829 = vrot.lane.b32.xlu0 %v521, 16
      %v830 = vpop.permute.xlu0 %829
      %831 = vrot.lane.b32.xlu0 %v522, 16
      %v832 = vpop.permute.xlu0 %831
      %833 = vrot.lane.b32.xlu0 %v523, 16
      %v834 = vpop.permute.xlu0 %833
      %835 = vrot.lane.b32.xlu0 %v524, 16
      %v836 = vpop.permute.xlu0 %835
      %837 = vrot.lane.b32.xlu0 %v525, 16
      %v838 = vpop.permute.xlu0 %837
      %839 = vrot.lane.b32.xlu0 %v526, 16
      %v840 = vpop.permute.xlu0 %839
      %841 = vrot.lane.b32.xlu0 %v527, 16
      %v842 = vpop.permute.xlu0 %841
      %843 = vrot.lane.b32.xlu0 %v528, 16
      %v844 = vpop.permute.xlu0 %843
      %845 = vrot.lane.b32.xlu0 %v529, 16
      %v846 = vpop.permute.xlu0 %845
      %847 = vrot.lane.b32.xlu0 %v530, 16
      %v848 = vpop.permute.xlu0 %847
      %849 = vrot.lane.b32.xlu0 %v531, 16
      %v850 = vpop.permute.xlu0 %849
      %851 = vrot.lane.b32.xlu0 %v532, 16
      %v852 = vpop.permute.xlu0 %851
      %853 = vrot.lane.b32.xlu0 %v533, 16
      %v854 = vpop.permute.xlu0 %853
      %919 = vrot.lane.b32.xlu0 %v534, 32
      %v920 = vpop.permute.xlu0 %919
      %921 = vrot.lane.b32.xlu0 %v535, 32
      %v922 = vpop.permute.xlu0 %921
      %923 = vrot.lane.b32.xlu0 %v536, 32
      %v924 = vpop.permute.xlu0 %923
      %925 = vrot.lane.b32.xlu0 %v537, 32
      %v926 = vpop.permute.xlu0 %925
      %927 = vrot.lane.b32.xlu0 %v538, 32
      %v928 = vpop.permute.xlu0 %927
      %929 = vrot.lane.b32.xlu0 %v539, 32
      %v930 = vpop.permute.xlu0 %929
      %931 = vrot.lane.b32.xlu0 %v540, 32
      %v932 = vpop.permute.xlu0 %931
      %933 = vrot.lane.b32.xlu0 %v541, 32
      %v934 = vpop.permute.xlu0 %933
      %935 = vrot.lane.b32.xlu0 %v542, 32
      %v936 = vpop.permute.xlu0 %935
      %937 = vrot.lane.b32.xlu0 %v543, 32
      %v938 = vpop.permute.xlu0 %937
      %939 = vrot.lane.b32.xlu0 %v544, 32
      %v940 = vpop.permute.xlu0 %939
      %941 = vrot.lane.b32.xlu0 %v545, 32
      %v942 = vpop.permute.xlu0 %941
      %943 = vrot.lane.b32.xlu0 %v546, 32
      %v944 = vpop.permute.xlu0 %943
      %945 = vrot.lane.b32.xlu0 %v547, 32
      %v946 = vpop.permute.xlu0 %945
      %947 = vrot.lane.b32.xlu0 %v548, 32
      %v948 = vpop.permute.xlu0 %947
      %949 = vrot.lane.b32.xlu0 %v549, 32
      %v950 = vpop.permute.xlu0 %949
      %951 = vrot.lane.b32.xlu0 %v550, 32
      %v952 = vpop.permute.xlu0 %951
      %953 = vrot.lane.b32.xlu0 %v551, 32
      %v954 = vpop.permute.xlu0 %953
      %955 = vrot.lane.b32.xlu0 %v552, 32
      %v956 = vpop.permute.xlu0 %955
      %957 = vrot.lane.b32.xlu0 %v553, 32
      %v958 = vpop.permute.xlu0 %957
      %959 = vrot.lane.b32.xlu0 %v554, 32
      %v960 = vpop.permute.xlu0 %959
      %961 = vrot.lane.b32.xlu0 %v555, 32
      %v962 = vpop.permute.xlu0 %961
      %963 = vrot.lane.b32.xlu0 %v556, 32
      %v964 = vpop.permute.xlu0 %963
      %965 = vrot.lane.b32.xlu0 %v557, 32
      %v966 = vpop.permute.xlu0 %965
      %967 = vrot.lane.b32.xlu0 %v558, 32
      %v968 = vpop.permute.xlu0 %967
      %969 = vrot.lane.b32.xlu0 %v559, 32
      %v970 = vpop.permute.xlu0 %969
      %971 = vrot.lane.b32.xlu0 %v560, 32
      %v972 = vpop.permute.xlu0 %971
      %973 = vrot.lane.b32.xlu0 %v561, 32
      %v974 = vpop.permute.xlu0 %973
      %975 = vrot.lane.b32.xlu0 %v562, 32
      %v976 = vpop.permute.xlu0 %975
      %977 = vrot.lane.b32.xlu0 %v563, 32
      %v978 = vpop.permute.xlu0 %977
      %979 = vrot.lane.b32.xlu0 %v564, 32
      %v980 = vpop.permute.xlu0 %979
      %981 = vrot.lane.b32.xlu0 %v565, 32
      %v982 = vpop.permute.xlu0 %981
      %1047 = vrot.lane.b32.xlu0 %v566, 48
      %v1048 = vpop.permute.xlu0 %1047
      %1049 = vrot.lane.b32.xlu0 %v567, 48
      %v1050 = vpop.permute.xlu0 %1049
      %1051 = vrot.lane.b32.xlu0 %v568, 48
      %v1052 = vpop.permute.xlu0 %1051
      %1053 = vrot.lane.b32.xlu0 %v569, 48
      %v1054 = vpop.permute.xlu0 %1053
      %1055 = vrot.lane.b32.xlu0 %v570, 48
      %v1056 = vpop.permute.xlu0 %1055
      %1057 = vrot.lane.b32.xlu0 %v571, 48
      %v1058 = vpop.permute.xlu0 %1057
      %1059 = vrot.lane.b32.xlu0 %v572, 48
      %v1060 = vpop.permute.xlu0 %1059
      %1061 = vrot.lane.b32.xlu0 %v573, 48
      %v1062 = vpop.permute.xlu0 %1061
      %1063 = vrot.lane.b32.xlu0 %v574, 48
      %v1064 = vpop.permute.xlu0 %1063
      %1065 = vrot.lane.b32.xlu0 %v575, 48
      %v1066 = vpop.permute.xlu0 %1065
      %1067 = vrot.lane.b32.xlu0 %v576, 48
      %v1068 = vpop.permute.xlu0 %1067
      %1069 = vrot.lane.b32.xlu0 %v577, 48
      %v1070 = vpop.permute.xlu0 %1069
      %1071 = vrot.lane.b32.xlu0 %v578, 48
      %v1072 = vpop.permute.xlu0 %1071
      %1073 = vrot.lane.b32.xlu0 %v579, 48
      %v1074 = vpop.permute.xlu0 %1073
      %1075 = vrot.lane.b32.xlu0 %v580, 48
      %v1076 = vpop.permute.xlu0 %1075
      %1077 = vrot.lane.b32.xlu0 %v581, 48
      %v1078 = vpop.permute.xlu0 %1077
      %1079 = vrot.lane.b32.xlu0 %v582, 48
      %v1080 = vpop.permute.xlu0 %1079
      %1081 = vrot.lane.b32.xlu0 %v583, 48
      %v1082 = vpop.permute.xlu0 %1081
      %1083 = vrot.lane.b32.xlu0 %v584, 48
      %v1084 = vpop.permute.xlu0 %1083
      %1085 = vrot.lane.b32.xlu0 %v585, 48
      %v1086 = vpop.permute.xlu0 %1085
      %1087 = vrot.lane.b32.xlu0 %v586, 48
      %v1088 = vpop.permute.xlu0 %1087
      %1089 = vrot.lane.b32.xlu0 %v587, 48
      %v1090 = vpop.permute.xlu0 %1089
      %1091 = vrot.lane.b32.xlu0 %v588, 48
      %v1092 = vpop.permute.xlu0 %1091
      %1093 = vrot.lane.b32.xlu0 %v589, 48
      %v1094 = vpop.permute.xlu0 %1093
      %1095 = vrot.lane.b32.xlu0 %v590, 48
      %v1096 = vpop.permute.xlu0 %1095
      %1097 = vrot.lane.b32.xlu0 %v591, 48
      %v1098 = vpop.permute.xlu0 %1097
      %1099 = vrot.lane.b32.xlu0 %v592, 48
      %v1100 = vpop.permute.xlu0 %1099
      %1101 = vrot.lane.b32.xlu0 %v593, 48
      %v1102 = vpop.permute.xlu0 %1101
      %1103 = vrot.lane.b32.xlu0 %v594, 48
      %v1104 = vpop.permute.xlu0 %1103
      %1105 = vrot.lane.b32.xlu0 %v595, 48
      %v1106 = vpop.permute.xlu0 %1105
      %1107 = vrot.lane.b32.xlu0 %v596, 48
      %v1108 = vpop.permute.xlu0 %1107
      %1109 = vrot.lane.b32.xlu0 %v597, 48
      %v1110 = vpop.permute.xlu0 %1109
      %1175 = vrot.lane.b32.xlu0 %v598, 64
      %v1176 = vpop.permute.xlu0 %1175
      %1177 = vrot.lane.b32.xlu0 %v599, 64
      %v1178 = vpop.permute.xlu0 %1177
      %1179 = vrot.lane.b32.xlu0 %v600, 64
      %v1180 = vpop.permute.xlu0 %1179
      %1181 = vrot.lane.b32.xlu0 %v601, 64
      %v1182 = vpop.permute.xlu0 %1181
      %1183 = vrot.lane.b32.xlu0 %v602, 64
      %v1184 = vpop.permute.xlu0 %1183
      %1185 = vrot.lane.b32.xlu0 %v603, 64
      %v1186 = vpop.permute.xlu0 %1185
      %1187 = vrot.lane.b32.xlu0 %v604, 64
      %v1188 = vpop.permute.xlu0 %1187
      %1189 = vrot.lane.b32.xlu0 %v605, 64
      %v1190 = vpop.permute.xlu0 %1189
      %1191 = vrot.lane.b32.xlu0 %v606, 64
      %v1192 = vpop.permute.xlu0 %1191
      %1193 = vrot.lane.b32.xlu0 %v607, 64
      %v1194 = vpop.permute.xlu0 %1193
      %1195 = vrot.lane.b32.xlu0 %v608, 64
      %v1196 = vpop.permute.xlu0 %1195
      %1197 = vrot.lane.b32.xlu0 %v609, 64
      %v1198 = vpop.permute.xlu0 %1197
      %1199 = vrot.lane.b32.xlu0 %v610, 64
      %v1200 = vpop.permute.xlu0 %1199
      %1201 = vrot.lane.b32.xlu0 %v611, 64
      %v1202 = vpop.permute.xlu0 %1201
      %1203 = vrot.lane.b32.xlu0 %v612, 64
      %v1204 = vpop.permute.xlu0 %1203
      %1205 = vrot.lane.b32.xlu0 %v613, 64
      %v1206 = vpop.permute.xlu0 %1205
      %1207 = vrot.lane.b32.xlu0 %v614, 64
      %v1208 = vpop.permute.xlu0 %1207
      %1209 = vrot.lane.b32.xlu0 %v615, 64
      %v1210 = vpop.permute.xlu0 %1209
      %1211 = vrot.lane.b32.xlu0 %v616, 64
      %v1212 = vpop.permute.xlu0 %1211
      %1213 = vrot.lane.b32.xlu0 %v617, 64
      %v1214 = vpop.permute.xlu0 %1213
      %1215 = vrot.lane.b32.xlu0 %v618, 64
      %v1216 = vpop.permute.xlu0 %1215
      %1217 = vrot.lane.b32.xlu0 %v619, 64
      %v1218 = vpop.permute.xlu0 %1217
      %1219 = vrot.lane.b32.xlu0 %v620, 64
      %v1220 = vpop.permute.xlu0 %1219
      %1221 = vrot.lane.b32.xlu0 %v621, 64
      %v1222 = vpop.permute.xlu0 %1221
      %1223 = vrot.lane.b32.xlu0 %v622, 64
      %v1224 = vpop.permute.xlu0 %1223
      %1225 = vrot.lane.b32.xlu0 %v623, 64
      %v1226 = vpop.permute.xlu0 %1225
      %1227 = vrot.lane.b32.xlu0 %v624, 64
      %v1228 = vpop.permute.xlu0 %1227
      %1229 = vrot.lane.b32.xlu0 %v625, 64
      %v1230 = vpop.permute.xlu0 %1229
      %1231 = vrot.lane.b32.xlu0 %v626, 64
      %v1232 = vpop.permute.xlu0 %1231
      %1233 = vrot.lane.b32.xlu0 %v627, 64
      %v1234 = vpop.permute.xlu0 %1233
      %1235 = vrot.lane.b32.xlu0 %v628, 64
      %v1236 = vpop.permute.xlu0 %1235
      %1237 = vrot.lane.b32.xlu0 %v629, 64
      %v1238 = vpop.permute.xlu0 %1237
      %1303 = vrot.lane.b32.xlu0 %v630, 80
      %v1304 = vpop.permute.xlu0 %1303
      %1305 = vrot.lane.b32.xlu0 %v631, 80
      %v1306 = vpop.permute.xlu0 %1305
      %1307 = vrot.lane.b32.xlu0 %v632, 80
      %v1308 = vpop.permute.xlu0 %1307
      %1309 = vrot.lane.b32.xlu0 %v633, 80
      %v1310 = vpop.permute.xlu0 %1309
      %1311 = vrot.lane.b32.xlu0 %v634, 80
      %v1312 = vpop.permute.xlu0 %1311
      %1313 = vrot.lane.b32.xlu0 %v635, 80
      %v1314 = vpop.permute.xlu0 %1313
      %1315 = vrot.lane.b32.xlu0 %v636, 80
      %v1316 = vpop.permute.xlu0 %1315
      %1317 = vrot.lane.b32.xlu0 %v637, 80
      %v1318 = vpop.permute.xlu0 %1317
      %1319 = vrot.lane.b32.xlu0 %v638, 80
      %v1320 = vpop.permute.xlu0 %1319
      %1321 = vrot.lane.b32.xlu0 %v639, 80
      %v1322 = vpop.permute.xlu0 %1321
      %1323 = vrot.lane.b32.xlu0 %v640, 80
      %v1324 = vpop.permute.xlu0 %1323
      %1325 = vrot.lane.b32.xlu0 %v641, 80
      %v1326 = vpop.permute.xlu0 %1325
      %1327 = vrot.lane.b32.xlu0 %v642, 80
      %v1328 = vpop.permute.xlu0 %1327
      %1329 = vrot.lane.b32.xlu0 %v643, 80
      %v1330 = vpop.permute.xlu0 %1329
      %1331 = vrot.lane.b32.xlu0 %v644, 80
      %v1332 = vpop.permute.xlu0 %1331
      %1333 = vrot.lane.b32.xlu0 %v645, 80
      %v1334 = vpop.permute.xlu0 %1333
      %1335 = vrot.lane.b32.xlu0 %v646, 80
      %v1336 = vpop.permute.xlu0 %1335
      %1337 = vrot.lane.b32.xlu0 %v647, 80
      %v1338 = vpop.permute.xlu0 %1337
      %1339 = vrot.lane.b32.xlu0 %v648, 80
      %v1340 = vpop.permute.xlu0 %1339
      %1341 = vrot.lane.b32.xlu0 %v649, 80
      %v1342 = vpop.permute.xlu0 %1341
      %1343 = vrot.lane.b32.xlu0 %v650, 80
      %v1344 = vpop.permute.xlu0 %1343
      %1345 = vrot.lane.b32.xlu0 %v651, 80
      %v1346 = vpop.permute.xlu0 %1345
      %1347 = vrot.lane.b32.xlu0 %v652, 80
      %v1348 = vpop.permute.xlu0 %1347
      %1349 = vrot.lane.b32.xlu0 %v653, 80
      %v1350 = vpop.permute.xlu0 %1349
      %1351 = vrot.lane.b32.xlu0 %v654, 80
      %v1352 = vpop.permute.xlu0 %1351
      %1353 = vrot.lane.b32.xlu0 %v655, 80
      %v1354 = vpop.permute.xlu0 %1353
      %1355 = vrot.lane.b32.xlu0 %v656, 80
      %v1356 = vpop.permute.xlu0 %1355
      %1357 = vrot.lane.b32.xlu0 %v657, 80
      %v1358 = vpop.permute.xlu0 %1357
      %1359 = vrot.lane.b32.xlu0 %v658, 80
      %v1360 = vpop.permute.xlu0 %1359
      %1361 = vrot.lane.b32.xlu0 %v659, 80
      %v1362 = vpop.permute.xlu0 %1361
      %1363 = vrot.lane.b32.xlu0 %v660, 80
      %v1364 = vpop.permute.xlu0 %1363
      %1365 = vrot.lane.b32.xlu0 %v661, 80
      %v1366 = vpop.permute.xlu0 %1365
      %1431 = vrot.lane.b32.xlu0 %v663, 96
      %v1432 = vpop.permute.xlu0 %1431
      %1433 = vrot.lane.b32.xlu0 %v664, 96
      %v1434 = vpop.permute.xlu0 %1433
      %1435 = vrot.lane.b32.xlu0 %v665, 96
      %v1436 = vpop.permute.xlu0 %1435
      %1437 = vrot.lane.b32.xlu0 %v666, 96
      %v1438 = vpop.permute.xlu0 %1437
      %1439 = vrot.lane.b32.xlu0 %v667, 96
      %v1440 = vpop.permute.xlu0 %1439
      %1441 = vrot.lane.b32.xlu0 %v668, 96
      %v1442 = vpop.permute.xlu0 %1441
      %1443 = vrot.lane.b32.xlu0 %v669, 96
      %v1444 = vpop.permute.xlu0 %1443
      %1445 = vrot.lane.b32.xlu0 %v670, 96
      %v1446 = vpop.permute.xlu0 %1445
      %1447 = vrot.lane.b32.xlu0 %v671, 96
      %v1448 = vpop.permute.xlu0 %1447
      %1449 = vrot.lane.b32.xlu0 %v672, 96
      %v1450 = vpop.permute.xlu0 %1449
      %1451 = vrot.lane.b32.xlu0 %v673, 96
      %v1452 = vpop.permute.xlu0 %1451
      %1453 = vrot.lane.b32.xlu0 %v674, 96
      %v1454 = vpop.permute.xlu0 %1453
      %1455 = vrot.lane.b32.xlu0 %v675, 96
      %v1456 = vpop.permute.xlu0 %1455
      %1457 = vrot.lane.b32.xlu0 %v676, 96
      %v1458 = vpop.permute.xlu0 %1457
      %1459 = vrot.lane.b32.xlu0 %v677, 96
      %v1460 = vpop.permute.xlu0 %1459
      %1461 = vrot.lane.b32.xlu0 %v678, 96
      %v1462 = vpop.permute.xlu0 %1461
      %1463 = vrot.lane.b32.xlu0 %v679, 96
      %v1464 = vpop.permute.xlu0 %1463
      %1465 = vrot.lane.b32.xlu0 %v680, 96
      %v1466 = vpop.permute.xlu0 %1465
      %1467 = vrot.lane.b32.xlu0 %v681, 96
      %v1468 = vpop.permute.xlu0 %1467
      %1469 = vrot.lane.b32.xlu0 %v682, 96
      %v1470 = vpop.permute.xlu0 %1469
      %1471 = vrot.lane.b32.xlu0 %v683, 96
      %v1472 = vpop.permute.xlu0 %1471
      %1473 = vrot.lane.b32.xlu0 %v684, 96
      %v1474 = vpop.permute.xlu0 %1473
      %1475 = vrot.lane.b32.xlu0 %v685, 96
      %v1476 = vpop.permute.xlu0 %1475
      %1477 = vrot.lane.b32.xlu0 %v686, 96
      %v1478 = vpop.permute.xlu0 %1477
      %1479 = vrot.lane.b32.xlu0 %v687, 96
      %v1480 = vpop.permute.xlu0 %1479
      %1481 = vrot.lane.b32.xlu0 %v688, 96
      %v1482 = vpop.permute.xlu0 %1481
      %1483 = vrot.lane.b32.xlu0 %v689, 96
      %v1484 = vpop.permute.xlu0 %1483
      %1485 = vrot.lane.b32.xlu0 %v690, 96
      %v1486 = vpop.permute.xlu0 %1485
      %1487 = vrot.lane.b32.xlu0 %v691, 96
      %v1488 = vpop.permute.xlu0 %1487
      %1489 = vrot.lane.b32.xlu0 %v692, 96
      %v1490 = vpop.permute.xlu0 %1489
      %1491 = vrot.lane.b32.xlu0 %v693, 96
      %v1492 = vpop.permute.xlu0 %1491
      %1493 = vrot.lane.b32.xlu0 %v694, 96
      %v1494 = vpop.permute.xlu0 %1493
      %1559 = vrot.lane.b32.xlu0 %v695, 112
      %v1560 = vpop.permute.xlu0 %1559
      %1561 = vrot.lane.b32.xlu0 %v696, 112
      %v1562 = vpop.permute.xlu0 %1561
      %1563 = vrot.lane.b32.xlu0 %v697, 112
      %v1564 = vpop.permute.xlu0 %1563
      %1565 = vrot.lane.b32.xlu0 %v698, 112
      %v1566 = vpop.permute.xlu0 %1565
      %1567 = vrot.lane.b32.xlu0 %v699, 112
      %v1568 = vpop.permute.xlu0 %1567
      %1569 = vrot.lane.b32.xlu0 %v700, 112
      %v1570 = vpop.permute.xlu0 %1569
      %1571 = vrot.lane.b32.xlu0 %v701, 112
      %v1572 = vpop.permute.xlu0 %1571
      %1573 = vrot.lane.b32.xlu0 %v702, 112
      %v1574 = vpop.permute.xlu0 %1573
      %1575 = vrot.lane.b32.xlu0 %v703, 112
      %v1576 = vpop.permute.xlu0 %1575
      %1577 = vrot.lane.b32.xlu0 %v704, 112
      %v1578 = vpop.permute.xlu0 %1577
      %1579 = vrot.lane.b32.xlu0 %v705, 112
      %v1580 = vpop.permute.xlu0 %1579
      %1581 = vrot.lane.b32.xlu0 %v706, 112
      %v1582 = vpop.permute.xlu0 %1581
      %1583 = vrot.lane.b32.xlu0 %v707, 112
      %v1584 = vpop.permute.xlu0 %1583
      %1585 = vrot.lane.b32.xlu0 %v708, 112
      %v1586 = vpop.permute.xlu0 %1585
      %1587 = vrot.lane.b32.xlu0 %v709, 112
      %v1588 = vpop.permute.xlu0 %1587
      %1589 = vrot.lane.b32.xlu0 %v710, 112
      %v1590 = vpop.permute.xlu0 %1589
      %1591 = vrot.lane.b32.xlu0 %v711, 112
      %v1592 = vpop.permute.xlu0 %1591
      %1593 = vrot.lane.b32.xlu0 %v712, 112
      %v1594 = vpop.permute.xlu0 %1593
      %1595 = vrot.lane.b32.xlu0 %v713, 112
      %v1596 = vpop.permute.xlu0 %1595
      %1597 = vrot.lane.b32.xlu0 %v714, 112
      %v1598 = vpop.permute.xlu0 %1597
      %1599 = vrot.lane.b32.xlu0 %v715, 112
      %v1600 = vpop.permute.xlu0 %1599
      %1601 = vrot.lane.b32.xlu0 %v716, 112
      %v1602 = vpop.permute.xlu0 %1601
      %1603 = vrot.lane.b32.xlu0 %v717, 112
      %v1604 = vpop.permute.xlu0 %1603
      %1605 = vrot.lane.b32.xlu0 %v718, 112
      %v1606 = vpop.permute.xlu0 %1605
      %1607 = vrot.lane.b32.xlu0 %v719, 112
      %v1608 = vpop.permute.xlu0 %1607
      %1609 = vrot.lane.b32.xlu0 %v720, 112
      %v1610 = vpop.permute.xlu0 %1609
      %1611 = vrot.lane.b32.xlu0 %v721, 112
      %v1612 = vpop.permute.xlu0 %1611
      %1613 = vrot.lane.b32.xlu0 %v722, 112
      %v1614 = vpop.permute.xlu0 %1613
      %1615 = vrot.lane.b32.xlu0 %v723, 112
      %v1616 = vpop.permute.xlu0 %1615
      %1617 = vrot.lane.b32.xlu0 %v724, 112
      %v1618 = vpop.permute.xlu0 %1617
      %1619 = vrot.lane.b32.xlu0 %v725, 112
      %v1620 = vpop.permute.xlu0 %1619
      %1621 = vrot.lane.b32.xlu0 %v726, 112
      %v1622 = vpop.permute.xlu0 %1621
      %v1655 = vsel %vm293, %v470, %v792
      %v1656 = vsel %vm293, %v471, %v794
      %v1657 = vsel %vm293, %v472, %v796
      %v1658 = vsel %vm293, %v473, %v798
      %v1659 = vsel %vm293, %v474, %v800
      %v1660 = vsel %vm293, %v475, %v802
      %v1661 = vsel %vm293, %v476, %v804
      %v1662 = vsel %vm293, %v477, %v806
      %v1663 = vsel %vm293, %v478, %v808
      %v1664 = vsel %vm293, %v479, %v810
      %v1665 = vsel %vm293, %v480, %v812
      %v1666 = vsel %vm293, %v481, %v814
      %v1667 = vsel %vm293, %v482, %v816
      %v1668 = vsel %vm293, %v483, %v818
      %v1669 = vsel %vm293, %v484, %v820
      %v1670 = vsel %vm293, %v485, %v822
      %v1671 = vsel %vm293, %v486, %v824
      %v1672 = vsel %vm293, %v487, %v826
      %v1673 = vsel %vm293, %v488, %v828
      %v1674 = vsel %vm293, %v489, %v830
      %v1675 = vsel %vm293, %v490, %v832
      %v1676 = vsel %vm293, %v491, %v834
      %v1677 = vsel %vm293, %v492, %v836
      %v1678 = vsel %vm293, %v493, %v838
      %v1679 = vsel %vm293, %v494, %v840
      %v1680 = vsel %vm293, %v495, %v842
      %v1681 = vsel %vm293, %v496, %v844
      %v1682 = vsel %vm293, %v497, %v846
      %v1683 = vsel %vm293, %v498, %v848
      %v1684 = vsel %vm293, %v499, %v850
      %v1685 = vsel %vm293, %v500, %v852
      %v1686 = vsel %vm293, %v501, %v854
      %v1687 = vsel %vm349, %v1655, %v920
      %v1688 = vsel %vm349, %v1656, %v922
      %v1689 = vsel %vm349, %v1657, %v924
      %v1690 = vsel %vm349, %v1658, %v926
      %v1691 = vsel %vm349, %v1659, %v928
      %v1692 = vsel %vm349, %v1660, %v930
      %v1693 = vsel %vm349, %v1661, %v932
      %v1694 = vsel %vm349, %v1662, %v934
      %v1695 = vsel %vm349, %v1663, %v936
      %v1696 = vsel %vm349, %v1664, %v938
      %v1697 = vsel %vm349, %v1665, %v940
      %v1698 = vsel %vm349, %v1666, %v942
      %v1699 = vsel %vm349, %v1667, %v944
      %v1700 = vsel %vm349, %v1668, %v946
      %v1701 = vsel %vm349, %v1669, %v948
      %v1702 = vsel %vm349, %v1670, %v950
      %v1703 = vsel %vm349, %v1671, %v952
      %v1704 = vsel %vm349, %v1672, %v954
      %v1705 = vsel %vm349, %v1673, %v956
      %v1706 = vsel %vm349, %v1674, %v958
      %v1707 = vsel %vm349, %v1675, %v960
      %v1708 = vsel %vm349, %v1676, %v962
      %v1709 = vsel %vm349, %v1677, %v964
      %v1710 = vsel %vm349, %v1678, %v966
      %v1711 = vsel %vm349, %v1679, %v968
      %v1712 = vsel %vm349, %v1680, %v970
      %v1713 = vsel %vm349, %v1681, %v972
      %v1714 = vsel %vm349, %v1682, %v974
      %v1715 = vsel %vm349, %v1683, %v976
      %v1716 = vsel %vm349, %v1684, %v978
      %v1717 = vsel %vm349, %v1685, %v980
      %v1718 = vsel %vm349, %v1686, %v982
      %vm1719 = vcmask 392192
      %v1720 = vsel %vm1719, %v1687, %v1048
      %v1721 = vsel %vm1719, %v1688, %v1050
      %v1722 = vsel %vm1719, %v1689, %v1052
      %v1723 = vsel %vm1719, %v1690, %v1054
      %v1724 = vsel %vm1719, %v1691, %v1056
      %v1725 = vsel %vm1719, %v1692, %v1058
      %v1726 = vsel %vm1719, %v1693, %v1060
      %v1727 = vsel %vm1719, %v1694, %v1062
      %v1728 = vsel %vm1719, %v1695, %v1064
      %v1729 = vsel %vm1719, %v1696, %v1066
      %v1730 = vsel %vm1719, %v1697, %v1068
      %v1731 = vsel %vm1719, %v1698, %v1070
      %v1732 = vsel %vm1719, %v1699, %v1072
      %v1733 = vsel %vm1719, %v1700, %v1074
      %v1734 = vsel %vm1719, %v1701, %v1076
      %v1735 = vsel %vm1719, %v1702, %v1078
      %v1736 = vsel %vm1719, %v1703, %v1080
      %v1737 = vsel %vm1719, %v1704, %v1082
      %v1738 = vsel %vm1719, %v1705, %v1084
      %v1739 = vsel %vm1719, %v1706, %v1086
      %v1740 = vsel %vm1719, %v1707, %v1088
      %v1741 = vsel %vm1719, %v1708, %v1090
      %v1742 = vsel %vm1719, %v1709, %v1092
      %v1743 = vsel %vm1719, %v1710, %v1094
      %v1744 = vsel %vm1719, %v1711, %v1096
      %v1745 = vsel %vm1719, %v1712, %v1098
      %v1746 = vsel %vm1719, %v1713, %v1100
      %v1747 = vsel %vm1719, %v1714, %v1102
      %v1748 = vsel %vm1719, %v1715, %v1104
      %v1749 = vsel %vm1719, %v1716, %v1106
      %v1750 = vsel %vm1719, %v1717, %v1108
      %v1751 = vsel %vm1719, %v1718, %v1110
      %vm1752 = vcmask 523264
      %v1753 = vsel %vm1752, %v1720, %v1176
      %v1754 = vsel %vm1752, %v1721, %v1178
      %v1755 = vsel %vm1752, %v1722, %v1180
      %v1756 = vsel %vm1752, %v1723, %v1182
      %v1757 = vsel %vm1752, %v1724, %v1184
      %v1758 = vsel %vm1752, %v1725, %v1186
      %v1759 = vsel %vm1752, %v1726, %v1188
      %v1760 = vsel %vm1752, %v1727, %v1190
      %v1761 = vsel %vm1752, %v1728, %v1192
      %v1762 = vsel %vm1752, %v1729, %v1194
      %v1763 = vsel %vm1752, %v1730, %v1196
      %v1764 = vsel %vm1752, %v1731, %v1198
      %v1765 = vsel %vm1752, %v1732, %v1200
      %v1766 = vsel %vm1752, %v1733, %v1202
      %v1767 = vsel %vm1752, %v1734, %v1204
      %v1768 = vsel %vm1752, %v1735, %v1206
      %v1769 = vsel %vm1752, %v1736, %v1208
      %v1770 = vsel %vm1752, %v1737, %v1210
      %v1771 = vsel %vm1752, %v1738, %v1212
      %v1772 = vsel %vm1752, %v1739, %v1214
      %v1773 = vsel %vm1752, %v1740, %v1216
      %v1774 = vsel %vm1752, %v1741, %v1218
      %v1775 = vsel %vm1752, %v1742, %v1220
      %v1776 = vsel %vm1752, %v1743, %v1222
      %v1777 = vsel %vm1752, %v1744, %v1224
      %v1778 = vsel %vm1752, %v1745, %v1226
      %v1779 = vsel %vm1752, %v1746, %v1228
      %v1780 = vsel %vm1752, %v1747, %v1230
      %v1781 = vsel %vm1752, %v1748, %v1232
      %v1782 = vsel %vm1752, %v1749, %v1234
      %v1783 = vsel %vm1752, %v1750, %v1236
      %v1784 = vsel %vm1752, %v1751, %v1238
      %vm1785 = vcmask 654336
      %v1786 = vsel %vm1785, %v1753, %v1304
      %v1787 = vsel %vm1785, %v1754, %v1306
      %v1788 = vsel %vm1785, %v1755, %v1308
      %v1789 = vsel %vm1785, %v1756, %v1310
      %v1790 = vsel %vm1785, %v1757, %v1312
      %v1791 = vsel %vm1785, %v1758, %v1314
      %v1792 = vsel %vm1785, %v1759, %v1316
      %v1793 = vsel %vm1785, %v1760, %v1318
      %v1794 = vsel %vm1785, %v1761, %v1320
      %v1795 = vsel %vm1785, %v1762, %v1322
      %v1796 = vsel %vm1785, %v1763, %v1324
      %v1797 = vsel %vm1785, %v1764, %v1326
      %v1798 = vsel %vm1785, %v1765, %v1328
      %v1799 = vsel %vm1785, %v1766, %v1330
      %v1800 = vsel %vm1785, %v1767, %v1332
      %v1801 = vsel %vm1785, %v1768, %v1334
      %v1802 = vsel %vm1785, %v1769, %v1336
      %v1803 = vsel %vm1785, %v1770, %v1338
      %v1804 = vsel %vm1785, %v1771, %v1340
      %v1805 = vsel %vm1785, %v1772, %v1342
      %v1806 = vsel %vm1785, %v1773, %v1344
      %v1807 = vsel %vm1785, %v1774, %v1346
      %v1808 = vsel %vm1785, %v1775, %v1348
      %v1809 = vsel %vm1785, %v1776, %v1350
      %v1810 = vsel %vm1785, %v1777, %v1352
      %v1811 = vsel %vm1785, %v1778, %v1354
      %v1812 = vsel %vm1785, %v1779, %v1356
      %v1813 = vsel %vm1785, %v1780, %v1358
      %v1814 = vsel %vm1785, %v1781, %v1360
      %v1815 = vsel %vm1785, %v1782, %v1362
      %v1816 = vsel %vm1785, %v1783, %v1364
      %v1817 = vsel %vm1785, %v1784, %v1366
      %vm1818 = vcmask 785408
      %v1819 = vsel %vm1818, %v1786, %v1432
      %v1820 = vsel %vm1818, %v1787, %v1434
      %v1821 = vsel %vm1818, %v1788, %v1436
      %v1822 = vsel %vm1818, %v1789, %v1438
      %v1823 = vsel %vm1818, %v1790, %v1440
      %v1824 = vsel %vm1818, %v1791, %v1442
      %v1825 = vsel %vm1818, %v1792, %v1444
      %v1826 = vsel %vm1818, %v1793, %v1446
      %v1827 = vsel %vm1818, %v1794, %v1448
      %v1828 = vsel %vm1818, %v1795, %v1450
      %v1829 = vsel %vm1818, %v1796, %v1452
      %v1830 = vsel %vm1818, %v1797, %v1454
      %v1831 = vsel %vm1818, %v1798, %v1456
      %v1832 = vsel %vm1818, %v1799, %v1458
      %v1833 = vsel %vm1818, %v1800, %v1460
      %v1834 = vsel %vm1818, %v1801, %v1462
      %v1835 = vsel %vm1818, %v1802, %v1464
      %v1836 = vsel %vm1818, %v1803, %v1466
      %v1837 = vsel %vm1818, %v1804, %v1468
      %v1838 = vsel %vm1818, %v1805, %v1470
      %v1839 = vsel %vm1818, %v1806, %v1472
      %v1840 = vsel %vm1818, %v1807, %v1474
      %v1841 = vsel %vm1818, %v1808, %v1476
      %v1842 = vsel %vm1818, %v1809, %v1478
      %v1843 = vsel %vm1818, %v1810, %v1480
      %v1844 = vsel %vm1818, %v1811, %v1482
      %v1845 = vsel %vm1818, %v1812, %v1484
      %v1846 = vsel %vm1818, %v1813, %v1486
      %v1847 = vsel %vm1818, %v1814, %v1488
      %v1848 = vsel %vm1818, %v1815, %v1490
      %v1849 = vsel %vm1818, %v1816, %v1492
      %v1850 = vsel %vm1818, %v1817, %v1494
      %vm1851 = vcmask 916480
      %v1852 = vsel %vm1851, %v1819, %v1560
      %v1853 = vsel %vm1851, %v1820, %v1562
      %v1854 = vsel %vm1851, %v1821, %v1564
      %v1855 = vsel %vm1851, %v1822, %v1566
      %v1856 = vsel %vm1851, %v1823, %v1568
      %v1857 = vsel %vm1851, %v1824, %v1570
      %v1858 = vsel %vm1851, %v1825, %v1572
      %v1859 = vsel %vm1851, %v1826, %v1574
      %v1860 = vsel %vm1851, %v1827, %v1576
      %v1861 = vsel %vm1851, %v1828, %v1578
      %v1862 = vsel %vm1851, %v1829, %v1580
      %v1863 = vsel %vm1851, %v1830, %v1582
      %v1864 = vsel %vm1851, %v1831, %v1584
      %v1865 = vsel %vm1851, %v1832, %v1586
      %v1866 = vsel %vm1851, %v1833, %v1588
      %v1867 = vsel %vm1851, %v1834, %v1590
      %v1868 = vsel %vm1851, %v1835, %v1592
      %v1869 = vsel %vm1851, %v1836, %v1594
      %v1870 = vsel %vm1851, %v1837, %v1596
      %v1871 = vsel %vm1851, %v1838, %v1598
      %v1872 = vsel %vm1851, %v1839, %v1600
      %v1873 = vsel %vm1851, %v1840, %v1602
      %v1874 = vsel %vm1851, %v1841, %v1604
      %v1875 = vsel %vm1851, %v1842, %v1606
      %v1876 = vsel %vm1851, %v1843, %v1608
      %v1877 = vsel %vm1851, %v1844, %v1610
      %v1878 = vsel %vm1851, %v1845, %v1612
      %v1879 = vsel %vm1851, %v1846, %v1614
      %v1880 = vsel %vm1851, %v1847, %v1616
      %v1881 = vsel %vm1851, %v1848, %v1618
      %v1882 = vsel %vm1851, %v1849, %v1620
      %v1883 = vsel %vm1851, %v1850, %v1622
      %v1884 = vpack.c.bf16 %v1853, %v1852
      %v1885 = vpack.c.bf16 %v728, %v727
      %v1886 = vpack.c.bf16 %v1855, %v1854
      %v1887 = vpack.c.bf16 %v730, %v729
      %v1888 = vpack.c.bf16 %v1857, %v1856
      %v1889 = vpack.c.bf16 %v732, %v731
      %v1890 = vpack.c.bf16 %v1859, %v1858
      %v1891 = vpack.c.bf16 %v734, %v733
      %v1892 = vpack.c.bf16 %v1861, %v1860
      %v1893 = vpack.c.bf16 %v736, %v735
      %v1894 = vpack.c.bf16 %v1863, %v1862
      %v1895 = vpack.c.bf16 %v738, %v737
      %v1896 = vpack.c.bf16 %v1865, %v1864
      %v1897 = vpack.c.bf16 %v740, %v739
      %v1898 = vpack.c.bf16 %v1867, %v1866
      %v1899 = vpack.c.bf16 %v742, %v741
      %v1900 = vpack.c.bf16 %v1869, %v1868
      %v1901 = vpack.c.bf16 %v744, %v743
      %v1902 = vpack.c.bf16 %v1871, %v1870
      %v1903 = vpack.c.bf16 %v746, %v745
      %v1904 = vpack.c.bf16 %v1873, %v1872
      %v1905 = vpack.c.bf16 %v748, %v747
      %v1906 = vpack.c.bf16 %v1875, %v1874
      %v1907 = vpack.c.bf16 %v750, %v749
      %v1908 = vpack.c.bf16 %v1877, %v1876
      %v1909 = vpack.c.bf16 %v752, %v751
      %v1910 = vpack.c.bf16 %v1879, %v1878
      %v1911 = vpack.c.bf16 %v754, %v753
      %v1912 = vpack.c.bf16 %v1881, %v1880
      %v1913 = vpack.c.bf16 %v756, %v755
      %v1914 = vpack.c.bf16 %v1883, %v1882
      %v1915 = vpack.c.bf16 %v758, %v757
      %v1916 = vld [vmem:[%s1] sm:$0xf]
      %v1917 = vld [vmem:[%s1 + $0x4] sm:$0xf]
      %v1918 = vld [vmem:[%s1 + $0x8] sm:$0xf]
      %v1919 = vld [vmem:[%s1 + $0xc] sm:$0xf]
      %v1920 = vld [vmem:[%s1 + $0x10] sm:$0xf]
      %v1921 = vld [vmem:[%s1 + $0x14] sm:$0xf]
      %v1922 = vld [vmem:[%s1 + $0x18] sm:$0xf]
      %v1923 = vld [vmem:[%s1 + $0x1c] sm:$0xf]
      %v1924 = vld [vmem:[%s1 + $0x20] sm:$0xf]
      %v1925 = vld [vmem:[%s1 + $0x24] sm:$0xf]
      %v1926 = vld [vmem:[%s1 + $0x28] sm:$0xf]
      %v1927 = vld [vmem:[%s1 + $0x2c] sm:$0xf]
      %v1928 = vld [vmem:[%s1 + $0x30] sm:$0xf]
      %v1929 = vld [vmem:[%s1 + $0x34] sm:$0xf]
      %v1930 = vld [vmem:[%s1 + $0x38] sm:$0xf]
      %v1931 = vld [vmem:[%s1 + $0x3c] sm:$0xf]
      %v1932 = vld [vmem:[%s1 + $0x40] sm:$0xf]
      %v1933 = vld [vmem:[%s1 + $0x44] sm:$0xf]
      %v1934 = vld [vmem:[%s2] sm:$0x1]
      %v1936 = vlaneseq
      %v1937 = vshrl.u32 %v1936, 7
      %v1938 = vsub.s32 0, %v1937
      %v1939 = vrot.slane %v1934, %v1938
      %v1959 = vunpack.c.l.b16 %v1916
      %v1960 = vunpack.c.l.b16 %v1917
      %v1961 = vunpack.c.l.b16 %v1918
      %v1962 = vunpack.c.l.b16 %v1919
      %v1963 = vunpack.c.l.b16 %v1920
      %v1964 = vunpack.c.l.b16 %v1921
      %v1965 = vunpack.c.l.b16 %v1922
      %v1966 = vunpack.c.l.b16 %v1923
      %v1967 = vunpack.c.l.b16 %v1924
      %v1968 = vunpack.c.l.b16 %v1925
      %v1969 = vunpack.c.l.b16 %v1926
      %v1970 = vunpack.c.l.b16 %v1927
      %v1971 = vunpack.c.l.b16 %v1928
      %v1972 = vunpack.c.l.b16 %v1929
      %v1973 = vunpack.c.l.b16 %v1930
      %v1974 = vunpack.c.l.b16 %v1931
      %v1975 = vunpack.c.l.b16 %v1932
      %v1976 = vunpack.c.l.b16 %v1933
      %v1977 = vpack.c.b16 %v1960, %v1959
      %v1978 = vpack.c.b16 %v1962, %v1961
      %v1979 = vpack.c.b16 %v1964, %v1963
      %v1980 = vpack.c.b16 %v1966, %v1965
      %v1981 = vpack.c.b16 %v1968, %v1967
      %v1982 = vpack.c.b16 %v1970, %v1969
      %v1983 = vpack.c.b16 %v1972, %v1971
      %v1984 = vpack.c.b16 %v1974, %v1973
      %v1985 = vpack.c.b16 %v1976, %v1975
      %v1996 = vsel %vm293, %v1885, 0
      %v1999 = vsel %vm293, %v1887, 0
      %v2002 = vsel %vm293, %v1889, 0
      %v2005 = vsel %vm293, %v1891, 0
      %v2008 = vsel %vm293, %v1893, 0
      %v2011 = vsel %vm293, %v1895, 0
      %v2014 = vsel %vm293, %v1897, 0
      %v2017 = vsel %vm293, %v1899, 0
      %v2020 = vsel %vm293, %v1901, 0
      %v2023 = vsel %vm293, %v1903, 0
      %v2026 = vsel %vm293, %v1905, 0
      %v2029 = vsel %vm293, %v1907, 0
      %v2032 = vsel %vm293, %v1909, 0
      %v2035 = vsel %vm293, %v1911, 0
      %v2038 = vsel %vm293, %v1913, 0
      %v2041 = vsel %vm293, %v1915, 0
      %2043 = vmatprep.subr.bf16.mxu0 0
      %2044 = vmatpush1.bf16.msra.mxu0 %v1977
      %2045 = vmatprep.subr.bf16.mxu0 0
      %2046 = vmatpush1.bf16.msra.mxu0 %v1978
      %2047 = vmatprep.subr.bf16.mxu0 0
      %2048 = vmatpush1.bf16.msra.mxu0 %v1979
      %2049 = vmatprep.subr.bf16.mxu0 0
      %2050 = vmatpush1.bf16.msra.mxu0 %v1980
      %2051 = vmatprep.subr.bf16.mxu0 0
      %2052 = vmatpush1.bf16.msra.mxu0 %v1981
      %2053 = vmatprep.subr.bf16.mxu0 0
      %2054 = vmatpush1.bf16.msra.mxu0 %v1982
      %2055 = vmatprep.subr.bf16.mxu0 0
      %2056 = vmatpush1.bf16.msra.mxu0 %v1983
      %2057 = vmatprep.subr.bf16.mxu0 0
      %2058 = vmatpush1.bf16.msra.mxu0 %v1984
      %2059 = vmatprep.subr.bf16.mxu0 0
      %2060 = vmatpush1.bf16.msra.mxu0 %v1985
      %2061 = vmatprep.subr.bf16.mxu0 0
      %2062 = vmatpush1.bf16.msra.mxu0 0
      %2063 = vmatprep.subr.bf16.mxu0 0
      %2064 = vmatpush1.bf16.msra.mxu0 0
      %2065 = vmatprep.subr.bf16.mxu0 0
      %2066 = vmatpush1.bf16.msra.mxu0 0
      %2067 = vmatprep.subr.bf16.mxu0 0
      %2068 = vmatpush1.bf16.msra.mxu0 0
      %2069 = vmatprep.subr.bf16.mxu0 0
      %2070 = vmatpush1.bf16.msra.mxu0 0
      %2071 = vmatprep.subr.bf16.mxu0 0
      %2072 = vmatpush1.bf16.msra.mxu0 0
      %2073 = vmatprep.subr.bf16.mxu0 0
      %2074 = vmatpush1.bf16.msra.mxu0 0
      %2075 = vmatprep.mubr.bf16.mxu0 %v1996
      %2076 = vmatmul.mubr.bf16.gmra.mrb[0].mxu0 %v1884
      %v2077 = vpop.f32.mrb[0].mxu0
      %v2078 = vadd.f32 %v1939, %v2077
      %v2079 = vpop.f32.mrb[0].mxu0
      %v2080 = vpop.f32.mrb[0].mxu0
      %v2081 = vadd.f32 %v1939, %v2080
      %v2082 = vpop.f32.mrb[0].mxu0
      %2083 = vmatprep.mubr.bf16.mxu0 %v1999
      %2084 = vmatmul.mubr.bf16.gmra.mrb[0].mxu0 %v1886
      %v2085 = vpop.f32.mrb[0].mxu0
      %v2086 = vadd.f32 %v1939, %v2085
      %v2087 = vpop.f32.mrb[0].mxu0
      %v2088 = vpop.f32.mrb[0].mxu0
      %v2089 = vadd.f32 %v1939, %v2088
      %v2090 = vpop.f32.mrb[0].mxu0
      %2091 = vmatprep.mubr.bf16.mxu0 %v2002
      %2092 = vmatmul.mubr.bf16.gmra.mrb[0].mxu0 %v1888
      %v2093 = vpop.f32.mrb[0].mxu0
      %v2094 = vadd.f32 %v1939, %v2093
      %v2095 = vpop.f32.mrb[0].mxu0
      %v2096 = vpop.f32.mrb[0].mxu0
      %v2097 = vadd.f32 %v1939, %v2096
      %v2098 = vpop.f32.mrb[0].mxu0
      %2099 = vmatprep.mubr.bf16.mxu0 %v2005
      %2100 = vmatmul.mubr.bf16.gmra.mrb[0].mxu0 %v1890
      %v2101 = vpop.f32.mrb[0].mxu0
      %v2102 = vadd.f32 %v1939, %v2101
      %v2103 = vpop.f32.mrb[0].mxu0
      %v2104 = vpop.f32.mrb[0].mxu0
      %v2105 = vadd.f32 %v1939, %v2104
      %v2106 = vpop.f32.mrb[0].mxu0
      %2107 = vmatprep.mubr.bf16.mxu0 %v2008
      %2108 = vmatmul.mubr.bf16.gmra.mrb[0].mxu0 %v1892
      %v2109 = vpop.f32.mrb[0].mxu0
      %v2110 = vadd.f32 %v1939, %v2109
      %v2111 = vpop.f32.mrb[0].mxu0
      %v2112 = vpop.f32.mrb[0].mxu0
      %v2113 = vadd.f32 %v1939, %v2112
      %v2114 = vpop.f32.mrb[0].mxu0
      %2115 = vmatprep.mubr.bf16.mxu0 %v2011
      %2116 = vmatmul.mubr.bf16.gmra.mrb[0].mxu0 %v1894
      %v2117 = vpop.f32.mrb[0].mxu0
      %v2118 = vadd.f32 %v1939, %v2117
      %v2119 = vpop.f32.mrb[0].mxu0
      %v2120 = vpop.f32.mrb[0].mxu0
      %v2121 = vadd.f32 %v1939, %v2120
      %v2122 = vpop.f32.mrb[0].mxu0
      %2123 = vmatprep.mubr.bf16.mxu0 %v2014
      %2124 = vmatmul.mubr.bf16.gmra.mrb[0].mxu0 %v1896
      %v2125 = vpop.f32.mrb[0].mxu0
      %v2126 = vadd.f32 %v1939, %v2125
      %v2127 = vpop.f32.mrb[0].mxu0
      %v2128 = vpop.f32.mrb[0].mxu0
      %v2129 = vadd.f32 %v1939, %v2128
      %v2130 = vpop.f32.mrb[0].mxu0
      %2131 = vmatprep.mubr.bf16.mxu0 %v2017
      %2132 = vmatmul.mubr.bf16.gmra.mrb[0].mxu0 %v1898
      %v2133 = vpop.f32.mrb[0].mxu0
      %v2134 = vadd.f32 %v1939, %v2133
      %v2135 = vpop.f32.mrb[0].mxu0
      %v2136 = vpop.f32.mrb[0].mxu0
      %v2137 = vadd.f32 %v1939, %v2136
      %v2138 = vpop.f32.mrb[0].mxu0
      %2139 = vmatprep.mubr.bf16.mxu0 %v2020
      %2140 = vmatmul.mubr.bf16.gmra.mrb[0].mxu0 %v1900
      %v2141 = vpop.f32.mrb[0].mxu0
      %v2142 = vadd.f32 %v1939, %v2141
      %v2143 = vpop.f32.mrb[0].mxu0
      %v2144 = vpop.f32.mrb[0].mxu0
      %v2145 = vadd.f32 %v1939, %v2144
      %v2146 = vpop.f32.mrb[0].mxu0
      %2147 = vmatprep.mubr.bf16.mxu0 %v2023
      %2148 = vmatmul.mubr.bf16.gmra.mrb[0].mxu0 %v1902
      %v2149 = vpop.f32.mrb[0].mxu0
      %v2150 = vadd.f32 %v1939, %v2149
      %v2151 = vpop.f32.mrb[0].mxu0
      %v2152 = vpop.f32.mrb[0].mxu0
      %v2153 = vadd.f32 %v1939, %v2152
      %v2154 = vpop.f32.mrb[0].mxu0
      %2155 = vmatprep.mubr.bf16.mxu0 %v2026
      %2156 = vmatmul.mubr.bf16.gmra.mrb[0].mxu0 %v1904
      %v2157 = vpop.f32.mrb[0].mxu0
      %v2158 = vadd.f32 %v1939, %v2157
      %v2159 = vpop.f32.mrb[0].mxu0
      %v2160 = vpop.f32.mrb[0].mxu0
      %v2161 = vadd.f32 %v1939, %v2160
      %v2162 = vpop.f32.mrb[0].mxu0
      %2163 = vmatprep.mubr.bf16.mxu0 %v2029
      %2164 = vmatmul.mubr.bf16.gmra.mrb[0].mxu0 %v1906
      %v2165 = vpop.f32.mrb[0].mxu0
      %v2166 = vadd.f32 %v1939, %v2165
      %v2167 = vpop.f32.mrb[0].mxu0
      %v2168 = vpop.f32.mrb[0].mxu0
      %v2169 = vadd.f32 %v1939, %v2168
      %v2170 = vpop.f32.mrb[0].mxu0
      %2171 = vmatprep.mubr.bf16.mxu0 %v2032
      %2172 = vmatmul.mubr.bf16.gmra.mrb[0].mxu0 %v1908
      %v2173 = vpop.f32.mrb[0].mxu0
      %v2174 = vadd.f32 %v1939, %v2173
      %v2175 = vpop.f32.mrb[0].mxu0
      %v2176 = vpop.f32.mrb[0].mxu0
      %v2177 = vadd.f32 %v1939, %v2176
      %v2178 = vpop.f32.mrb[0].mxu0
      %2179 = vmatprep.mubr.bf16.mxu0 %v2035
      %2180 = vmatmul.mubr.bf16.gmra.mrb[0].mxu0 %v1910
      %v2181 = vpop.f32.mrb[0].mxu0
      %v2182 = vadd.f32 %v1939, %v2181
      %v2183 = vpop.f32.mrb[0].mxu0
      %v2184 = vpop.f32.mrb[0].mxu0
      %v2185 = vadd.f32 %v1939, %v2184
      %v2186 = vpop.f32.mrb[0].mxu0
      %2187 = vmatprep.mubr.bf16.mxu0 %v2038
      %2188 = vmatmul.mubr.bf16.gmra.mrb[0].mxu0 %v1912
      %v2189 = vpop.f32.mrb[0].mxu0
      %v2190 = vadd.f32 %v1939, %v2189
      %v2191 = vpop.f32.mrb[0].mxu0
      %v2192 = vpop.f32.mrb[0].mxu0
      %v2193 = vadd.f32 %v1939, %v2192
      %v2194 = vpop.f32.mrb[0].mxu0
      %2195 = vmatprep.mubr.bf16.mxu0 %v2041
      %2196 = vmatmul.mubr.bf16.gmra.mrb[0].mxu0 %v1914
      %v2197 = vpop.f32.mrb[0].mxu0
      %v2198 = vadd.f32 %v1939, %v2197
      %v2199 = vpop.f32.mrb[0].mxu0
      %v2200 = vpop.f32.mrb[0].mxu0
      %v2201 = vadd.f32 %v1939, %v2200
      %v2202 = vpop.f32.mrb[0].mxu0
      %2203 = vdwg.mxu0
      %v2204 = vmax.f32 %v2078, 0.0
      %v2205 = vmax.f32 %v2081, 0.0
      %v2206 = vmax.f32 %v2086, 0.0
      %v2207 = vmax.f32 %v2089, 0.0
      %v2208 = vmax.f32 %v2094, 0.0
      %v2209 = vmax.f32 %v2097, 0.0
      %v2210 = vmax.f32 %v2102, 0.0
      %v2211 = vmax.f32 %v2105, 0.0
      %v2212 = vmax.f32 %v2110, 0.0
      %v2213 = vmax.f32 %v2113, 0.0
      %v2214 = vmax.f32 %v2118, 0.0
      %v2215 = vmax.f32 %v2121, 0.0
      %v2216 = vmax.f32 %v2126, 0.0
      %v2217 = vmax.f32 %v2129, 0.0
      %v2218 = vmax.f32 %v2134, 0.0
      %v2219 = vmax.f32 %v2137, 0.0
      %v2220 = vmax.f32 %v2142, 0.0
      %v2221 = vmax.f32 %v2145, 0.0
      %v2222 = vmax.f32 %v2150, 0.0
      %v2223 = vmax.f32 %v2153, 0.0
      %v2224 = vmax.f32 %v2158, 0.0
      %v2225 = vmax.f32 %v2161, 0.0
      %v2226 = vmax.f32 %v2166, 0.0
      %v2227 = vmax.f32 %v2169, 0.0
      %v2228 = vmax.f32 %v2174, 0.0
      %v2229 = vmax.f32 %v2177, 0.0
      %v2230 = vmax.f32 %v2182, 0.0
      %v2231 = vmax.f32 %v2185, 0.0
      %v2232 = vmax.f32 %v2190, 0.0
      %v2233 = vmax.f32 %v2193, 0.0
      %v2234 = vmax.f32 %v2198, 0.0
      %v2235 = vmax.f32 %v2201, 0.0
      %s2236 = scalar_lea.vmem [#allocation3], 24
      %2237 = vst.msk [vmem:[%s2236 + $0x1] sm:$0xff] %vm349, %v2204
      %2238 = vst.msk [vmem:[%s2236 + $0x9] sm:$0xff] %vm349, %v2205
      %2239 = vst.msk [vmem:[%s2236 + $0x19] sm:$0xff] %vm349, %v2206
      %2240 = vst.msk [vmem:[%s2236 + $0x21] sm:$0xff] %vm349, %v2207
      %2241 = vst.msk [vmem:[%s2236 + $0x31] sm:$0xff] %vm349, %v2208
      %2242 = vst.msk [vmem:[%s2236 + $0x39] sm:$0xff] %vm349, %v2209
      %2243 = vst.msk [vmem:[%s2236 + $0x49] sm:$0xff] %vm349, %v2210
      %2244 = vst.msk [vmem:[%s2236 + $0x51] sm:$0xff] %vm349, %v2211
      %2245 = vst.msk [vmem:[%s2236 + $0x61] sm:$0xff] %vm349, %v2212
      %2246 = vst.msk [vmem:[%s2236 + $0x69] sm:$0xff] %vm349, %v2213
      %2247 = vst.msk [vmem:[%s2236 + $0x79] sm:$0xff] %vm349, %v2214
      %2248 = vst.msk [vmem:[%s2236 + $0x81] sm:$0xff] %vm349, %v2215
      %2249 = vst.msk [vmem:[%s2236 + $0x91] sm:$0xff] %vm349, %v2216
      %2250 = vst.msk [vmem:[%s2236 + $0x99] sm:$0xff] %vm349, %v2217
      %2251 = vst.msk [vmem:[%s2236 + $0xa9] sm:$0xff] %vm349, %v2218
      %2252 = vst.msk [vmem:[%s2236 + $0xb1] sm:$0xff] %vm349, %v2219
      %2253 = vst.msk [vmem:[%s2236 + $0xc1] sm:$0xff] %vm349, %v2220
      %2254 = vst.msk [vmem:[%s2236 + $0xc9] sm:$0xff] %vm349, %v2221
      %2255 = vst.msk [vmem:[%s2236 + $0xd9] sm:$0xff] %vm349, %v2222
      %2256 = vst.msk [vmem:[%s2236 + $0xe1] sm:$0xff] %vm349, %v2223
      %2257 = vst.msk [vmem:[%s2236 + $0xf1] sm:$0xff] %vm349, %v2224
      %2258 = vst.msk [vmem:[%s2236 + $0xf9] sm:$0xff] %vm349, %v2225
      %2259 = vst.msk [vmem:[%s2236 + $0x109] sm:$0xff] %vm349, %v2226
      %2260 = vst.msk [vmem:[%s2236 + $0x111] sm:$0xff] %vm349, %v2227
      %2261 = vst.msk [vmem:[%s2236 + $0x121] sm:$0xff] %vm349, %v2228
      %2262 = vst.msk [vmem:[%s2236 + $0x129] sm:$0xff] %vm349, %v2229
      %2263 = vst.msk [vmem:[%s2236 + $0x139] sm:$0xff] %vm349, %v2230
      %2264 = vst.msk [vmem:[%s2236 + $0x141] sm:$0xff] %vm349, %v2231
      %2265 = vst.msk [vmem:[%s2236 + $0x151] sm:$0xff] %vm349, %v2232
      %2266 = vst.msk [vmem:[%s2236 + $0x159] sm:$0xff] %vm349, %v2233
      %2267 = vst.msk [vmem:[%s2236 + $0x169] sm:$0xff] %vm349, %v2234
      %2268 = vst.msk [vmem:[%s2236 + $0x171] sm:$0xff] %vm349, %v2235
      %v2269 = vld [vmem:[#allocation3] sm:$0xff]
      %v2270 = vld [vmem:[#allocation3 + $0x8] sm:$0xff]
      %v2271 = vld [vmem:[#allocation3 + $0x18] sm:$0xff]
      %v2272 = vld [vmem:[#allocation3 + $0x20] sm:$0xff]
      %v2273 = vld [vmem:[#allocation3 + $0x30] sm:$0xff]
      %v2274 = vld [vmem:[#allocation3 + $0x38] sm:$0xff]
      %v2275 = vld [vmem:[#allocation3 + $0x48] sm:$0xff]
      %v2276 = vld [vmem:[#allocation3 + $0x50] sm:$0xff]
      %v2277 = vld [vmem:[#allocation3 + $0x60] sm:$0xff]
      %v2278 = vld [vmem:[#allocation3 + $0x68] sm:$0xff]
      %v2279 = vld [vmem:[#allocation3 + $0x78] sm:$0xff]
      %v2280 = vld [vmem:[#allocation3 + $0x80] sm:$0xff]
      %v2281 = vld [vmem:[#allocation3 + $0x90] sm:$0xff]
      %v2282 = vld [vmem:[#allocation3 + $0x98] sm:$0xff]
      %v2283 = vld [vmem:[#allocation3 + $0xa8] sm:$0xff]
      %v2284 = vld [vmem:[#allocation3 + $0xb0] sm:$0xff]
      %v2285 = vld [vmem:[#allocation3 + $0xc0] sm:$0xff]
      %v2286 = vld [vmem:[#allocation3 + $0xc8] sm:$0xff]
      %v2287 = vld [vmem:[#allocation3 + $0xd8] sm:$0xff]
      %v2288 = vld [vmem:[#allocation3 + $0xe0] sm:$0xff]
      %v2289 = vld [vmem:[#allocation3 + $0xf0] sm:$0xff]
      %v2290 = vld [vmem:[#allocation3 + $0xf8] sm:$0xff]
      %v2291 = vld [vmem:[#allocation3 + $0x108] sm:$0xff]
      %v2292 = vld [vmem:[#allocation3 + $0x110] sm:$0xff]
      %v2293 = vld [vmem:[#allocation3 + $0x120] sm:$0xff]
      %v2294 = vld [vmem:[#allocation3 + $0x128] sm:$0xff]
      %v2295 = vld [vmem:[#allocation3 + $0x138] sm:$0xff]
      %v2296 = vld [vmem:[#allocation3 + $0x140] sm:$0xff]
      %v2297 = vld [vmem:[#allocation3 + $0x150] sm:$0xff]
      %v2298 = vld [vmem:[#allocation3 + $0x158] sm:$0xff]
      %v2299 = vld [vmem:[#allocation3 + $0x168] sm:$0xff]
      %v2300 = vld [vmem:[#allocation3 + $0x170] sm:$0xff]
      %v2301 = vld [vmem:[#allocation3 + $0x1] sm:$0xff]
      %v2302 = vld [vmem:[#allocation3 + $0x9] sm:$0xff]
      %v2303 = vld [vmem:[#allocation3 + $0x19] sm:$0xff]
      %v2304 = vld [vmem:[#allocation3 + $0x21] sm:$0xff]
      %v2305 = vld [vmem:[#allocation3 + $0x31] sm:$0xff]
      %v2306 = vld [vmem:[#allocation3 + $0x39] sm:$0xff]
      %v2307 = vld [vmem:[#allocation3 + $0x49] sm:$0xff]
      %v2308 = vld [vmem:[#allocation3 + $0x51] sm:$0xff]
      %v2309 = vld [vmem:[#allocation3 + $0x61] sm:$0xff]
      %v2310 = vld [vmem:[#allocation3 + $0x69] sm:$0xff]
      %v2311 = vld [vmem:[#allocation3 + $0x79] sm:$0xff]
      %v2312 = vld [vmem:[#allocation3 + $0x81] sm:$0xff]
      %v2313 = vld [vmem:[#allocation3 + $0x91] sm:$0xff]
      %v2314 = vld [vmem:[#allocation3 + $0x99] sm:$0xff]
      %v2315 = vld [vmem:[#allocation3 + $0xa9] sm:$0xff]
      %v2316 = vld [vmem:[#allocation3 + $0xb1] sm:$0xff]
      %v2317 = vld [vmem:[#allocation3 + $0xc1] sm:$0xff]
      %v2318 = vld [vmem:[#allocation3 + $0xc9] sm:$0xff]
      %v2319 = vld [vmem:[#allocation3 + $0xd9] sm:$0xff]
      %v2320 = vld [vmem:[#allocation3 + $0xe1] sm:$0xff]
      %v2321 = vld [vmem:[#allocation3 + $0xf1] sm:$0xff]
      %v2322 = vld [vmem:[#allocation3 + $0xf9] sm:$0xff]
      %v2323 = vld [vmem:[#allocation3 + $0x109] sm:$0xff]
      %v2324 = vld [vmem:[#allocation3 + $0x111] sm:$0xff]
      %v2325 = vld [vmem:[#allocation3 + $0x121] sm:$0xff]
      %v2326 = vld [vmem:[#allocation3 + $0x129] sm:$0xff]
      %v2327 = vld [vmem:[#allocation3 + $0x139] sm:$0xff]
      %v2328 = vld [vmem:[#allocation3 + $0x141] sm:$0xff]
      %v2329 = vld [vmem:[#allocation3 + $0x151] sm:$0xff]
      %v2330 = vld [vmem:[#allocation3 + $0x159] sm:$0xff]
      %v2331 = vld [vmem:[#allocation3 + $0x169] sm:$0xff]
      %v2332 = vld [vmem:[#allocation3 + $0x171] sm:$0xff]
      %v2333 = vld [vmem:[#allocation3 + $0x2] sm:$0xff]
      %v2334 = vld [vmem:[#allocation3 + $0xa] sm:$0xff]
      %v2335 = vld [vmem:[#allocation3 + $0x1a] sm:$0xff]
      %v2336 = vld [vmem:[#allocation3 + $0x22] sm:$0xff]
      %v2337 = vld [vmem:[#allocation3 + $0x32] sm:$0xff]
      %v2338 = vld [vmem:[#allocation3 + $0x3a] sm:$0xff]
      %v2339 = vld [vmem:[#allocation3 + $0x4a] sm:$0xff]
      %v2340 = vld [vmem:[#allocation3 + $0x52] sm:$0xff]
      %v2341 = vld [vmem:[#allocation3 + $0x62] sm:$0xff]
      %v2342 = vld [vmem:[#allocation3 + $0x6a] sm:$0xff]
      %v2343 = vld [vmem:[#allocation3 + $0x7a] sm:$0xff]
      %v2344 = vld [vmem:[#allocation3 + $0x82] sm:$0xff]
      %v2345 = vld [vmem:[#allocation3 + $0x92] sm:$0xff]
      %v2346 = vld [vmem:[#allocation3 + $0x9a] sm:$0xff]
      %v2347 = vld [vmem:[#allocation3 + $0xaa] sm:$0xff]
      %v2348 = vld [vmem:[#allocation3 + $0xb2] sm:$0xff]
      %v2349 = vld [vmem:[#allocation3 + $0xc2] sm:$0xff]
      %v2350 = vld [vmem:[#allocation3 + $0xca] sm:$0xff]
      %v2351 = vld [vmem:[#allocation3 + $0xda] sm:$0xff]
      %v2352 = vld [vmem:[#allocation3 + $0xe2] sm:$0xff]
      %v2353 = vld [vmem:[#allocation3 + $0xf2] sm:$0xff]
      %v2354 = vld [vmem:[#allocation3 + $0xfa] sm:$0xff]
      %v2355 = vld [vmem:[#allocation3 + $0x10a] sm:$0xff]
      %v2356 = vld [vmem:[#allocation3 + $0x112] sm:$0xff]
      %v2357 = vld [vmem:[#allocation3 + $0x122] sm:$0xff]
      %v2358 = vld [vmem:[#allocation3 + $0x12a] sm:$0xff]
      %v2359 = vld [vmem:[#allocation3 + $0x13a] sm:$0xff]
      %v2360 = vld [vmem:[#allocation3 + $0x142] sm:$0xff]
      %v2361 = vld [vmem:[#allocation3 + $0x152] sm:$0xff]
      %v2362 = vld [vmem:[#allocation3 + $0x15a] sm:$0xff]
      %v2363 = vld [vmem:[#allocation3 + $0x16a] sm:$0xff]
      %v2364 = vld [vmem:[#allocation3 + $0x172] sm:$0xff]
      %v2365 = vld [vmem:[%s2236] sm:$0xff]
      %v2366 = vld [vmem:[%s2236 + $0x8] sm:$0xff]
      %v2367 = vld [vmem:[%s2236 + $0x18] sm:$0xff]
      %v2368 = vld [vmem:[%s2236 + $0x20] sm:$0xff]
      %v2369 = vld [vmem:[%s2236 + $0x30] sm:$0xff]
      %v2370 = vld [vmem:[%s2236 + $0x38] sm:$0xff]
      %v2371 = vld [vmem:[%s2236 + $0x48] sm:$0xff]
      %v2372 = vld [vmem:[%s2236 + $0x50] sm:$0xff]
      %v2373 = vld [vmem:[%s2236 + $0x60] sm:$0xff]
      %v2374 = vld [vmem:[%s2236 + $0x68] sm:$0xff]
      %v2375 = vld [vmem:[%s2236 + $0x78] sm:$0xff]
      %v2376 = vld [vmem:[%s2236 + $0x80] sm:$0xff]
      %v2377 = vld [vmem:[%s2236 + $0x90] sm:$0xff]
      %v2378 = vld [vmem:[%s2236 + $0x98] sm:$0xff]
      %v2379 = vld [vmem:[%s2236 + $0xa8] sm:$0xff]
      %v2380 = vld [vmem:[%s2236 + $0xb0] sm:$0xff]
      %v2381 = vld [vmem:[%s2236 + $0xc0] sm:$0xff]
      %v2382 = vld [vmem:[%s2236 + $0xc8] sm:$0xff]
      %v2383 = vld [vmem:[%s2236 + $0xd8] sm:$0xff]
      %v2384 = vld [vmem:[%s2236 + $0xe0] sm:$0xff]
      %v2385 = vld [vmem:[%s2236 + $0xf0] sm:$0xff]
      %v2386 = vld [vmem:[%s2236 + $0xf8] sm:$0xff]
      %v2387 = vld [vmem:[%s2236 + $0x108] sm:$0xff]
      %v2388 = vld [vmem:[%s2236 + $0x110] sm:$0xff]
      %v2389 = vld [vmem:[%s2236 + $0x120] sm:$0xff]
      %v2390 = vld [vmem:[%s2236 + $0x128] sm:$0xff]
      %v2391 = vld [vmem:[%s2236 + $0x138] sm:$0xff]
      %v2392 = vld [vmem:[%s2236 + $0x140] sm:$0xff]
      %v2393 = vld [vmem:[%s2236 + $0x150] sm:$0xff]
      %v2394 = vld [vmem:[%s2236 + $0x158] sm:$0xff]
      %v2395 = vld [vmem:[%s2236 + $0x168] sm:$0xff]
      %v2396 = vld [vmem:[%s2236 + $0x170] sm:$0xff]
      %v2397 = vld [vmem:[%s2236 + $0x1] sm:$0xff]
      %v2398 = vld [vmem:[%s2236 + $0x9] sm:$0xff]
      %v2399 = vld [vmem:[%s2236 + $0x19] sm:$0xff]
      %v2400 = vld [vmem:[%s2236 + $0x21] sm:$0xff]
      %v2401 = vld [vmem:[%s2236 + $0x31] sm:$0xff]
      %v2402 = vld [vmem:[%s2236 + $0x39] sm:$0xff]
      %v2403 = vld [vmem:[%s2236 + $0x49] sm:$0xff]
      %v2404 = vld [vmem:[%s2236 + $0x51] sm:$0xff]
      %v2405 = vld [vmem:[%s2236 + $0x61] sm:$0xff]
      %v2406 = vld [vmem:[%s2236 + $0x69] sm:$0xff]
      %v2407 = vld [vmem:[%s2236 + $0x79] sm:$0xff]
      %v2408 = vld [vmem:[%s2236 + $0x81] sm:$0xff]
      %v2409 = vld [vmem:[%s2236 + $0x91] sm:$0xff]
      %v2410 = vld [vmem:[%s2236 + $0x99] sm:$0xff]
      %v2411 = vld [vmem:[%s2236 + $0xa9] sm:$0xff]
      %v2412 = vld [vmem:[%s2236 + $0xb1] sm:$0xff]
      %v2413 = vld [vmem:[%s2236 + $0xc1] sm:$0xff]
      %v2414 = vld [vmem:[%s2236 + $0xc9] sm:$0xff]
      %v2415 = vld [vmem:[%s2236 + $0xd9] sm:$0xff]
      %v2416 = vld [vmem:[%s2236 + $0xe1] sm:$0xff]
      %v2417 = vld [vmem:[%s2236 + $0xf1] sm:$0xff]
      %v2418 = vld [vmem:[%s2236 + $0xf9] sm:$0xff]
      %v2419 = vld [vmem:[%s2236 + $0x109] sm:$0xff]
      %v2420 = vld [vmem:[%s2236 + $0x111] sm:$0xff]
      %v2421 = vld [vmem:[%s2236 + $0x121] sm:$0xff]
      %v2422 = vld [vmem:[%s2236 + $0x129] sm:$0xff]
      %v2423 = vld [vmem:[%s2236 + $0x139] sm:$0xff]
      %v2424 = vld [vmem:[%s2236 + $0x141] sm:$0xff]
      %v2425 = vld [vmem:[%s2236 + $0x151] sm:$0xff]
      %v2426 = vld [vmem:[%s2236 + $0x159] sm:$0xff]
      %v2427 = vld [vmem:[%s2236 + $0x169] sm:$0xff]
      %v2428 = vld [vmem:[%s2236 + $0x171] sm:$0xff]
      %v2429 = vld [vmem:[%s2236 + $0x2] sm:$0xff]
      %v2430 = vld [vmem:[%s2236 + $0xa] sm:$0xff]
      %v2431 = vld [vmem:[%s2236 + $0x1a] sm:$0xff]
      %v2432 = vld [vmem:[%s2236 + $0x22] sm:$0xff]
      %v2433 = vld [vmem:[%s2236 + $0x32] sm:$0xff]
      %v2434 = vld [vmem:[%s2236 + $0x3a] sm:$0xff]
      %v2435 = vld [vmem:[%s2236 + $0x4a] sm:$0xff]
      %v2436 = vld [vmem:[%s2236 + $0x52] sm:$0xff]
      %v2437 = vld [vmem:[%s2236 + $0x62] sm:$0xff]
      %v2438 = vld [vmem:[%s2236 + $0x6a] sm:$0xff]
      %v2439 = vld [vmem:[%s2236 + $0x7a] sm:$0xff]
      %v2440 = vld [vmem:[%s2236 + $0x82] sm:$0xff]
      %v2441 = vld [vmem:[%s2236 + $0x92] sm:$0xff]
      %v2442 = vld [vmem:[%s2236 + $0x9a] sm:$0xff]
      %v2443 = vld [vmem:[%s2236 + $0xaa] sm:$0xff]
      %v2444 = vld [vmem:[%s2236 + $0xb2] sm:$0xff]
      %v2445 = vld [vmem:[%s2236 + $0xc2] sm:$0xff]
      %v2446 = vld [vmem:[%s2236 + $0xca] sm:$0xff]
      %v2447 = vld [vmem:[%s2236 + $0xda] sm:$0xff]
      %v2448 = vld [vmem:[%s2236 + $0xe2] sm:$0xff]
      %v2449 = vld [vmem:[%s2236 + $0xf2] sm:$0xff]
      %v2450 = vld [vmem:[%s2236 + $0xfa] sm:$0xff]
      %v2451 = vld [vmem:[%s2236 + $0x10a] sm:$0xff]
      %v2452 = vld [vmem:[%s2236 + $0x112] sm:$0xff]
      %v2453 = vld [vmem:[%s2236 + $0x122] sm:$0xff]
      %v2454 = vld [vmem:[%s2236 + $0x12a] sm:$0xff]
      %v2455 = vld [vmem:[%s2236 + $0x13a] sm:$0xff]
      %v2456 = vld [vmem:[%s2236 + $0x142] sm:$0xff]
      %v2457 = vld [vmem:[%s2236 + $0x152] sm:$0xff]
      %v2458 = vld [vmem:[%s2236 + $0x15a] sm:$0xff]
      %v2459 = vld [vmem:[%s2236 + $0x16a] sm:$0xff]
      %v2460 = vld [vmem:[%s2236 + $0x172] sm:$0xff]
      %s2461 = scalar_lea.vmem [#allocation3], 48
      %v2462 = vld [vmem:[%s2461] sm:$0xff]
      %v2463 = vld [vmem:[%s2461 + $0x8] sm:$0xff]
      %v2464 = vld [vmem:[%s2461 + $0x18] sm:$0xff]
      %v2465 = vld [vmem:[%s2461 + $0x20] sm:$0xff]
      %v2466 = vld [vmem:[%s2461 + $0x30] sm:$0xff]
      %v2467 = vld [vmem:[%s2461 + $0x38] sm:$0xff]
      %v2468 = vld [vmem:[%s2461 + $0x48] sm:$0xff]
      %v2469 = vld [vmem:[%s2461 + $0x50] sm:$0xff]
      %v2470 = vld [vmem:[%s2461 + $0x60] sm:$0xff]
      %v2471 = vld [vmem:[%s2461 + $0x68] sm:$0xff]
      %v2472 = vld [vmem:[%s2461 + $0x78] sm:$0xff]
      %v2473 = vld [vmem:[%s2461 + $0x80] sm:$0xff]
      %v2474 = vld [vmem:[%s2461 + $0x90] sm:$0xff]
      %v2475 = vld [vmem:[%s2461 + $0x98] sm:$0xff]
      %v2476 = vld [vmem:[%s2461 + $0xa8] sm:$0xff]
      %v2477 = vld [vmem:[%s2461 + $0xb0] sm:$0xff]
      %v2478 = vld [vmem:[%s2461 + $0xc0] sm:$0xff]
      %v2479 = vld [vmem:[%s2461 + $0xc8] sm:$0xff]
      %v2480 = vld [vmem:[%s2461 + $0xd8] sm:$0xff]
      %v2481 = vld [vmem:[%s2461 + $0xe0] sm:$0xff]
      %v2482 = vld [vmem:[%s2461 + $0xf0] sm:$0xff]
      %v2483 = vld [vmem:[%s2461 + $0xf8] sm:$0xff]
      %v2484 = vld [vmem:[%s2461 + $0x108] sm:$0xff]
      %v2485 = vld [vmem:[%s2461 + $0x110] sm:$0xff]
      %v2486 = vld [vmem:[%s2461 + $0x120] sm:$0xff]
      %v2487 = vld [vmem:[%s2461 + $0x128] sm:$0xff]
      %v2488 = vld [vmem:[%s2461 + $0x138] sm:$0xff]
      %v2489 = vld [vmem:[%s2461 + $0x140] sm:$0xff]
      %v2490 = vld [vmem:[%s2461 + $0x150] sm:$0xff]
      %v2491 = vld [vmem:[%s2461 + $0x158] sm:$0xff]
      %v2492 = vld [vmem:[%s2461 + $0x168] sm:$0xff]
      %v2493 = vld [vmem:[%s2461 + $0x170] sm:$0xff]
      %v2494 = vld [vmem:[%s2461 + $0x1] sm:$0xff]
      %v2495 = vld [vmem:[%s2461 + $0x9] sm:$0xff]
      %v2496 = vld [vmem:[%s2461 + $0x19] sm:$0xff]
      %v2497 = vld [vmem:[%s2461 + $0x21] sm:$0xff]
      %v2498 = vld [vmem:[%s2461 + $0x31] sm:$0xff]
      %v2499 = vld [vmem:[%s2461 + $0x39] sm:$0xff]
      %v2500 = vld [vmem:[%s2461 + $0x49] sm:$0xff]
      %v2501 = vld [vmem:[%s2461 + $0x51] sm:$0xff]
      %v2502 = vld [vmem:[%s2461 + $0x61] sm:$0xff]
      %v2503 = vld [vmem:[%s2461 + $0x69] sm:$0xff]
      %v2504 = vld [vmem:[%s2461 + $0x79] sm:$0xff]
      %v2505 = vld [vmem:[%s2461 + $0x81] sm:$0xff]
      %v2506 = vld [vmem:[%s2461 + $0x91] sm:$0xff]
      %v2507 = vld [vmem:[%s2461 + $0x99] sm:$0xff]
      %v2508 = vld [vmem:[%s2461 + $0xa9] sm:$0xff]
      %v2509 = vld [vmem:[%s2461 + $0xb1] sm:$0xff]
      %v2510 = vld [vmem:[%s2461 + $0xc1] sm:$0xff]
      %v2511 = vld [vmem:[%s2461 + $0xc9] sm:$0xff]
      %v2512 = vld [vmem:[%s2461 + $0xd9] sm:$0xff]
      %v2513 = vld [vmem:[%s2461 + $0xe1] sm:$0xff]
      %v2514 = vld [vmem:[%s2461 + $0xf1] sm:$0xff]
      %v2515 = vld [vmem:[%s2461 + $0xf9] sm:$0xff]
      %v2516 = vld [vmem:[%s2461 + $0x109] sm:$0xff]
      %v2517 = vld [vmem:[%s2461 + $0x111] sm:$0xff]
      %v2518 = vld [vmem:[%s2461 + $0x121] sm:$0xff]
      %v2519 = vld [vmem:[%s2461 + $0x129] sm:$0xff]
      %v2520 = vld [vmem:[%s2461 + $0x139] sm:$0xff]
      %v2521 = vld [vmem:[%s2461 + $0x141] sm:$0xff]
      %v2522 = vld [vmem:[%s2461 + $0x151] sm:$0xff]
      %v2523 = vld [vmem:[%s2461 + $0x159] sm:$0xff]
      %v2524 = vld [vmem:[%s2461 + $0x169] sm:$0xff]
      %v2525 = vld [vmem:[%s2461 + $0x171] sm:$0xff]
      %v2526 = vld [vmem:[%s2461 + $0x2] sm:$0xff]
      %v2527 = vld [vmem:[%s2461 + $0xa] sm:$0xff]
      %v2528 = vld [vmem:[%s2461 + $0x1a] sm:$0xff]
      %v2529 = vld [vmem:[%s2461 + $0x22] sm:$0xff]
      %v2530 = vld [vmem:[%s2461 + $0x32] sm:$0xff]
      %v2531 = vld [vmem:[%s2461 + $0x3a] sm:$0xff]
      %v2532 = vld [vmem:[%s2461 + $0x4a] sm:$0xff]
      %v2533 = vld [vmem:[%s2461 + $0x52] sm:$0xff]
      %v2534 = vld [vmem:[%s2461 + $0x62] sm:$0xff]
      %v2535 = vld [vmem:[%s2461 + $0x6a] sm:$0xff]
      %v2536 = vld [vmem:[%s2461 + $0x7a] sm:$0xff]
      %v2537 = vld [vmem:[%s2461 + $0x82] sm:$0xff]
      %v2538 = vld [vmem:[%s2461 + $0x92] sm:$0xff]
      %v2539 = vld [vmem:[%s2461 + $0x9a] sm:$0xff]
      %v2540 = vld [vmem:[%s2461 + $0xaa] sm:$0xff]
      %v2541 = vld [vmem:[%s2461 + $0xb2] sm:$0xff]
      %v2542 = vld [vmem:[%s2461 + $0xc2] sm:$0xff]
      %v2543 = vld [vmem:[%s2461 + $0xca] sm:$0xff]
      %v2544 = vld [vmem:[%s2461 + $0xda] sm:$0xff]
      %v2545 = vld [vmem:[%s2461 + $0xe2] sm:$0xff]
      %v2546 = vld [vmem:[%s2461 + $0xf2] sm:$0xff]
      %v2547 = vld [vmem:[%s2461 + $0xfa] sm:$0xff]
      %v2548 = vld [vmem:[%s2461 + $0x10a] sm:$0xff]
      %v2549 = vld [vmem:[%s2461 + $0x112] sm:$0xff]
      %v2550 = vld [vmem:[%s2461 + $0x122] sm:$0xff]
      %v2551 = vld [vmem:[%s2461 + $0x12a] sm:$0xff]
      %v2552 = vld [vmem:[%s2461 + $0x13a] sm:$0xff]
      %v2553 = vld [vmem:[%s2461 + $0x142] sm:$0xff]
      %v2554 = vld [vmem:[%s2461 + $0x152] sm:$0xff]
      %v2555 = vld [vmem:[%s2461 + $0x15a] sm:$0xff]
      %v2556 = vld [vmem:[%s2461 + $0x16a] sm:$0xff]
      %v2557 = vld [vmem:[%s2461 + $0x172] sm:$0xff]
      %2590 = vrot.lane.b32.xlu0 %v2301, 32
      %v2591 = vpop.permute.xlu0 %2590
      %2592 = vrot.lane.b32.xlu0 %v2302, 32
      %v2593 = vpop.permute.xlu0 %2592
      %2594 = vrot.lane.b32.xlu0 %v2303, 32
      %v2595 = vpop.permute.xlu0 %2594
      %2596 = vrot.lane.b32.xlu0 %v2304, 32
      %v2597 = vpop.permute.xlu0 %2596
      %2598 = vrot.lane.b32.xlu0 %v2305, 32
      %v2599 = vpop.permute.xlu0 %2598
      %2600 = vrot.lane.b32.xlu0 %v2306, 32
      %v2601 = vpop.permute.xlu0 %2600
      %2602 = vrot.lane.b32.xlu0 %v2307, 32
      %v2603 = vpop.permute.xlu0 %2602
      %2604 = vrot.lane.b32.xlu0 %v2308, 32
      %v2605 = vpop.permute.xlu0 %2604
      %2606 = vrot.lane.b32.xlu0 %v2309, 32
      %v2607 = vpop.permute.xlu0 %2606
      %2608 = vrot.lane.b32.xlu0 %v2310, 32
      %v2609 = vpop.permute.xlu0 %2608
      %2610 = vrot.lane.b32.xlu0 %v2311, 32
      %v2611 = vpop.permute.xlu0 %2610
      %2612 = vrot.lane.b32.xlu0 %v2312, 32
      %v2613 = vpop.permute.xlu0 %2612
      %2614 = vrot.lane.b32.xlu0 %v2313, 32
      %v2615 = vpop.permute.xlu0 %2614
      %2616 = vrot.lane.b32.xlu0 %v2314, 32
      %v2617 = vpop.permute.xlu0 %2616
      %2618 = vrot.lane.b32.xlu0 %v2315, 32
      %v2619 = vpop.permute.xlu0 %2618
      %2620 = vrot.lane.b32.xlu0 %v2316, 32
      %v2621 = vpop.permute.xlu0 %2620
      %2622 = vrot.lane.b32.xlu0 %v2317, 32
      %v2623 = vpop.permute.xlu0 %2622
      %2624 = vrot.lane.b32.xlu0 %v2318, 32
      %v2625 = vpop.permute.xlu0 %2624
      %2626 = vrot.lane.b32.xlu0 %v2319, 32
      %v2627 = vpop.permute.xlu0 %2626
      %2628 = vrot.lane.b32.xlu0 %v2320, 32
      %v2629 = vpop.permute.xlu0 %2628
      %2630 = vrot.lane.b32.xlu0 %v2321, 32
      %v2631 = vpop.permute.xlu0 %2630
      %2632 = vrot.lane.b32.xlu0 %v2322, 32
      %v2633 = vpop.permute.xlu0 %2632
      %2634 = vrot.lane.b32.xlu0 %v2323, 32
      %v2635 = vpop.permute.xlu0 %2634
      %2636 = vrot.lane.b32.xlu0 %v2324, 32
      %v2637 = vpop.permute.xlu0 %2636
      %2638 = vrot.lane.b32.xlu0 %v2325, 32
      %v2639 = vpop.permute.xlu0 %2638
      %2640 = vrot.lane.b32.xlu0 %v2326, 32
      %v2641 = vpop.permute.xlu0 %2640
      %2642 = vrot.lane.b32.xlu0 %v2327, 32
      %v2643 = vpop.permute.xlu0 %2642
      %2644 = vrot.lane.b32.xlu0 %v2328, 32
      %v2645 = vpop.permute.xlu0 %2644
      %2646 = vrot.lane.b32.xlu0 %v2329, 32
      %v2647 = vpop.permute.xlu0 %2646
      %2648 = vrot.lane.b32.xlu0 %v2330, 32
      %v2649 = vpop.permute.xlu0 %2648
      %2650 = vrot.lane.b32.xlu0 %v2331, 32
      %v2651 = vpop.permute.xlu0 %2650
      %2652 = vrot.lane.b32.xlu0 %v2332, 32
      %v2653 = vpop.permute.xlu0 %2652
      %2718 = vrot.lane.b32.xlu0 %v2333, 64
      %v2719 = vpop.permute.xlu0 %2718
      %2720 = vrot.lane.b32.xlu0 %v2334, 64
      %v2721 = vpop.permute.xlu0 %2720
      %2722 = vrot.lane.b32.xlu0 %v2335, 64
      %v2723 = vpop.permute.xlu0 %2722
      %2724 = vrot.lane.b32.xlu0 %v2336, 64
      %v2725 = vpop.permute.xlu0 %2724
      %2726 = vrot.lane.b32.xlu0 %v2337, 64
      %v2727 = vpop.permute.xlu0 %2726
      %2728 = vrot.lane.b32.xlu0 %v2338, 64
      %v2729 = vpop.permute.xlu0 %2728
      %2730 = vrot.lane.b32.xlu0 %v2339, 64
      %v2731 = vpop.permute.xlu0 %2730
      %2732 = vrot.lane.b32.xlu0 %v2340, 64
      %v2733 = vpop.permute.xlu0 %2732
      %2734 = vrot.lane.b32.xlu0 %v2341, 64
      %v2735 = vpop.permute.xlu0 %2734
      %2736 = vrot.lane.b32.xlu0 %v2342, 64
      %v2737 = vpop.permute.xlu0 %2736
      %2738 = vrot.lane.b32.xlu0 %v2343, 64
      %v2739 = vpop.permute.xlu0 %2738
      %2740 = vrot.lane.b32.xlu0 %v2344, 64
      %v2741 = vpop.permute.xlu0 %2740
      %2742 = vrot.lane.b32.xlu0 %v2345, 64
      %v2743 = vpop.permute.xlu0 %2742
      %2744 = vrot.lane.b32.xlu0 %v2346, 64
      %v2745 = vpop.permute.xlu0 %2744
      %2746 = vrot.lane.b32.xlu0 %v2347, 64
      %v2747 = vpop.permute.xlu0 %2746
      %2748 = vrot.lane.b32.xlu0 %v2348, 64
      %v2749 = vpop.permute.xlu0 %2748
      %2750 = vrot.lane.b32.xlu0 %v2349, 64
      %v2751 = vpop.permute.xlu0 %2750
      %2752 = vrot.lane.b32.xlu0 %v2350, 64
      %v2753 = vpop.permute.xlu0 %2752
      %2754 = vrot.lane.b32.xlu0 %v2351, 64
      %v2755 = vpop.permute.xlu0 %2754
      %2756 = vrot.lane.b32.xlu0 %v2352, 64
      %v2757 = vpop.permute.xlu0 %2756
      %2758 = vrot.lane.b32.xlu0 %v2353, 64
      %v2759 = vpop.permute.xlu0 %2758
      %2760 = vrot.lane.b32.xlu0 %v2354, 64
      %v2761 = vpop.permute.xlu0 %2760
      %2762 = vrot.lane.b32.xlu0 %v2355, 64
      %v2763 = vpop.permute.xlu0 %2762
      %2764 = vrot.lane.b32.xlu0 %v2356, 64
      %v2765 = vpop.permute.xlu0 %2764
      %2766 = vrot.lane.b32.xlu0 %v2357, 64
      %v2767 = vpop.permute.xlu0 %2766
      %2768 = vrot.lane.b32.xlu0 %v2358, 64
      %v2769 = vpop.permute.xlu0 %2768
      %2770 = vrot.lane.b32.xlu0 %v2359, 64
      %v2771 = vpop.permute.xlu0 %2770
      %2772 = vrot.lane.b32.xlu0 %v2360, 64
      %v2773 = vpop.permute.xlu0 %2772
      %2774 = vrot.lane.b32.xlu0 %v2361, 64
      %v2775 = vpop.permute.xlu0 %2774
      %2776 = vrot.lane.b32.xlu0 %v2362, 64
      %v2777 = vpop.permute.xlu0 %2776
      %2778 = vrot.lane.b32.xlu0 %v2363, 64
      %v2779 = vpop.permute.xlu0 %2778
      %2780 = vrot.lane.b32.xlu0 %v2364, 64
      %v2781 = vpop.permute.xlu0 %2780
      %2846 = vrot.lane.b32.xlu0 %v2365, 96
      %v2847 = vpop.permute.xlu0 %2846
      %2848 = vrot.lane.b32.xlu0 %v2366, 96
      %v2849 = vpop.permute.xlu0 %2848
      %2850 = vrot.lane.b32.xlu0 %v2367, 96
      %v2851 = vpop.permute.xlu0 %2850
      %2852 = vrot.lane.b32.xlu0 %v2368, 96
      %v2853 = vpop.permute.xlu0 %2852
      %2854 = vrot.lane.b32.xlu0 %v2369, 96
      %v2855 = vpop.permute.xlu0 %2854
      %2856 = vrot.lane.b32.xlu0 %v2370, 96
      %v2857 = vpop.permute.xlu0 %2856
      %2858 = vrot.lane.b32.xlu0 %v2371, 96
      %v2859 = vpop.permute.xlu0 %2858
      %2860 = vrot.lane.b32.xlu0 %v2372, 96
      %v2861 = vpop.permute.xlu0 %2860
      %2862 = vrot.lane.b32.xlu0 %v2373, 96
      %v2863 = vpop.permute.xlu0 %2862
      %2864 = vrot.lane.b32.xlu0 %v2374, 96
      %v2865 = vpop.permute.xlu0 %2864
      %2866 = vrot.lane.b32.xlu0 %v2375, 96
      %v2867 = vpop.permute.xlu0 %2866
      %2868 = vrot.lane.b32.xlu0 %v2376, 96
      %v2869 = vpop.permute.xlu0 %2868
      %2870 = vrot.lane.b32.xlu0 %v2377, 96
      %v2871 = vpop.permute.xlu0 %2870
      %2872 = vrot.lane.b32.xlu0 %v2378, 96
      %v2873 = vpop.permute.xlu0 %2872
      %2874 = vrot.lane.b32.xlu0 %v2379, 96
      %v2875 = vpop.permute.xlu0 %2874
      %2876 = vrot.lane.b32.xlu0 %v2380, 96
      %v2877 = vpop.permute.xlu0 %2876
      %2878 = vrot.lane.b32.xlu0 %v2381, 96
      %v2879 = vpop.permute.xlu0 %2878
      %2880 = vrot.lane.b32.xlu0 %v2382, 96
      %v2881 = vpop.permute.xlu0 %2880
      %2882 = vrot.lane.b32.xlu0 %v2383, 96
      %v2883 = vpop.permute.xlu0 %2882
      %2884 = vrot.lane.b32.xlu0 %v2384, 96
      %v2885 = vpop.permute.xlu0 %2884
      %2886 = vrot.lane.b32.xlu0 %v2385, 96
      %v2887 = vpop.permute.xlu0 %2886
      %2888 = vrot.lane.b32.xlu0 %v2386, 96
      %v2889 = vpop.permute.xlu0 %2888
      %2890 = vrot.lane.b32.xlu0 %v2387, 96
      %v2891 = vpop.permute.xlu0 %2890
      %2892 = vrot.lane.b32.xlu0 %v2388, 96
      %v2893 = vpop.permute.xlu0 %2892
      %2894 = vrot.lane.b32.xlu0 %v2389, 96
      %v2895 = vpop.permute.xlu0 %2894
      %2896 = vrot.lane.b32.xlu0 %v2390, 96
      %v2897 = vpop.permute.xlu0 %2896
      %2898 = vrot.lane.b32.xlu0 %v2391, 96
      %v2899 = vpop.permute.xlu0 %2898
      %2900 = vrot.lane.b32.xlu0 %v2392, 96
      %v2901 = vpop.permute.xlu0 %2900
      %2902 = vrot.lane.b32.xlu0 %v2393, 96
      %v2903 = vpop.permute.xlu0 %2902
      %2904 = vrot.lane.b32.xlu0 %v2394, 96
      %v2905 = vpop.permute.xlu0 %2904
      %2906 = vrot.lane.b32.xlu0 %v2395, 96
      %v2907 = vpop.permute.xlu0 %2906
      %2908 = vrot.lane.b32.xlu0 %v2396, 96
      %v2909 = vpop.permute.xlu0 %2908
      %2974 = vrot.lane.b32.xlu0 %v2429, 32
      %v2975 = vpop.permute.xlu0 %2974
      %2976 = vrot.lane.b32.xlu0 %v2430, 32
      %v2977 = vpop.permute.xlu0 %2976
      %2978 = vrot.lane.b32.xlu0 %v2431, 32
      %v2979 = vpop.permute.xlu0 %2978
      %2980 = vrot.lane.b32.xlu0 %v2432, 32
      %v2981 = vpop.permute.xlu0 %2980
      %2982 = vrot.lane.b32.xlu0 %v2433, 32
      %v2983 = vpop.permute.xlu0 %2982
      %2984 = vrot.lane.b32.xlu0 %v2434, 32
      %v2985 = vpop.permute.xlu0 %2984
      %2986 = vrot.lane.b32.xlu0 %v2435, 32
      %v2987 = vpop.permute.xlu0 %2986
      %2988 = vrot.lane.b32.xlu0 %v2436, 32
      %v2989 = vpop.permute.xlu0 %2988
      %2990 = vrot.lane.b32.xlu0 %v2437, 32
      %v2991 = vpop.permute.xlu0 %2990
      %2992 = vrot.lane.b32.xlu0 %v2438, 32
      %v2993 = vpop.permute.xlu0 %2992
      %2994 = vrot.lane.b32.xlu0 %v2439, 32
      %v2995 = vpop.permute.xlu0 %2994
      %2996 = vrot.lane.b32.xlu0 %v2440, 32
      %v2997 = vpop.permute.xlu0 %2996
      %2998 = vrot.lane.b32.xlu0 %v2441, 32
      %v2999 = vpop.permute.xlu0 %2998
      %3000 = vrot.lane.b32.xlu0 %v2442, 32
      %v3001 = vpop.permute.xlu0 %3000
      %3002 = vrot.lane.b32.xlu0 %v2443, 32
      %v3003 = vpop.permute.xlu0 %3002
      %3004 = vrot.lane.b32.xlu0 %v2444, 32
      %v3005 = vpop.permute.xlu0 %3004
      %3006 = vrot.lane.b32.xlu0 %v2445, 32
      %v3007 = vpop.permute.xlu0 %3006
      %3008 = vrot.lane.b32.xlu0 %v2446, 32
      %v3009 = vpop.permute.xlu0 %3008
      %3010 = vrot.lane.b32.xlu0 %v2447, 32
      %v3011 = vpop.permute.xlu0 %3010
      %3012 = vrot.lane.b32.xlu0 %v2448, 32
      %v3013 = vpop.permute.xlu0 %3012
      %3014 = vrot.lane.b32.xlu0 %v2449, 32
      %v3015 = vpop.permute.xlu0 %3014
      %3016 = vrot.lane.b32.xlu0 %v2450, 32
      %v3017 = vpop.permute.xlu0 %3016
      %3018 = vrot.lane.b32.xlu0 %v2451, 32
      %v3019 = vpop.permute.xlu0 %3018
      %3020 = vrot.lane.b32.xlu0 %v2452, 32
      %v3021 = vpop.permute.xlu0 %3020
      %3022 = vrot.lane.b32.xlu0 %v2453, 32
      %v3023 = vpop.permute.xlu0 %3022
      %3024 = vrot.lane.b32.xlu0 %v2454, 32
      %v3025 = vpop.permute.xlu0 %3024
      %3026 = vrot.lane.b32.xlu0 %v2455, 32
      %v3027 = vpop.permute.xlu0 %3026
      %3028 = vrot.lane.b32.xlu0 %v2456, 32
      %v3029 = vpop.permute.xlu0 %3028
      %3030 = vrot.lane.b32.xlu0 %v2457, 32
      %v3031 = vpop.permute.xlu0 %3030
      %3032 = vrot.lane.b32.xlu0 %v2458, 32
      %v3033 = vpop.permute.xlu0 %3032
      %3034 = vrot.lane.b32.xlu0 %v2459, 32
      %v3035 = vpop.permute.xlu0 %3034
      %3036 = vrot.lane.b32.xlu0 %v2460, 32
      %v3037 = vpop.permute.xlu0 %3036
      %3102 = vrot.lane.b32.xlu0 %v2462, 64
      %v3103 = vpop.permute.xlu0 %3102
      %3104 = vrot.lane.b32.xlu0 %v2463, 64
      %v3105 = vpop.permute.xlu0 %3104
      %3106 = vrot.lane.b32.xlu0 %v2464, 64
      %v3107 = vpop.permute.xlu0 %3106
      %3108 = vrot.lane.b32.xlu0 %v2465, 64
      %v3109 = vpop.permute.xlu0 %3108
      %3110 = vrot.lane.b32.xlu0 %v2466, 64
      %v3111 = vpop.permute.xlu0 %3110
      %3112 = vrot.lane.b32.xlu0 %v2467, 64
      %v3113 = vpop.permute.xlu0 %3112
      %3114 = vrot.lane.b32.xlu0 %v2468, 64
      %v3115 = vpop.permute.xlu0 %3114
      %3116 = vrot.lane.b32.xlu0 %v2469, 64
      %v3117 = vpop.permute.xlu0 %3116
      %3118 = vrot.lane.b32.xlu0 %v2470, 64
      %v3119 = vpop.permute.xlu0 %3118
      %3120 = vrot.lane.b32.xlu0 %v2471, 64
      %v3121 = vpop.permute.xlu0 %3120
      %3122 = vrot.lane.b32.xlu0 %v2472, 64
      %v3123 = vpop.permute.xlu0 %3122
      %3124 = vrot.lane.b32.xlu0 %v2473, 64
      %v3125 = vpop.permute.xlu0 %3124
      %3126 = vrot.lane.b32.xlu0 %v2474, 64
      %v3127 = vpop.permute.xlu0 %3126
      %3128 = vrot.lane.b32.xlu0 %v2475, 64
      %v3129 = vpop.permute.xlu0 %3128
      %3130 = vrot.lane.b32.xlu0 %v2476, 64
      %v3131 = vpop.permute.xlu0 %3130
      %3132 = vrot.lane.b32.xlu0 %v2477, 64
      %v3133 = vpop.permute.xlu0 %3132
      %3134 = vrot.lane.b32.xlu0 %v2478, 64
      %v3135 = vpop.permute.xlu0 %3134
      %3136 = vrot.lane.b32.xlu0 %v2479, 64
      %v3137 = vpop.permute.xlu0 %3136
      %3138 = vrot.lane.b32.xlu0 %v2480, 64
      %v3139 = vpop.permute.xlu0 %3138
      %3140 = vrot.lane.b32.xlu0 %v2481, 64
      %v3141 = vpop.permute.xlu0 %3140
      %3142 = vrot.lane.b32.xlu0 %v2482, 64
      %v3143 = vpop.permute.xlu0 %3142
      %3144 = vrot.lane.b32.xlu0 %v2483, 64
      %v3145 = vpop.permute.xlu0 %3144
      %3146 = vrot.lane.b32.xlu0 %v2484, 64
      %v3147 = vpop.permute.xlu0 %3146
      %3148 = vrot.lane.b32.xlu0 %v2485, 64
      %v3149 = vpop.permute.xlu0 %3148
      %3150 = vrot.lane.b32.xlu0 %v2486, 64
      %v3151 = vpop.permute.xlu0 %3150
      %3152 = vrot.lane.b32.xlu0 %v2487, 64
      %v3153 = vpop.permute.xlu0 %3152
      %3154 = vrot.lane.b32.xlu0 %v2488, 64
      %v3155 = vpop.permute.xlu0 %3154
      %3156 = vrot.lane.b32.xlu0 %v2489, 64
      %v3157 = vpop.permute.xlu0 %3156
      %3158 = vrot.lane.b32.xlu0 %v2490, 64
      %v3159 = vpop.permute.xlu0 %3158
      %3160 = vrot.lane.b32.xlu0 %v2491, 64
      %v3161 = vpop.permute.xlu0 %3160
      %3162 = vrot.lane.b32.xlu0 %v2492, 64
      %v3163 = vpop.permute.xlu0 %3162
      %3164 = vrot.lane.b32.xlu0 %v2493, 64
      %v3165 = vpop.permute.xlu0 %3164
      %3230 = vrot.lane.b32.xlu0 %v2494, 96
      %v3231 = vpop.permute.xlu0 %3230
      %3232 = vrot.lane.b32.xlu0 %v2495, 96
      %v3233 = vpop.permute.xlu0 %3232
      %3234 = vrot.lane.b32.xlu0 %v2496, 96
      %v3235 = vpop.permute.xlu0 %3234
      %3236 = vrot.lane.b32.xlu0 %v2497, 96
      %v3237 = vpop.permute.xlu0 %3236
      %3238 = vrot.lane.b32.xlu0 %v2498, 96
      %v3239 = vpop.permute.xlu0 %3238
      %3240 = vrot.lane.b32.xlu0 %v2499, 96
      %v3241 = vpop.permute.xlu0 %3240
      %3242 = vrot.lane.b32.xlu0 %v2500, 96
      %v3243 = vpop.permute.xlu0 %3242
      %3244 = vrot.lane.b32.xlu0 %v2501, 96
      %v3245 = vpop.permute.xlu0 %3244
      %3246 = vrot.lane.b32.xlu0 %v2502, 96
      %v3247 = vpop.permute.xlu0 %3246
      %3248 = vrot.lane.b32.xlu0 %v2503, 96
      %v3249 = vpop.permute.xlu0 %3248
      %3250 = vrot.lane.b32.xlu0 %v2504, 96
      %v3251 = vpop.permute.xlu0 %3250
      %3252 = vrot.lane.b32.xlu0 %v2505, 96
      %v3253 = vpop.permute.xlu0 %3252
      %3254 = vrot.lane.b32.xlu0 %v2506, 96
      %v3255 = vpop.permute.xlu0 %3254
      %3256 = vrot.lane.b32.xlu0 %v2507, 96
      %v3257 = vpop.permute.xlu0 %3256
      %3258 = vrot.lane.b32.xlu0 %v2508, 96
      %v3259 = vpop.permute.xlu0 %3258
      %3260 = vrot.lane.b32.xlu0 %v2509, 96
      %v3261 = vpop.permute.xlu0 %3260
      %3262 = vrot.lane.b32.xlu0 %v2510, 96
      %v3263 = vpop.permute.xlu0 %3262
      %3264 = vrot.lane.b32.xlu0 %v2511, 96
      %v3265 = vpop.permute.xlu0 %3264
      %3266 = vrot.lane.b32.xlu0 %v2512, 96
      %v3267 = vpop.permute.xlu0 %3266
      %3268 = vrot.lane.b32.xlu0 %v2513, 96
      %v3269 = vpop.permute.xlu0 %3268
      %3270 = vrot.lane.b32.xlu0 %v2514, 96
      %v3271 = vpop.permute.xlu0 %3270
      %3272 = vrot.lane.b32.xlu0 %v2515, 96
      %v3273 = vpop.permute.xlu0 %3272
      %3274 = vrot.lane.b32.xlu0 %v2516, 96
      %v3275 = vpop.permute.xlu0 %3274
      %3276 = vrot.lane.b32.xlu0 %v2517, 96
      %v3277 = vpop.permute.xlu0 %3276
      %3278 = vrot.lane.b32.xlu0 %v2518, 96
      %v3279 = vpop.permute.xlu0 %3278
      %3280 = vrot.lane.b32.xlu0 %v2519, 96
      %v3281 = vpop.permute.xlu0 %3280
      %3282 = vrot.lane.b32.xlu0 %v2520, 96
      %v3283 = vpop.permute.xlu0 %3282
      %3284 = vrot.lane.b32.xlu0 %v2521, 96
      %v3285 = vpop.permute.xlu0 %3284
      %3286 = vrot.lane.b32.xlu0 %v2522, 96
      %v3287 = vpop.permute.xlu0 %3286
      %3288 = vrot.lane.b32.xlu0 %v2523, 96
      %v3289 = vpop.permute.xlu0 %3288
      %3290 = vrot.lane.b32.xlu0 %v2524, 96
      %v3291 = vpop.permute.xlu0 %3290
      %3292 = vrot.lane.b32.xlu0 %v2525, 96
      %v3293 = vpop.permute.xlu0 %3292
      %v3326 = vsel %vm349, %v2269, %v2591
      %v3327 = vsel %vm349, %v2270, %v2593
      %v3328 = vsel %vm349, %v2271, %v2595
      %v3329 = vsel %vm349, %v2272, %v2597
      %v3330 = vsel %vm349, %v2273, %v2599
      %v3331 = vsel %vm349, %v2274, %v2601
      %v3332 = vsel %vm349, %v2275, %v2603
      %v3333 = vsel %vm349, %v2276, %v2605
      %v3334 = vsel %vm349, %v2277, %v2607
      %v3335 = vsel %vm349, %v2278, %v2609
      %v3336 = vsel %vm349, %v2279, %v2611
      %v3337 = vsel %vm349, %v2280, %v2613
      %v3338 = vsel %vm349, %v2281, %v2615
      %v3339 = vsel %vm349, %v2282, %v2617
      %v3340 = vsel %vm349, %v2283, %v2619
      %v3341 = vsel %vm349, %v2284, %v2621
      %v3342 = vsel %vm349, %v2285, %v2623
      %v3343 = vsel %vm349, %v2286, %v2625
      %v3344 = vsel %vm349, %v2287, %v2627
      %v3345 = vsel %vm349, %v2288, %v2629
      %v3346 = vsel %vm349, %v2289, %v2631
      %v3347 = vsel %vm349, %v2290, %v2633
      %v3348 = vsel %vm349, %v2291, %v2635
      %v3349 = vsel %vm349, %v2292, %v2637
      %v3350 = vsel %vm349, %v2293, %v2639
      %v3351 = vsel %vm349, %v2294, %v2641
      %v3352 = vsel %vm349, %v2295, %v2643
      %v3353 = vsel %vm349, %v2296, %v2645
      %v3354 = vsel %vm349, %v2297, %v2647
      %v3355 = vsel %vm349, %v2298, %v2649
      %v3356 = vsel %vm349, %v2299, %v2651
      %v3357 = vsel %vm349, %v2300, %v2653
      %v3358 = vsel %vm1752, %v3326, %v2719
      %v3359 = vsel %vm1752, %v3327, %v2721
      %v3360 = vsel %vm1752, %v3328, %v2723
      %v3361 = vsel %vm1752, %v3329, %v2725
      %v3362 = vsel %vm1752, %v3330, %v2727
      %v3363 = vsel %vm1752, %v3331, %v2729
      %v3364 = vsel %vm1752, %v3332, %v2731
      %v3365 = vsel %vm1752, %v3333, %v2733
      %v3366 = vsel %vm1752, %v3334, %v2735
      %v3367 = vsel %vm1752, %v3335, %v2737
      %v3368 = vsel %vm1752, %v3336, %v2739
      %v3369 = vsel %vm1752, %v3337, %v2741
      %v3370 = vsel %vm1752, %v3338, %v2743
      %v3371 = vsel %vm1752, %v3339, %v2745
      %v3372 = vsel %vm1752, %v3340, %v2747
      %v3373 = vsel %vm1752, %v3341, %v2749
      %v3374 = vsel %vm1752, %v3342, %v2751
      %v3375 = vsel %vm1752, %v3343, %v2753
      %v3376 = vsel %vm1752, %v3344, %v2755
      %v3377 = vsel %vm1752, %v3345, %v2757
      %v3378 = vsel %vm1752, %v3346, %v2759
      %v3379 = vsel %vm1752, %v3347, %v2761
      %v3380 = vsel %vm1752, %v3348, %v2763
      %v3381 = vsel %vm1752, %v3349, %v2765
      %v3382 = vsel %vm1752, %v3350, %v2767
      %v3383 = vsel %vm1752, %v3351, %v2769
      %v3384 = vsel %vm1752, %v3352, %v2771
      %v3385 = vsel %vm1752, %v3353, %v2773
      %v3386 = vsel %vm1752, %v3354, %v2775
      %v3387 = vsel %vm1752, %v3355, %v2777
      %v3388 = vsel %vm1752, %v3356, %v2779
      %v3389 = vsel %vm1752, %v3357, %v2781
      %v3390 = vsel %vm1818, %v3358, %v2847
      %v3391 = vsel %vm1818, %v3359, %v2849
      %v3392 = vsel %vm1818, %v3360, %v2851
      %v3393 = vsel %vm1818, %v3361, %v2853
      %v3394 = vsel %vm1818, %v3362, %v2855
      %v3395 = vsel %vm1818, %v3363, %v2857
      %v3396 = vsel %vm1818, %v3364, %v2859
      %v3397 = vsel %vm1818, %v3365, %v2861
      %v3398 = vsel %vm1818, %v3366, %v2863
      %v3399 = vsel %vm1818, %v3367, %v2865
      %v3400 = vsel %vm1818, %v3368, %v2867
      %v3401 = vsel %vm1818, %v3369, %v2869
      %v3402 = vsel %vm1818, %v3370, %v2871
      %v3403 = vsel %vm1818, %v3371, %v2873
      %v3404 = vsel %vm1818, %v3372, %v2875
      %v3405 = vsel %vm1818, %v3373, %v2877
      %v3406 = vsel %vm1818, %v3374, %v2879
      %v3407 = vsel %vm1818, %v3375, %v2881
      %v3408 = vsel %vm1818, %v3376, %v2883
      %v3409 = vsel %vm1818, %v3377, %v2885
      %v3410 = vsel %vm1818, %v3378, %v2887
      %v3411 = vsel %vm1818, %v3379, %v2889
      %v3412 = vsel %vm1818, %v3380, %v2891
      %v3413 = vsel %vm1818, %v3381, %v2893
      %v3414 = vsel %vm1818, %v3382, %v2895
      %v3415 = vsel %vm1818, %v3383, %v2897
      %v3416 = vsel %vm1818, %v3384, %v2899
      %v3417 = vsel %vm1818, %v3385, %v2901
      %v3418 = vsel %vm1818, %v3386, %v2903
      %v3419 = vsel %vm1818, %v3387, %v2905
      %v3420 = vsel %vm1818, %v3388, %v2907
      %v3421 = vsel %vm1818, %v3389, %v2909
      %v3422 = vsel %vm349, %v2397, %v2975
      %v3423 = vsel %vm349, %v2398, %v2977
      %v3424 = vsel %vm349, %v2399, %v2979
      %v3425 = vsel %vm349, %v2400, %v2981
      %v3426 = vsel %vm349, %v2401, %v2983
      %v3427 = vsel %vm349, %v2402, %v2985
      %v3428 = vsel %vm349, %v2403, %v2987
      %v3429 = vsel %vm349, %v2404, %v2989
      %v3430 = vsel %vm349, %v2405, %v2991
      %v3431 = vsel %vm349, %v2406, %v2993
      %v3432 = vsel %vm349, %v2407, %v2995
      %v3433 = vsel %vm349, %v2408, %v2997
      %v3434 = vsel %vm349, %v2409, %v2999
      %v3435 = vsel %vm349, %v2410, %v3001
      %v3436 = vsel %vm349, %v2411, %v3003
      %v3437 = vsel %vm349, %v2412, %v3005
      %v3438 = vsel %vm349, %v2413, %v3007
      %v3439 = vsel %vm349, %v2414, %v3009
      %v3440 = vsel %vm349, %v2415, %v3011
      %v3441 = vsel %vm349, %v2416, %v3013
      %v3442 = vsel %vm349, %v2417, %v3015
      %v3443 = vsel %vm349, %v2418, %v3017
      %v3444 = vsel %vm349, %v2419, %v3019
      %v3445 = vsel %vm349, %v2420, %v3021
      %v3446 = vsel %vm349, %v2421, %v3023
      %v3447 = vsel %vm349, %v2422, %v3025
      %v3448 = vsel %vm349, %v2423, %v3027
      %v3449 = vsel %vm349, %v2424, %v3029
      %v3450 = vsel %vm349, %v2425, %v3031
      %v3451 = vsel %vm349, %v2426, %v3033
      %v3452 = vsel %vm349, %v2427, %v3035
      %v3453 = vsel %vm349, %v2428, %v3037
      %v3454 = vsel %vm1752, %v3422, %v3103
      %v3455 = vsel %vm1752, %v3423, %v3105
      %v3456 = vsel %vm1752, %v3424, %v3107
      %v3457 = vsel %vm1752, %v3425, %v3109
      %v3458 = vsel %vm1752, %v3426, %v3111
      %v3459 = vsel %vm1752, %v3427, %v3113
      %v3460 = vsel %vm1752, %v3428, %v3115
      %v3461 = vsel %vm1752, %v3429, %v3117
      %v3462 = vsel %vm1752, %v3430, %v3119
      %v3463 = vsel %vm1752, %v3431, %v3121
      %v3464 = vsel %vm1752, %v3432, %v3123
      %v3465 = vsel %vm1752, %v3433, %v3125
      %v3466 = vsel %vm1752, %v3434, %v3127
      %v3467 = vsel %vm1752, %v3435, %v3129
      %v3468 = vsel %vm1752, %v3436, %v3131
      %v3469 = vsel %vm1752, %v3437, %v3133
      %v3470 = vsel %vm1752, %v3438, %v3135
      %v3471 = vsel %vm1752, %v3439, %v3137
      %v3472 = vsel %vm1752, %v3440, %v3139
      %v3473 = vsel %vm1752, %v3441, %v3141
      %v3474 = vsel %vm1752, %v3442, %v3143
      %v3475 = vsel %vm1752, %v3443, %v3145
      %v3476 = vsel %vm1752, %v3444, %v3147
      %v3477 = vsel %vm1752, %v3445, %v3149
      %v3478 = vsel %vm1752, %v3446, %v3151
      %v3479 = vsel %vm1752, %v3447, %v3153
      %v3480 = vsel %vm1752, %v3448, %v3155
      %v3481 = vsel %vm1752, %v3449, %v3157
      %v3482 = vsel %vm1752, %v3450, %v3159
      %v3483 = vsel %vm1752, %v3451, %v3161
      %v3484 = vsel %vm1752, %v3452, %v3163
      %v3485 = vsel %vm1752, %v3453, %v3165
      %v3486 = vsel %vm1818, %v3454, %v3231
      %v3487 = vsel %vm1818, %v3455, %v3233
      %v3488 = vsel %vm1818, %v3456, %v3235
      %v3489 = vsel %vm1818, %v3457, %v3237
      %v3490 = vsel %vm1818, %v3458, %v3239
      %v3491 = vsel %vm1818, %v3459, %v3241
      %v3492 = vsel %vm1818, %v3460, %v3243
      %v3493 = vsel %vm1818, %v3461, %v3245
      %v3494 = vsel %vm1818, %v3462, %v3247
      %v3495 = vsel %vm1818, %v3463, %v3249
      %v3496 = vsel %vm1818, %v3464, %v3251
      %v3497 = vsel %vm1818, %v3465, %v3253
      %v3498 = vsel %vm1818, %v3466, %v3255
      %v3499 = vsel %vm1818, %v3467, %v3257
      %v3500 = vsel %vm1818, %v3468, %v3259
      %v3501 = vsel %vm1818, %v3469, %v3261
      %v3502 = vsel %vm1818, %v3470, %v3263
      %v3503 = vsel %vm1818, %v3471, %v3265
      %v3504 = vsel %vm1818, %v3472, %v3267
      %v3505 = vsel %vm1818, %v3473, %v3269
      %v3506 = vsel %vm1818, %v3474, %v3271
      %v3507 = vsel %vm1818, %v3475, %v3273
      %v3508 = vsel %vm1818, %v3476, %v3275
      %v3509 = vsel %vm1818, %v3477, %v3277
      %v3510 = vsel %vm1818, %v3478, %v3279
      %v3511 = vsel %vm1818, %v3479, %v3281
      %v3512 = vsel %vm1818, %v3480, %v3283
      %v3513 = vsel %vm1818, %v3481, %v3285
      %v3514 = vsel %vm1818, %v3482, %v3287
      %v3515 = vsel %vm1818, %v3483, %v3289
      %v3516 = vsel %vm1818, %v3484, %v3291
      %v3517 = vsel %vm1818, %v3485, %v3293
      %v3518 = vpack.c.bf16 %v3391, %v3390
      %v3519 = vpack.c.bf16 %v3487, %v3486
      %v3520 = vpack.c.bf16 %v2527, %v2526
      %v3521 = vpack.c.bf16 %v3393, %v3392
      %v3522 = vpack.c.bf16 %v3489, %v3488
      %v3523 = vpack.c.bf16 %v2529, %v2528
      %v3524 = vpack.c.bf16 %v3395, %v3394
      %v3525 = vpack.c.bf16 %v3491, %v3490
      %v3526 = vpack.c.bf16 %v2531, %v2530
      %v3527 = vpack.c.bf16 %v3397, %v3396
      %v3528 = vpack.c.bf16 %v3493, %v3492
      %v3529 = vpack.c.bf16 %v2533, %v2532
      %v3530 = vpack.c.bf16 %v3399, %v3398
      %v3531 = vpack.c.bf16 %v3495, %v3494
      %v3532 = vpack.c.bf16 %v2535, %v2534
      %v3533 = vpack.c.bf16 %v3401, %v3400
      %v3534 = vpack.c.bf16 %v3497, %v3496
      %v3535 = vpack.c.bf16 %v2537, %v2536
      %v3536 = vpack.c.bf16 %v3403, %v3402
      %v3537 = vpack.c.bf16 %v3499, %v3498
      %v3538 = vpack.c.bf16 %v2539, %v2538
      %v3539 = vpack.c.bf16 %v3405, %v3404
      %v3540 = vpack.c.bf16 %v3501, %v3500
      %v3541 = vpack.c.bf16 %v2541, %v2540
      %v3542 = vpack.c.bf16 %v3407, %v3406
      %v3543 = vpack.c.bf16 %v3503, %v3502
      %v3544 = vpack.c.bf16 %v2543, %v2542
      %v3545 = vpack.c.bf16 %v3409, %v3408
      %v3546 = vpack.c.bf16 %v3505, %v3504
      %v3547 = vpack.c.bf16 %v2545, %v2544
      %v3548 = vpack.c.bf16 %v3411, %v3410
      %v3549 = vpack.c.bf16 %v3507, %v3506
      %v3550 = vpack.c.bf16 %v2547, %v2546
      %v3551 = vpack.c.bf16 %v3413, %v3412
      %v3552 = vpack.c.bf16 %v3509, %v3508
      %v3553 = vpack.c.bf16 %v2549, %v2548
      %v3554 = vpack.c.bf16 %v3415, %v3414
      %v3555 = vpack.c.bf16 %v3511, %v3510
      %v3556 = vpack.c.bf16 %v2551, %v2550
      %v3557 = vpack.c.bf16 %v3417, %v3416
      %v3558 = vpack.c.bf16 %v3513, %v3512
      %v3559 = vpack.c.bf16 %v2553, %v2552
      %v3560 = vpack.c.bf16 %v3419, %v3418
      %v3561 = vpack.c.bf16 %v3515, %v3514
      %v3562 = vpack.c.bf16 %v2555, %v2554
      %v3563 = vpack.c.bf16 %v3421, %v3420
      %v3564 = vpack.c.bf16 %v3517, %v3516
      %v3565 = vpack.c.bf16 %v2557, %v2556
      %v3566 = vld [vmem:[%s3] sm:$0xf]
      %v3567 = vld [vmem:[%s3 + $0x4] sm:$0xf]
      %v3568 = vld [vmem:[%s3 + $0x8] sm:$0xf]
      %v3569 = vld [vmem:[%s3 + $0xc] sm:$0xf]
      %v3570 = vld [vmem:[%s3 + $0x10] sm:$0xf]
      %v3571 = vld [vmem:[%s3 + $0x14] sm:$0xf]
      %v3572 = vld [vmem:[%s3 + $0x18] sm:$0xf]
      %v3573 = vld [vmem:[%s3 + $0x1c] sm:$0xf]
      %v3574 = vld [vmem:[%s3 + $0x20] sm:$0xf]
      %v3575 = vld [vmem:[%s3 + $0x24] sm:$0xf]
      %v3576 = vld [vmem:[%s3 + $0x28] sm:$0xf]
      %v3577 = vld [vmem:[%s3 + $0x2c] sm:$0xf]
      %v3578 = vld [vmem:[%s3 + $0x30] sm:$0xf]
      %v3579 = vld [vmem:[%s3 + $0x34] sm:$0xf]
      %v3580 = vld [vmem:[%s3 + $0x38] sm:$0xf]
      %v3581 = vld [vmem:[%s3 + $0x3c] sm:$0xf]
      %v3582 = vld [vmem:[%s3 + $0x40] sm:$0xf]
      %v3583 = vld [vmem:[%s3 + $0x44] sm:$0xf]
      %v3584 = vld [vmem:[%s3 + $0x48] sm:$0xf]
      %v3585 = vld [vmem:[%s3 + $0x4c] sm:$0xf]
      %v3586 = vld [vmem:[%s3 + $0x50] sm:$0xf]
      %v3587 = vld [vmem:[%s3 + $0x54] sm:$0xf]
      %v3588 = vld [vmem:[%s3 + $0x58] sm:$0xf]
      %v3589 = vld [vmem:[%s3 + $0x5c] sm:$0xf]
      %v3590 = vld [vmem:[%s3 + $0x60] sm:$0xf]
      %v3591 = vld [vmem:[%s3 + $0x64] sm:$0xf]
      %v3592 = vld [vmem:[%s3 + $0x68] sm:$0xf]
      %v3593 = vld [vmem:[%s3 + $0x6c] sm:$0xf]
      %v3594 = vld [vmem:[%s3 + $0x70] sm:$0xf]
      %v3595 = vld [vmem:[%s3 + $0x74] sm:$0xf]
      %v3596 = vld [vmem:[%s3 + $0x78] sm:$0xf]
      %v3597 = vld [vmem:[%s3 + $0x7c] sm:$0xf]
      %v3598 = vld [vmem:[%s3 + $0x80] sm:$0xf]
      %v3599 = vld [vmem:[%s3 + $0x84] sm:$0xf]
      %v3600 = vld [vmem:[%s3 + $0x88] sm:$0xf]
      %v3601 = vld [vmem:[%s3 + $0x8c] sm:$0xf]
      %v3602 = vld [vmem:[%s4] sm:$0x1]
      %v3604 = vlaneseq
      %v3605 = vshrl.u32 %v3604, 7
      %v3606 = vsub.s32 0, %v3605
      %v3607 = vrot.slane %v3602, %v3606
      %v3645 = vunpack.c.l.b16 %v3566
      %v3646 = vunpack.c.l.b16 %v3567
      %v3647 = vunpack.c.l.b16 %v3568
      %v3648 = vunpack.c.l.b16 %v3569
      %v3649 = vunpack.c.l.b16 %v3570
      %v3650 = vunpack.c.l.b16 %v3571
      %v3651 = vunpack.c.l.b16 %v3572
      %v3652 = vunpack.c.l.b16 %v3573
      %v3653 = vunpack.c.l.b16 %v3574
      %v3654 = vunpack.c.l.b16 %v3575
      %v3655 = vunpack.c.l.b16 %v3576
      %v3656 = vunpack.c.l.b16 %v3577
      %v3657 = vunpack.c.l.b16 %v3578
      %v3658 = vunpack.c.l.b16 %v3579
      %v3659 = vunpack.c.l.b16 %v3580
      %v3660 = vunpack.c.l.b16 %v3581
      %v3661 = vunpack.c.l.b16 %v3582
      %v3662 = vunpack.c.l.b16 %v3583
      %v3663 = vunpack.c.l.b16 %v3584
      %v3664 = vunpack.c.l.b16 %v3585
      %v3665 = vunpack.c.l.b16 %v3586
      %v3666 = vunpack.c.l.b16 %v3587
      %v3667 = vunpack.c.l.b16 %v3588
      %v3668 = vunpack.c.l.b16 %v3589
      %v3669 = vunpack.c.l.b16 %v3590
      %v3670 = vunpack.c.l.b16 %v3591
      %v3671 = vunpack.c.l.b16 %v3592
      %v3672 = vunpack.c.l.b16 %v3593
      %v3673 = vunpack.c.l.b16 %v3594
      %v3674 = vunpack.c.l.b16 %v3595
      %v3675 = vunpack.c.l.b16 %v3596
      %v3676 = vunpack.c.l.b16 %v3597
      %v3677 = vunpack.c.l.b16 %v3598
      %v3678 = vunpack.c.l.b16 %v3599
      %v3679 = vunpack.c.l.b16 %v3600
      %v3680 = vunpack.c.l.b16 %v3601
      %v3681 = vpack.c.b16 %v3646, %v3645
      %v3682 = vpack.c.b16 %v3648, %v3647
      %v3683 = vpack.c.b16 %v3650, %v3649
      %v3684 = vpack.c.b16 %v3652, %v3651
      %v3685 = vpack.c.b16 %v3654, %v3653
      %v3686 = vpack.c.b16 %v3656, %v3655
      %v3687 = vpack.c.b16 %v3658, %v3657
      %v3688 = vpack.c.b16 %v3660, %v3659
      %v3689 = vpack.c.b16 %v3662, %v3661
      %v3690 = vpack.c.b16 %v3664, %v3663
      %v3691 = vpack.c.b16 %v3666, %v3665
      %v3692 = vpack.c.b16 %v3668, %v3667
      %v3693 = vpack.c.b16 %v3670, %v3669
      %v3694 = vpack.c.b16 %v3672, %v3671
      %v3695 = vpack.c.b16 %v3674, %v3673
      %v3696 = vpack.c.b16 %v3676, %v3675
      %v3697 = vpack.c.b16 %v3678, %v3677
      %v3698 = vpack.c.b16 %v3680, %v3679
      %v3718 = vsel %vm349, %v3520, 0
      %v3721 = vsel %vm349, %v3523, 0
      %v3724 = vsel %vm349, %v3526, 0
      %v3727 = vsel %vm349, %v3529, 0
      %v3730 = vsel %vm349, %v3532, 0
      %v3733 = vsel %vm349, %v3535, 0
      %v3736 = vsel %vm349, %v3538, 0
      %v3739 = vsel %vm349, %v3541, 0
      %v3742 = vsel %vm349, %v3544, 0
      %v3745 = vsel %vm349, %v3547, 0
      %v3748 = vsel %vm349, %v3550, 0
      %v3751 = vsel %vm349, %v3553, 0
      %v3754 = vsel %vm349, %v3556, 0
      %v3757 = vsel %vm349, %v3559, 0
      %v3760 = vsel %vm349, %v3562, 0
      %v3763 = vsel %vm349, %v3565, 0
      %3765 = vmatprep.subr.bf16.mxu0 0
      %3766 = vmatpush1.bf16.msra.mxu0 %v3681
      %3767 = vmatprep.subr.bf16.mxu0 0
      %3768 = vmatpush1.bf16.msra.mxu0 %v3682
      %3769 = vmatprep.subr.bf16.mxu0 0
      %3770 = vmatpush1.bf16.msra.mxu0 %v3683
      %3771 = vmatprep.subr.bf16.mxu0 0
      %3772 = vmatpush1.bf16.msra.mxu0 %v3684
      %3773 = vmatprep.subr.bf16.mxu0 0
      %3774 = vmatpush1.bf16.msra.mxu0 %v3685
      %3775 = vmatprep.subr.bf16.mxu0 0
      %3776 = vmatpush1.bf16.msra.mxu0 %v3686
      %3777 = vmatprep.subr.bf16.mxu0 0
      %3778 = vmatpush1.bf16.msra.mxu0 %v3687
      %3779 = vmatprep.subr.bf16.mxu0 0
      %3780 = vmatpush1.bf16.msra.mxu0 %v3688
      %3781 = vmatprep.subr.bf16.mxu0 0
      %3782 = vmatpush1.bf16.msra.mxu0 %v3689
      %3783 = vmatprep.subr.bf16.mxu0 0
      %3784 = vmatpush1.bf16.msra.mxu0 %v3690
      %3785 = vmatprep.subr.bf16.mxu0 0
      %3786 = vmatpush1.bf16.msra.mxu0 %v3691
      %3787 = vmatprep.subr.bf16.mxu0 0
      %3788 = vmatpush1.bf16.msra.mxu0 %v3692
      %3789 = vmatprep.subr.bf16.mxu0 0
      %3790 = vmatpush1.bf16.msra.mxu0 %v3693
      %3791 = vmatprep.subr.bf16.mxu0 0
      %3792 = vmatpush1.bf16.msra.mxu0 %v3694
      %3793 = vmatprep.subr.bf16.mxu0 0
      %3794 = vmatpush1.bf16.msra.mxu0 %v3695
      %3795 = vmatprep.subr.bf16.mxu0 0
      %3796 = vmatpush1.bf16.msra.mxu0 %v3696
      %3797 = vmatprep.mubr.bf16.mxu0 %v3519
      %3798 = vmatmul.mubr.bf16.gmra.mrb[0].mxu0 %v3518
      %v3799 = vpop.f32.mrb[0].mxu0
      %v3800 = vadd.f32 %v3607, %v3799
      %v3801 = vpop.f32.mrb[0].mxu0
      %v3802 = vpop.f32.mrb[0].mxu0
      %v3803 = vadd.f32 %v3607, %v3802
      %v3804 = vpop.f32.mrb[0].mxu0
      %3805 = vmatprep.mubr.bf16.mxu0 %v3522
      %3806 = vmatmul.mubr.bf16.gmra.mrb[0].mxu0 %v3521
      %v3807 = vpop.f32.mrb[0].mxu0
      %v3808 = vadd.f32 %v3607, %v3807
      %v3809 = vpop.f32.mrb[0].mxu0
      %v3810 = vpop.f32.mrb[0].mxu0
      %v3811 = vadd.f32 %v3607, %v3810
      %v3812 = vpop.f32.mrb[0].mxu0
      %3813 = vmatprep.mubr.bf16.mxu0 %v3525
      %3814 = vmatmul.mubr.bf16.gmra.mrb[0].mxu0 %v3524
      %v3815 = vpop.f32.mrb[0].mxu0
      %v3816 = vadd.f32 %v3607, %v3815
      %v3817 = vpop.f32.mrb[0].mxu0
      %v3818 = vpop.f32.mrb[0].mxu0
      %v3819 = vadd.f32 %v3607, %v3818
      %v3820 = vpop.f32.mrb[0].mxu0
      %3821 = vmatprep.mubr.bf16.mxu0 %v3528
      %3822 = vmatmul.mubr.bf16.gmra.mrb[0].mxu0 %v3527
      %v3823 = vpop.f32.mrb[0].mxu0
      %v3824 = vadd.f32 %v3607, %v3823
      %v3825 = vpop.f32.mrb[0].mxu0
      %v3826 = vpop.f32.mrb[0].mxu0
      %v3827 = vadd.f32 %v3607, %v3826
      %v3828 = vpop.f32.mrb[0].mxu0
      %3829 = vmatprep.mubr.bf16.mxu0 %v3531
      %3830 = vmatmul.mubr.bf16.gmra.mrb[0].mxu0 %v3530
      %v3831 = vpop.f32.mrb[0].mxu0
      %v3832 = vadd.f32 %v3607, %v3831
      %v3833 = vpop.f32.mrb[0].mxu0
      %v3834 = vpop.f32.mrb[0].mxu0
      %v3835 = vadd.f32 %v3607, %v3834
      %v3836 = vpop.f32.mrb[0].mxu0
      %3837 = vmatprep.mubr.bf16.mxu0 %v3534
      %3838 = vmatmul.mubr.bf16.gmra.mrb[0].mxu0 %v3533
      %v3839 = vpop.f32.mrb[0].mxu0
      %v3840 = vadd.f32 %v3607, %v3839
      %v3841 = vpop.f32.mrb[0].mxu0
      %v3842 = vpop.f32.mrb[0].mxu0
      %v3843 = vadd.f32 %v3607, %v3842
      %v3844 = vpop.f32.mrb[0].mxu0
      %3845 = vmatprep.mubr.bf16.mxu0 %v3537
      %3846 = vmatmul.mubr.bf16.gmra.mrb[0].mxu0 %v3536
      %v3847 = vpop.f32.mrb[0].mxu0
      %v3848 = vadd.f32 %v3607, %v3847
      %v3849 = vpop.f32.mrb[0].mxu0
      %v3850 = vpop.f32.mrb[0].mxu0
      %v3851 = vadd.f32 %v3607, %v3850
      %v3852 = vpop.f32.mrb[0].mxu0
      %3853 = vmatprep.mubr.bf16.mxu0 %v3540
      %3854 = vmatmul.mubr.bf16.gmra.mrb[0].mxu0 %v3539
      %v3855 = vpop.f32.mrb[0].mxu0
      %v3856 = vadd.f32 %v3607, %v3855
      %v3857 = vpop.f32.mrb[0].mxu0
      %v3858 = vpop.f32.mrb[0].mxu0
      %v3859 = vadd.f32 %v3607, %v3858
      %v3860 = vpop.f32.mrb[0].mxu0
      %3861 = vmatprep.mubr.bf16.mxu0 %v3543
      %3862 = vmatmul.mubr.bf16.gmra.mrb[0].mxu0 %v3542
      %v3863 = vpop.f32.mrb[0].mxu0
      %v3864 = vadd.f32 %v3607, %v3863
      %v3865 = vpop.f32.mrb[0].mxu0
      %v3866 = vpop.f32.mrb[0].mxu0
      %v3867 = vadd.f32 %v3607, %v3866
      %v3868 = vpop.f32.mrb[0].mxu0
      %3869 = vmatprep.mubr.bf16.mxu0 %v3546
      %3870 = vmatmul.mubr.bf16.gmra.mrb[0].mxu0 %v3545
      %v3871 = vpop.f32.mrb[0].mxu0
      %v3872 = vadd.f32 %v3607, %v3871
      %v3873 = vpop.f32.mrb[0].mxu0
      %v3874 = vpop.f32.mrb[0].mxu0
      %v3875 = vadd.f32 %v3607, %v3874
      %v3876 = vpop.f32.mrb[0].mxu0
      %3877 = vmatprep.mubr.bf16.mxu0 %v3549
      %3878 = vmatmul.mubr.bf16.gmra.mrb[0].mxu0 %v3548
      %v3879 = vpop.f32.mrb[0].mxu0
      %v3880 = vadd.f32 %v3607, %v3879
      %v3881 = vpop.f32.mrb[0].mxu0
      %v3882 = vpop.f32.mrb[0].mxu0
      %v3883 = vadd.f32 %v3607, %v3882
      %v3884 = vpop.f32.mrb[0].mxu0
      %3885 = vmatprep.mubr.bf16.mxu0 %v3552
      %3886 = vmatmul.mubr.bf16.gmra.mrb[0].mxu0 %v3551
      %v3887 = vpop.f32.mrb[0].mxu0
      %v3888 = vadd.f32 %v3607, %v3887
      %v3889 = vpop.f32.mrb[0].mxu0
      %v3890 = vpop.f32.mrb[0].mxu0
      %v3891 = vadd.f32 %v3607, %v3890
      %v3892 = vpop.f32.mrb[0].mxu0
      %3893 = vmatprep.mubr.bf16.mxu0 %v3555
      %3894 = vmatmul.mubr.bf16.gmra.mrb[0].mxu0 %v3554
      %v3895 = vpop.f32.mrb[0].mxu0
      %v3896 = vadd.f32 %v3607, %v3895
      %v3897 = vpop.f32.mrb[0].mxu0
      %v3898 = vpop.f32.mrb[0].mxu0
      %v3899 = vadd.f32 %v3607, %v3898
      %v3900 = vpop.f32.mrb[0].mxu0
      %3901 = vmatprep.mubr.bf16.mxu0 %v3558
      %3902 = vmatmul.mubr.bf16.gmra.mrb[0].mxu0 %v3557
      %v3903 = vpop.f32.mrb[0].mxu0
      %v3904 = vadd.f32 %v3607, %v3903
      %v3905 = vpop.f32.mrb[0].mxu0
      %v3906 = vpop.f32.mrb[0].mxu0
      %v3907 = vadd.f32 %v3607, %v3906
      %v3908 = vpop.f32.mrb[0].mxu0
      %3909 = vmatprep.mubr.bf16.mxu0 %v3561
      %3910 = vmatmul.mubr.bf16.gmra.mrb[0].mxu0 %v3560
      %v3911 = vpop.f32.mrb[0].mxu0
      %v3912 = vadd.f32 %v3607, %v3911
      %v3913 = vpop.f32.mrb[0].mxu0
      %v3914 = vpop.f32.mrb[0].mxu0
      %v3915 = vadd.f32 %v3607, %v3914
      %v3916 = vpop.f32.mrb[0].mxu0
      %3917 = vmatprep.mubr.bf16.mxu0 %v3564
      %3918 = vmatmul.mubr.bf16.gmra.mrb[0].mxu0 %v3563
      %v3919 = vpop.f32.mrb[0].mxu0
      %v3920 = vadd.f32 %v3607, %v3919
      %v3921 = vpop.f32.mrb[0].mxu0
      %v3922 = vpop.f32.mrb[0].mxu0
      %v3923 = vadd.f32 %v3607, %v3922
      %v3924 = vpop.f32.mrb[0].mxu0
      %3925 = vdwg.mxu0
      %3926 = vmatprep.subr.bf16.mxu0 0
      %3927 = vmatpush1.bf16.msra.mxu0 %v3697
      %3928 = vmatprep.subr.bf16.mxu0 0
      %3929 = vmatpush1.bf16.msra.mxu0 %v3698
      %3930 = vmatprep.subr.bf16.mxu0 0
      %3931 = vmatpush1.bf16.msra.mxu0 0
      %3932 = vmatprep.subr.bf16.mxu0 0
      %3933 = vmatpush1.bf16.msra.mxu0 0
      %3934 = vmatprep.subr.bf16.mxu0 0
      %3935 = vmatpush1.bf16.msra.mxu0 0
      %3936 = vmatprep.subr.bf16.mxu0 0
      %3937 = vmatpush1.bf16.msra.mxu0 0
      %3938 = vmatprep.subr.bf16.mxu0 0
      %3939 = vmatpush1.bf16.msra.mxu0 0
      %3940 = vmatprep.subr.bf16.mxu0 0
      %3941 = vmatpush1.bf16.msra.mxu0 0
      %3942 = vmatprep.subr.bf16.mxu0 0
      %3943 = vmatpush1.bf16.msra.mxu0 0
      %3944 = vmatprep.subr.bf16.mxu0 0
      %3945 = vmatpush1.bf16.msra.mxu0 0
      %3946 = vmatprep.subr.bf16.mxu0 0
      %3947 = vmatpush1.bf16.msra.mxu0 0
      %3948 = vmatprep.subr.bf16.mxu0 0
      %3949 = vmatpush1.bf16.msra.mxu0 0
      %3950 = vmatprep.subr.bf16.mxu0 0
      %3951 = vmatpush1.bf16.msra.mxu0 0
      %3952 = vmatprep.subr.bf16.mxu0 0
      %3953 = vmatpush1.bf16.msra.mxu0 0
      %3954 = vmatprep.subr.bf16.mxu0 0
      %3955 = vmatpush1.bf16.msra.mxu0 0
      %3956 = vmatprep.subr.bf16.mxu0 0
      %3957 = vmatpush1.bf16.msra.mxu0 0
      %3958 = vmatprep.mubr.bf16.mxu0 0
      %3959 = vmatmul.mubr.bf16.gmra.mrb[0].mxu0 %v3718
      %v3960 = vpop.f32.mrb[0].mxu0
      %v3961 = vadd.f32 %v3800, %v3960
      %v3962 = vpop.f32.mrb[0].mxu0
      %v3963 = vpop.f32.mrb[0].mxu0
      %v3964 = vadd.f32 %v3803, %v3963
      %v3965 = vpop.f32.mrb[0].mxu0
      %3966 = vmatprep.mubr.bf16.mxu0 0
      %3967 = vmatmul.mubr.bf16.gmra.mrb[0].mxu0 %v3721
      %v3968 = vpop.f32.mrb[0].mxu0
      %v3969 = vadd.f32 %v3808, %v3968
      %v3970 = vpop.f32.mrb[0].mxu0
      %v3971 = vpop.f32.mrb[0].mxu0
      %v3972 = vadd.f32 %v3811, %v3971
      %v3973 = vpop.f32.mrb[0].mxu0
      %3974 = vmatprep.mubr.bf16.mxu0 0
      %3975 = vmatmul.mubr.bf16.gmra.mrb[0].mxu0 %v3724
      %v3976 = vpop.f32.mrb[0].mxu0
      %v3977 = vadd.f32 %v3816, %v3976
      %v3978 = vpop.f32.mrb[0].mxu0
      %v3979 = vpop.f32.mrb[0].mxu0
      %v3980 = vadd.f32 %v3819, %v3979
      %v3981 = vpop.f32.mrb[0].mxu0
      %3982 = vmatprep.mubr.bf16.mxu0 0
      %3983 = vmatmul.mubr.bf16.gmra.mrb[0].mxu0 %v3727
      %v3984 = vpop.f32.mrb[0].mxu0
      %v3985 = vadd.f32 %v3824, %v3984
      %v3986 = vpop.f32.mrb[0].mxu0
      %v3987 = vpop.f32.mrb[0].mxu0
      %v3988 = vadd.f32 %v3827, %v3987
      %v3989 = vpop.f32.mrb[0].mxu0
      %3990 = vmatprep.mubr.bf16.mxu0 0
      %3991 = vmatmul.mubr.bf16.gmra.mrb[0].mxu0 %v3730
      %v3992 = vpop.f32.mrb[0].mxu0
      %v3993 = vadd.f32 %v3832, %v3992
      %v3994 = vpop.f32.mrb[0].mxu0
      %v3995 = vpop.f32.mrb[0].mxu0
      %v3996 = vadd.f32 %v3835, %v3995
      %v3997 = vpop.f32.mrb[0].mxu0
      %3998 = vmatprep.mubr.bf16.mxu0 0
      %3999 = vmatmul.mubr.bf16.gmra.mrb[0].mxu0 %v3733
      %v4000 = vpop.f32.mrb[0].mxu0
      %v4001 = vadd.f32 %v3840, %v4000
      %v4002 = vpop.f32.mrb[0].mxu0
      %v4003 = vpop.f32.mrb[0].mxu0
      %v4004 = vadd.f32 %v3843, %v4003
      %v4005 = vpop.f32.mrb[0].mxu0
      %4006 = vmatprep.mubr.bf16.mxu0 0
      %4007 = vmatmul.mubr.bf16.gmra.mrb[0].mxu0 %v3736
      %v4008 = vpop.f32.mrb[0].mxu0
      %v4009 = vadd.f32 %v3848, %v4008
      %v4010 = vpop.f32.mrb[0].mxu0
      %v4011 = vpop.f32.mrb[0].mxu0
      %v4012 = vadd.f32 %v3851, %v4011
      %v4013 = vpop.f32.mrb[0].mxu0
      %4014 = vmatprep.mubr.bf16.mxu0 0
      %4015 = vmatmul.mubr.bf16.gmra.mrb[0].mxu0 %v3739
      %v4016 = vpop.f32.mrb[0].mxu0
      %v4017 = vadd.f32 %v3856, %v4016
      %v4018 = vpop.f32.mrb[0].mxu0
      %v4019 = vpop.f32.mrb[0].mxu0
      %v4020 = vadd.f32 %v3859, %v4019
      %v4021 = vpop.f32.mrb[0].mxu0
      %4022 = vmatprep.mubr.bf16.mxu0 0
      %4023 = vmatmul.mubr.bf16.gmra.mrb[0].mxu0 %v3742
      %v4024 = vpop.f32.mrb[0].mxu0
      %v4025 = vadd.f32 %v3864, %v4024
      %v4026 = vpop.f32.mrb[0].mxu0
      %v4027 = vpop.f32.mrb[0].mxu0
      %v4028 = vadd.f32 %v3867, %v4027
      %v4029 = vpop.f32.mrb[0].mxu0
      %4030 = vmatprep.mubr.bf16.mxu0 0
      %4031 = vmatmul.mubr.bf16.gmra.mrb[0].mxu0 %v3745
      %v4032 = vpop.f32.mrb[0].mxu0
      %v4033 = vadd.f32 %v3872, %v4032
      %v4034 = vpop.f32.mrb[0].mxu0
      %v4035 = vpop.f32.mrb[0].mxu0
      %v4036 = vadd.f32 %v3875, %v4035
      %v4037 = vpop.f32.mrb[0].mxu0
      %4038 = vmatprep.mubr.bf16.mxu0 0
      %4039 = vmatmul.mubr.bf16.gmra.mrb[0].mxu0 %v3748
      %v4040 = vpop.f32.mrb[0].mxu0
      %v4041 = vadd.f32 %v3880, %v4040
      %v4042 = vpop.f32.mrb[0].mxu0
      %v4043 = vpop.f32.mrb[0].mxu0
      %v4044 = vadd.f32 %v3883, %v4043
      %v4045 = vpop.f32.mrb[0].mxu0
      %4046 = vmatprep.mubr.bf16.mxu0 0
      %4047 = vmatmul.mubr.bf16.gmra.mrb[0].mxu0 %v3751
      %v4048 = vpop.f32.mrb[0].mxu0
      %v4049 = vadd.f32 %v3888, %v4048
      %v4050 = vpop.f32.mrb[0].mxu0
      %v4051 = vpop.f32.mrb[0].mxu0
      %v4052 = vadd.f32 %v3891, %v4051
      %v4053 = vpop.f32.mrb[0].mxu0
      %4054 = vmatprep.mubr.bf16.mxu0 0
      %4055 = vmatmul.mubr.bf16.gmra.mrb[0].mxu0 %v3754
      %v4056 = vpop.f32.mrb[0].mxu0
      %v4057 = vadd.f32 %v3896, %v4056
      %v4058 = vpop.f32.mrb[0].mxu0
      %v4059 = vpop.f32.mrb[0].mxu0
      %v4060 = vadd.f32 %v3899, %v4059
      %v4061 = vpop.f32.mrb[0].mxu0
      %4062 = vmatprep.mubr.bf16.mxu0 0
      %4063 = vmatmul.mubr.bf16.gmra.mrb[0].mxu0 %v3757
      %v4064 = vpop.f32.mrb[0].mxu0
      %v4065 = vadd.f32 %v3904, %v4064
      %v4066 = vpop.f32.mrb[0].mxu0
      %v4067 = vpop.f32.mrb[0].mxu0
      %v4068 = vadd.f32 %v3907, %v4067
      %v4069 = vpop.f32.mrb[0].mxu0
      %4070 = vmatprep.mubr.bf16.mxu0 0
      %4071 = vmatmul.mubr.bf16.gmra.mrb[0].mxu0 %v3760
      %v4072 = vpop.f32.mrb[0].mxu0
      %v4073 = vadd.f32 %v3912, %v4072
      %v4074 = vpop.f32.mrb[0].mxu0
      %v4075 = vpop.f32.mrb[0].mxu0
      %v4076 = vadd.f32 %v3915, %v4075
      %v4077 = vpop.f32.mrb[0].mxu0
      %4078 = vmatprep.mubr.bf16.mxu0 0
      %4079 = vmatmul.mubr.bf16.gmra.mrb[0].mxu0 %v3763
      %v4080 = vpop.f32.mrb[0].mxu0
      %v4081 = vadd.f32 %v3920, %v4080
      %v4082 = vpop.f32.mrb[0].mxu0
      %v4083 = vpop.f32.mrb[0].mxu0
      %v4084 = vadd.f32 %v3923, %v4083
      %v4085 = vpop.f32.mrb[0].mxu0
      %4086 = vdwg.mxu0
      %v4087 = vmax.f32 %v3961, 0.0
      %v4088 = vmax.f32 %v3964, 0.0
      %v4089 = vmax.f32 %v3969, 0.0
      %v4090 = vmax.f32 %v3972, 0.0
      %v4091 = vmax.f32 %v3977, 0.0
      %v4092 = vmax.f32 %v3980, 0.0
      %v4093 = vmax.f32 %v3985, 0.0
      %v4094 = vmax.f32 %v3988, 0.0
      %v4095 = vmax.f32 %v3993, 0.0
      %v4096 = vmax.f32 %v3996, 0.0
      %v4097 = vmax.f32 %v4001, 0.0
      %v4098 = vmax.f32 %v4004, 0.0
      %v4099 = vmax.f32 %v4009, 0.0
      %v4100 = vmax.f32 %v4012, 0.0
      %v4101 = vmax.f32 %v4017, 0.0
      %v4102 = vmax.f32 %v4020, 0.0
      %v4103 = vmax.f32 %v4025, 0.0
      %v4104 = vmax.f32 %v4028, 0.0
      %v4105 = vmax.f32 %v4033, 0.0
      %v4106 = vmax.f32 %v4036, 0.0
      %v4107 = vmax.f32 %v4041, 0.0
      %v4108 = vmax.f32 %v4044, 0.0
      %v4109 = vmax.f32 %v4049, 0.0
      %v4110 = vmax.f32 %v4052, 0.0
      %v4111 = vmax.f32 %v4057, 0.0
      %v4112 = vmax.f32 %v4060, 0.0
      %v4113 = vmax.f32 %v4065, 0.0
      %v4114 = vmax.f32 %v4068, 0.0
      %v4115 = vmax.f32 %v4073, 0.0
      %v4116 = vmax.f32 %v4076, 0.0
      %v4117 = vmax.f32 %v4081, 0.0
      %v4118 = vmax.f32 %v4084, 0.0
      %4119 = vxpose.xlu0.b32.start [1/16] %v4087, 128
      %4120 = vxpose.xlu0.b32.cont [2/16] %v4088, 128
      %4121 = vxpose.xlu0.b32.cont [3/16] %v4089, 128
      %4122 = vxpose.xlu0.b32.cont [4/16] %v4090, 128
      %4123 = vxpose.xlu0.b32.cont [5/16] %v4091, 128
      %4124 = vxpose.xlu0.b32.cont [6/16] %v4092, 128
      %4125 = vxpose.xlu0.b32.cont [7/16] %v4093, 128
      %4126 = vxpose.xlu0.b32.cont [8/16] %v4094, 128
      %4127 = vxpose.xlu0.b32.cont [9/16] %v4095, 128
      %4128 = vxpose.xlu0.b32.cont [10/16] %v4096, 128
      %4129 = vxpose.xlu0.b32.cont [11/16] %v4097, 128
      %4130 = vxpose.xlu0.b32.cont [12/16] %v4098, 128
      %4131 = vxpose.xlu0.b32.cont [13/16] %v4099, 128
      %4132 = vxpose.xlu0.b32.cont [14/16] %v4100, 128
      %4133 = vxpose.xlu0.b32.cont [15/16] %v4101, 128
      %4134 = vxpose.xlu0.b32.end [16/16] %v4102, 128
      %v4135 = vpop.trf.xlu0
      %v4136 = vpop.trf.xlu0
      %v4137 = vpop.trf.xlu0
      %v4138 = vpop.trf.xlu0
      %v4139 = vpop.trf.xlu0
      %v4140 = vpop.trf.xlu0
      %v4141 = vpop.trf.xlu0
      %v4142 = vpop.trf.xlu0
      %v4143 = vpop.trf.xlu0
      %v4144 = vpop.trf.xlu0
      %v4145 = vpop.trf.xlu0
      %v4146 = vpop.trf.xlu0
      %v4147 = vpop.trf.xlu0
      %v4148 = vpop.trf.xlu0
      %v4149 = vpop.trf.xlu0
      %v4150 = vpop.trf.xlu0
      %4151 = vxpose.xlu0.b32.start [1/16] %v4103, 128
      %4152 = vxpose.xlu0.b32.cont [2/16] %v4104, 128
      %4153 = vxpose.xlu0.b32.cont [3/16] %v4105, 128
      %4154 = vxpose.xlu0.b32.cont [4/16] %v4106, 128
      %4155 = vxpose.xlu0.b32.cont [5/16] %v4107, 128
      %4156 = vxpose.xlu0.b32.cont [6/16] %v4108, 128
      %4157 = vxpose.xlu0.b32.cont [7/16] %v4109, 128
      %4158 = vxpose.xlu0.b32.cont [8/16] %v4110, 128
      %4159 = vxpose.xlu0.b32.cont [9/16] %v4111, 128
      %4160 = vxpose.xlu0.b32.cont [10/16] %v4112, 128
      %4161 = vxpose.xlu0.b32.cont [11/16] %v4113, 128
      %4162 = vxpose.xlu0.b32.cont [12/16] %v4114, 128
      %4163 = vxpose.xlu0.b32.cont [13/16] %v4115, 128
      %4164 = vxpose.xlu0.b32.cont [14/16] %v4116, 128
      %4165 = vxpose.xlu0.b32.cont [15/16] %v4117, 128
      %4166 = vxpose.xlu0.b32.end [16/16] %v4118, 128
      %v4167 = vpop.trf.xlu0
      %v4168 = vpop.trf.xlu0
      %v4169 = vpop.trf.xlu0
      %v4170 = vpop.trf.xlu0
      %v4171 = vpop.trf.xlu0
      %v4172 = vpop.trf.xlu0
      %v4173 = vpop.trf.xlu0
      %v4174 = vpop.trf.xlu0
      %v4175 = vpop.trf.xlu0
      %v4176 = vpop.trf.xlu0
      %v4177 = vpop.trf.xlu0
      %v4178 = vpop.trf.xlu0
      %v4179 = vpop.trf.xlu0
      %v4180 = vpop.trf.xlu0
      %v4181 = vpop.trf.xlu0
      %v4182 = vpop.trf.xlu0
      %4183 = vst [vmem:[%s286] sm:$0xff] %v4135
      %4184 = vst [vmem:[%s286 + $0x8] sm:$0xff] %v4167
      %4185 = vst [vmem:[%s286 + $0x10] sm:$0xff] %v4136
      %4186 = vst [vmem:[%s286 + $0x18] sm:$0xff] %v4168
      %4187 = vst [vmem:[%s286 + $0x20] sm:$0xff] %v4137
      %4188 = vst [vmem:[%s286 + $0x28] sm:$0xff] %v4169
      %4189 = vst [vmem:[%s286 + $0x30] sm:$0xff] %v4138
      %4190 = vst [vmem:[%s286 + $0x38] sm:$0xff] %v4170
      %v4191 = vld [vmem:[%s5] sm:$0xff]
      %v4192 = vld [vmem:[%s5 + $0x8] sm:$0xff]
      %v4193 = vld [vmem:[%s5 + $0x10] sm:$0xff]
      %v4194 = vld [vmem:[%s5 + $0x18] sm:$0xff]
      %v4195 = vld [vmem:[%s5 + $0x20] sm:$0xff]
      %v4196 = vld [vmem:[%s5 + $0x28] sm:$0xff]
      %v4197 = vld [vmem:[%s5 + $0x30] sm:$0xff]
      %v4198 = vld [vmem:[%s5 + $0x38] sm:$0xff]
      %v4199 = vld [vmem:[%s5 + $0x40] sm:$0xff]
      %v4200 = vld [vmem:[%s5 + $0x48] sm:$0xff]
      %v4201 = vld [vmem:[%s5 + $0x50] sm:$0xff]
      %v4202 = vld [vmem:[%s5 + $0x58] sm:$0xff]
      %v4203 = vld [vmem:[%s5 + $0x60] sm:$0xff]
      %v4204 = vld [vmem:[%s5 + $0x68] sm:$0xff]
      %v4205 = vld [vmem:[%s5 + $0x70] sm:$0xff]
      %v4206 = vld [vmem:[%s5 + $0x78] sm:$0xff]
      %v4207 = vld [vmem:[%s5 + $0x80] sm:$0xff]
      %v4208 = vld [vmem:[%s5 + $0x88] sm:$0xff]
      %v4209 = vld [vmem:[%s5 + $0x90] sm:$0xff]
      %v4210 = vld [vmem:[%s5 + $0x98] sm:$0xff]
      %v4211 = vld [vmem:[%s5 + $0xa0] sm:$0xff]
      %v4212 = vld [vmem:[%s5 + $0xa8] sm:$0xff]
      %v4213 = vld [vmem:[%s5 + $0xb0] sm:$0xff]
      %v4214 = vld [vmem:[%s5 + $0xb8] sm:$0xff]
      %v4215 = vld [vmem:[%s5 + $0xc0] sm:$0xff]
      %v4216 = vld [vmem:[%s5 + $0xc8] sm:$0xff]
      %v4217 = vld [vmem:[%s5 + $0xd0] sm:$0xff]
      %v4218 = vld [vmem:[%s5 + $0xd8] sm:$0xff]
      %v4219 = vld [vmem:[%s5 + $0xe0] sm:$0xff]
      %v4220 = vld [vmem:[%s5 + $0xe8] sm:$0xff]
      %v4221 = vld [vmem:[%s5 + $0xf0] sm:$0xff]
      %v4222 = vld [vmem:[%s5 + $0xf8] sm:$0xff]
      %4223 = vmatprep.subr.mxu0 0.0
      %4224 = vmatpush1.msra.mxu0 %v4191
      %4225 = vmatprep.subr.mxu0 0.0
      %4226 = vmatpush1.msra.mxu0 %v4192
      %4227 = vmatprep.subr.mxu0 0.0
      %4228 = vmatpush1.msra.mxu0 %v4193
      %4229 = vmatprep.subr.mxu0 0.0
      %4230 = vmatpush1.msra.mxu0 %v4194
      %4231 = vmatprep.subr.mxu0 0.0
      %4232 = vmatpush1.msra.mxu0 %v4195
      %4233 = vmatprep.subr.mxu0 0.0
      %4234 = vmatpush1.msra.mxu0 %v4196
      %4235 = vmatprep.subr.mxu0 0.0
      %4236 = vmatpush1.msra.mxu0 %v4197
      %4237 = vmatprep.subr.mxu0 0.0
      %4238 = vmatpush1.msra.mxu0 %v4198
      %4239 = vmatprep.subr.mxu0 0.0
      %4240 = vmatpush1.msra.mxu0 %v4199
      %4241 = vmatprep.subr.mxu0 0.0
      %4242 = vmatpush1.msra.mxu0 %v4200
      %4243 = vmatprep.subr.mxu0 0.0
      %4244 = vmatpush1.msra.mxu0 %v4201
      %4245 = vmatprep.subr.mxu0 0.0
      %4246 = vmatpush1.msra.mxu0 %v4202
      %4247 = vmatprep.subr.mxu0 0.0
      %4248 = vmatpush1.msra.mxu0 %v4203
      %4249 = vmatprep.subr.mxu0 0.0
      %4250 = vmatpush1.msra.mxu0 %v4204
      %4251 = vmatprep.subr.mxu0 0.0
      %4252 = vmatpush1.msra.mxu0 %v4205
      %4253 = vmatprep.subr.mxu0 0.0
      %4254 = vmatpush1.msra.mxu0 %v4206
      %4255 = vmatprep.subr.mxu0 0.0
      %4256 = vmatpush1.msra.mxu0 %v4207
      %4257 = vmatprep.subr.mxu0 0.0
      %4258 = vmatpush1.msra.mxu0 %v4208
      %4259 = vmatprep.subr.mxu0 0.0
      %4260 = vmatpush1.msra.mxu0 %v4209
      %4261 = vmatprep.subr.mxu0 0.0
      %4262 = vmatpush1.msra.mxu0 %v4210
      %4263 = vmatprep.subr.mxu0 0.0
      %4264 = vmatpush1.msra.mxu0 %v4211
      %4265 = vmatprep.subr.mxu0 0.0
      %4266 = vmatpush1.msra.mxu0 %v4212
      %4267 = vmatprep.subr.mxu0 0.0
      %4268 = vmatpush1.msra.mxu0 %v4213
      %4269 = vmatprep.subr.mxu0 0.0
      %4270 = vmatpush1.msra.mxu0 %v4214
      %4271 = vmatprep.subr.mxu0 0.0
      %4272 = vmatpush1.msra.mxu0 %v4215
      %4273 = vmatprep.subr.mxu0 0.0
      %4274 = vmatpush1.msra.mxu0 %v4216
      %4275 = vmatprep.subr.mxu0 0.0
      %4276 = vmatpush1.msra.mxu0 %v4217
      %4277 = vmatprep.subr.mxu0 0.0
      %4278 = vmatpush1.msra.mxu0 %v4218
      %4279 = vmatprep.subr.mxu0 0.0
      %4280 = vmatpush1.msra.mxu0 %v4219
      %4281 = vmatprep.subr.mxu0 0.0
      %4282 = vmatpush1.msra.mxu0 %v4220
      %4283 = vmatprep.subr.mxu0 0.0
      %4284 = vmatpush1.msra.mxu0 %v4221
      %4285 = vmatprep.subr.mxu0 0.0
      %4286 = vmatpush1.msra.mxu0 %v4222
      %4287 = vmatprep.mubr.f32.mxu0 %v4167
      %4288 = vmatmul.mubr.f32.gmra.mrb[0].mxu0 %v4135
      %v4289 = vpop.f32.mrb[0].mxu0
      %v4290 = vadd.f32 0.0, %v4289
      %v4291 = vpop.f32.mrb[0].mxu0
      %4292 = vmatprep.mubr.f32.mxu0 %v4168
      %4293 = vmatmul.mubr.f32.gmra.mrb[0].mxu0 %v4136
      %v4294 = vpop.f32.mrb[0].mxu0
      %v4295 = vadd.f32 0.0, %v4294
      %v4296 = vpop.f32.mrb[0].mxu0
      %4297 = vmatprep.mubr.f32.mxu0 %v4169
      %4298 = vmatmul.mubr.f32.gmra.mrb[0].mxu0 %v4137
      %v4299 = vpop.f32.mrb[0].mxu0
      %v4300 = vadd.f32 0.0, %v4299
      %v4301 = vpop.f32.mrb[0].mxu0
      %4302 = vmatprep.mubr.f32.mxu0 %v4170
      %4303 = vmatmul.mubr.f32.gmra.mrb[0].mxu0 %v4138
      %v4304 = vpop.f32.mrb[0].mxu0
      %v4305 = vadd.f32 0.0, %v4304
      %v4306 = vpop.f32.mrb[0].mxu0
      %4307 = vdwg.mxu0
      %4308 = vst.msk [vmem:[%s291] sm:$0xff] %vm1752, %v4290
      %4309 = vst.msk [vmem:[%s291 + $0x8] sm:$0xff] %vm1752, %v4295
      %4310 = vst.msk [vmem:[%s291 + $0x10] sm:$0xff] %vm1752, %v4300
      %4311 = vst.msk [vmem:[%s291 + $0x18] sm:$0xff] %vm1752, %v4305
      %p4312 = scmp.lt.s32.totalorder %s19, 1
      %s4313 = scalar_select %p4312, %s19, 1
      %s4314 = smul.addr %s4313, 8
      %s4315 = smul.addr %s4314, 8
      %s4316 = scalar_lea.vmem %s6, %s4315
      %p4317 = scmp.lt.s32.totalorder %s19, 1
      %s4318 = scalar_select %p4317, %s19, 1
      %s4319 = smul.addr %s4318, 4
      %s4320 = smul.addr %s4319, 8
      %s4321 = scalar_lea.vmem %s7, %s4320
      // Predicated region
      $region45: #{a_call__.1} parent=43 // pred_check
        %p4322 = pneg %p168
      $region46: #{a_call__.1} parent=43 // pred_check_branch
        %4324 = sbr.rel (%p4322) target = $region48
      $region47: #{a_call__.1} parent=43 // pred_region
        _
      $region48: #{a_call__.1} parent=43 // pred_fallthru
        _
      // Predicated region
      $region49: #{a_call__.1} parent=43 // pred_check
        %p4325 = pneg %p194
      $region50: #{a_call__.1} parent=43 // pred_check_branch
        %4327 = sbr.rel (%p4325) target = $region52
      $region51: #{a_call__.1} parent=43 // pred_region
        _
      $region52: #{a_call__.1} parent=43 // pred_fallthru
        _
    $region44: #{a_call__.1} parent=5 // pred_fallthru
      _
    %p4328 = scmp.le.s32.totalorder 2, %s14
    // Predicated region
    $region53: #{a_call__.1} parent=5 // pred_check
      %p4329 = pneg %p4328
    $region54: #{a_call__.1} parent=5 // pred_check_branch
      %4331 = sbr.rel (%p4329) target = $region56
    $region55: #{a_call__.1} parent=5 // pred_region
      %s4332 = ssub.s32 %s14, 2
      // Predicated region
      $region57: #{a_call__.1} parent=55 // pred_check
        %p4333 = pneg %p174
      $region58: #{a_call__.1} parent=55 // pred_check_branch
        %4335 = sbr.rel (%p4333) target = $region60
      $region59: #{a_call__.1} parent=55 // pred_region
        %p4336 = scmp.lt.s32.totalorder %s20, 1
        %s4337 = scalar_select %p4336, %s20, 1
        %s4338 = smul.addr %s4337, 8
        %s4339 = smul.addr %s4338, 8
        %s4340 = scalar_lea.vmem %s6, %s4339
      $region60: #{a_call__.1} parent=55 // pred_fallthru
        _
      // Predicated region
      $region61: #{a_call__.1} parent=55 // pred_check
        %p4341 = pneg %p200
      $region62: #{a_call__.1} parent=55 // pred_check_branch
        %4343 = sbr.rel (%p4341) target = $region64
      $region63: #{a_call__.1} parent=55 // pred_region
        %p4344 = scmp.lt.s32.totalorder %s20, 1
        %s4345 = scalar_select %p4344, %s20, 1
        %s4346 = smul.addr %s4345, 4
        %s4347 = smul.addr %s4346, 8
        %s4348 = scalar_lea.vmem %s7, %s4347
      $region64: #{a_call__.1} parent=55 // pred_fallthru
        _
    $region56: #{a_call__.1} parent=5 // pred_fallthru
      _
  $region6: #{a_call__.1} parent=0 // loop_footer
    %s18 = sadd.s32 1, %s14
  $region7: #{a_call__.1} parent=0 // loop_footer_branch
    %13 = sbr.rel target = $region3
  $region8: #{a_call__.1} parent=0 // loop_exit
    _

</llo_original>
